<compile_context>
chip_gen: v7x
topology: tpu7x:2x2x1
jax: 0.10.0
libtpu: 0.0.40
codegen_flags: <defaults>
</compile_context>

<pallas_src>
import functools

import jax
import jax.numpy as jnp
import numpy as np
from jax.experimental import pallas as pl
from jax.experimental.pallas import tpu as pltpu


# ---------------------------------------------------------------------------
# VMEM budgeting / tile choice
# ---------------------------------------------------------------------------
def _vmem_budgets():
    """(per-step working-set budget, scoped-vmem limit) derived from the chip."""
    phys = 64 * 1024 * 1024  # conservative fallback (v7x per-TC VMEM)
    try:
        phys = int(getattr(pltpu.get_tpu_info(), "vmem_capacity_bytes", phys))
    except Exception:
        pass
    budget = min(24 * 1024 * 1024, phys // 4)          # v7x: 16 MiB, v5e/v6e: 24 MiB
    limit = max(32 * 1024 * 1024, min(64 * 1024 * 1024, phys // 2))
    return budget, limit


def _choose_row_tile(h, per_row_bytes, fixed_bytes, budget_bytes, min_tiles=1):
    """Largest TH (multiple of 8, dividing H) whose real working set fits the
    budget, leaving at least `min_tiles` grid steps along the row axis."""
    assert h % 8 == 0, "spatial height must be a multiple of 8"
    min_tiles = max(1, min(min_tiles, h // 8))
    cap = max(8, (budget_bytes - fixed_bytes) // max(per_row_bytes, 1))
    best = 8
    for t in range(8, h + 1, 8):
        if h % t == 0 and t <= cap and (h // t) >= min_tiles:
            best = t
    return best


# ---------------------------------------------------------------------------
# 3x3 conv (stride 1, pad 1) + bias + tanh, NCHW row-tile.
#   x_ref:   (1, Cin, TH, W)  rows [r0, r0+TH)            (unpadded)
#   top_ref: (1, Cin, 8,  W)  8-row block just above the tile (clamped)
#   bot_ref: (1, Cin, 8,  W)  8-row block just below the tile (clamped)
#   w_ref:   (Cout*Cin*9,) f32 SMEM (OIHW row-major)   b_ref: (Cout,) f32 SMEM
#   o_ref:   (1, Cout, TH, W)
# ---------------------------------------------------------------------------
def _conv3x3_tanh_kernel(x_ref, top_ref, bot_ref, w_ref, b_ref, o_ref):
    cin = x_ref.shape[1]
    cout, th, width = o_ref.shape[1], o_ref.shape[2], o_ref.shape[3]

    ti = pl.program_id(1)
    is_first = ti == 0
    is_last = ti == pl.num_programs(1) - 1

    lane = jax.lax.broadcasted_iota(jnp.int32, (th, width), 1)
    not_col0, not_colN = lane > 0, lane < width - 1
    lane1 = jax.lax.broadcasted_iota(jnp.int32, (1, width), 1)
    not_col0_1, not_colN_1 = lane1 > 0, lane1 < width - 1

    row = jax.lax.broadcasted_iota(jnp.int32, (th, width), 0)
    row0_mask, rowN_mask = row == 0, row == th - 1

    def lane_variants(v, m0, mN):
        # kx=0 needs col x-1, kx=1 col x, kx=2 col x+1 (zero outside the image).
        vl = jnp.where(m0, pltpu.roll(v, 1, axis=1), 0.0)            # col x-1
        vr = jnp.where(mN, pltpu.roll(v, width - 1, axis=1), 0.0)    # col x+1
        return (vl, v, vr)

    xs, tops, bots = [], [], []
    for c in range(cin):
        xc = x_ref[0, c, :, :].astype(jnp.float32)                   # rows r0..r0+TH-1
        xs.append(lane_variants(xc, not_col0, not_colN))

        tr = top_ref[0, c, 7:8, :].astype(jnp.float32)               # row r0-1
        tr = jnp.where(is_first, 0.0, tr)                            # zero above image
        tops.append(lane_variants(tr, not_col0_1, not_colN_1))

        br = bot_ref[0, c, 0:1, :].astype(jnp.float32)               # row r0+TH
        br = jnp.where(is_last, 0.0, br)                             # zero below image
        bots.append(lane_variants(br, not_col0_1, not_colN_1))

    def wsum(srcs, o, ky):
        terms = [srcs[c][kx] * w_ref[((o * cin + c) * 3 + ky) * 3 + kx]
                 for c in range(cin) for kx in range(3)]
        return functools.reduce(lambda a, b: a + b, terms)

    for o in range(cout):
        mid = wsum(xs, o, 1)                  # ky=1 partial (same row)
        above_full = wsum(xs, o, 0)           # ky=0 partial, indexed by input row
        below_full = wsum(xs, o, 2)           # ky=2 partial, indexed by input row
        above_top = wsum(tops, o, 0)          # (1,W) ky=0 partial of row r0-1
        below_bot = wsum(bots, o, 2)          # (1,W) ky=2 partial of row r0+TH

        # out[y] needs above_full[y-1] and below_full[y+1]; boundary rows come
        # from the halo partials (already zeroed outside the image).
        above = jnp.where(row0_mask, above_top, pltpu.roll(above_full, 1, axis=0))
        below = jnp.where(rowN_mask, below_bot, pltpu.roll(below_full, th - 1, axis=0))

        acc = mid + above + below + b_ref[o]          # bias added once, in vregs
        o_ref[0, o, :, :] = jnp.tanh(acc).astype(o_ref.dtype)


def conv3x3_tanh_nchw(x, w, b, row_tile=None):
    """x: (N, Cin, H, W), w: (Cout, Cin, 3, 3), b: (Cout,) -> (N, Cout, H, W)."""
    n, cin, h, wdt = x.shape
    cout = w.shape[0]
    in_b = x.dtype.itemsize
    out_b = in_b
    budget, vmem_limit = _vmem_budgets()
    if row_tile is None:
        per_row = wdt * (2 * cin * in_b + 2 * cout * out_b + (3 * cin + 8) * 4)
        fixed = 2 * 2 * cin * 8 * wdt * in_b            # two halo blocks, 2x buffered
        row_tile = _choose_row_tile(h, per_row, fixed, budget,
                                    min_tiles=2 if n == 1 else 1)
    th = int(row_tile)
    # Halo-safety invariants: 8-row halo blocks + clamped index maps require
    # H % 8 == 0 and TH | H (keeps every block in range).
    assert h % 8 == 0 and th % 8 == 0 and h % th == 0, (h, th)
    thb = th // 8
    last_hb = h // 8 - 1
    n_tiles = h // th

    w_flat = w.reshape(-1).astype(jnp.float32)
    b_flat = b.reshape(-1).astype(jnp.float32)

    cost = pl.CostEstimate(
        flops=2 * n * cout * cin * 9 * h * wdt,
        transcendentals=n * cout * h * wdt,
        bytes_accessed=n * cin * h * wdt * in_b + n * cout * h * wdt * out_b)

    return pl.pallas_call(
        _conv3x3_tanh_kernel,
        out_shape=jax.ShapeDtypeStruct((n, cout, h, wdt), x.dtype),
        grid=(n, n_tiles),
        in_specs=[
            pl.BlockSpec((1, cin, th, wdt), lambda bi, ti: (bi, 0, ti, 0)),
            pl.BlockSpec((1, cin, 8, wdt),
                         lambda bi, ti: (bi, 0, jnp.maximum(ti * thb - 1, 0), 0)),
            pl.BlockSpec((1, cin, 8, wdt),
                         lambda bi, ti: (bi, 0, jnp.minimum(ti * thb + thb, last_hb), 0)),
            pl.BlockSpec(memory_space=pltpu.MemorySpace.SMEM),
            pl.BlockSpec(memory_space=pltpu.MemorySpace.SMEM),
        ],
        out_specs=pl.BlockSpec((1, cout, th, wdt), lambda bi, ti: (bi, 0, ti, 0)),
        compiler_params=pltpu.CompilerParams(
            dimension_semantics=("parallel", "parallel"),
            vmem_limit_bytes=vmem_limit),
        cost_estimate=cost,
    )(x, x, x, w_flat, b_flat)


# ---------------------------------------------------------------------------
# 1x1 conv + bias + tanh, NCHW row-tile (kept in Pallas; cost estimate lets
# XLA schedule this tiny kernel around the 3x3 one).
# ---------------------------------------------------------------------------
def _conv1x1_tanh_kernel(x_ref, w_ref, b_ref, o_ref):
    cin = x_ref.shape[1]
    cout = o_ref.shape[1]
    xs = [x_ref[0, c, :, :].astype(jnp.float32) for c in range(cin)]
    for o in range(cout):
        terms = [xs[c] * w_ref[o * cin + c] for c in range(cin)]
        acc = functools.reduce(lambda a, b: a + b, terms) + b_ref[o]
        o_ref[0, o, :, :] = jnp.tanh(acc).astype(o_ref.dtype)


def conv1x1_tanh_nchw(x, w, b, row_tile=None):
    """x: (N, Cin, H, W), w: (Cout, Cin, 1, 1), b: (Cout,) -> (N, Cout, H, W)."""
    n, cin, h, wdt = x.shape
    cout = w.shape[0]
    in_b = x.dtype.itemsize
    out_b = in_b
    budget, vmem_limit = _vmem_budgets()
    if row_tile is None:
        per_row = wdt * (2 * cin * in_b + 2 * cout * out_b + (cin + 4) * 4)
        row_tile = _choose_row_tile(h, per_row, 0, budget,
                                    min_tiles=2 if n == 1 else 1)
    th = int(row_tile)
    assert h % 8 == 0 and th % 8 == 0 and h % th == 0, (h, th)
    n_tiles = h // th

    w_flat = w.reshape(-1).astype(jnp.float32)
    b_flat = b.reshape(-1).astype(jnp.float32)

    cost = pl.CostEstimate(
        flops=2 * n * cout * cin * h * wdt,
        transcendentals=n * cout * h * wdt,
        bytes_accessed=n * cin * h * wdt * in_b + n * cout * h * wdt * out_b)

    return pl.pallas_call(
        _conv1x1_tanh_kernel,
        out_shape=jax.ShapeDtypeStruct((n, cout, h, wdt), x.dtype),
        grid=(n, n_tiles),
        in_specs=[
            pl.BlockSpec((1, cin, th, wdt), lambda bi, ti: (bi, 0, ti, 0)),
            pl.BlockSpec(memory_space=pltpu.MemorySpace.SMEM),
            pl.BlockSpec(memory_space=pltpu.MemorySpace.SMEM),
        ],
        out_specs=pl.BlockSpec((1, cout, th, wdt), lambda bi, ti: (bi, 0, ti, 0)),
        compiler_params=pltpu.CompilerParams(
            dimension_semantics=("parallel", "parallel"),
            vmem_limit_bytes=vmem_limit),
        cost_estimate=cost,
    )(x, w_flat, b_flat)


# ---------------------------------------------------------------------------
# Spectral normalization (static parameter prep, plain JAX, OUTSIDE the
# jitted forward — weights are static at inference).
# ---------------------------------------------------------------------------
def spectral_normalize(w, n_iter=30, eps=1e-12):
    # TODO(synk): PyTorch's spectral_norm uses a persisted `u` buffer with one
    # power-iteration step per training forward; a converged power iteration
    # from a fixed seed is only approximately equivalent for a trained checkpoint.
    cout = w.shape[0]
    wm = w.reshape(cout, -1).astype(jnp.float32)
    u0 = jax.random.normal(jax.random.PRNGKey(0), (cout,), jnp.float32)
    u0 = u0 / (jnp.linalg.norm(u0) + eps)

    def body(_, u):
        v = wm.T @ u
        v = v / (jnp.linalg.norm(v) + eps)
        u = wm @ v
        return u / (jnp.linalg.norm(u) + eps)

    u = jax.lax.fori_loop(0, n_iter, body, u0)
    v = wm.T @ u
    v = v / (jnp.linalg.norm(v) + eps)
    sigma = u @ (wm @ v)
    return (w / sigma).astype(w.dtype)


# ---------------------------------------------------------------------------
# Forward pass (mirrors OutputLayer.forward; takes pre-normalized weights)
# ---------------------------------------------------------------------------
@functools.partial(jax.jit, static_argnames=("row_tile_3x3", "row_tile_1x1"))
def output_layer_forward(input_resmax, input_res128,
                         w_resmax_sn, b_resmax, w_res128_sn, b_res128,
                         row_tile_3x3=None, row_tile_1x1=None):
    out_max = conv3x3_tanh_nchw(input_resmax, w_resmax_sn, b_resmax,
                                row_tile=row_tile_3x3)
    out_128 = conv1x1_tanh_nchw(input_res128, w_res128_sn, b_res128,
                                row_tile=row_tile_1x1)
    return out_max, out_128


# ---------------------------------------------------------------------------
# Pure-JAX reference (correctness spot-check, takes pre-normalized weights)
# ---------------------------------------------------------------------------
def _reference(input_resmax, input_res128, w3, b3, w1, b1):
    dn3 = jax.lax.conv_dimension_numbers(input_resmax.shape, w3.shape,
                                         ("NCHW", "OIHW", "NCHW"))
    y3 = jax.lax.conv_general_dilated(input_resmax, w3, (1, 1), ((1, 1), (1, 1)),
                                      dimension_numbers=dn3,
                                      precision=jax.lax.Precision.HIGHEST)
    y3 = jnp.tanh(y3 + b3[None, :, None, None])
    dn1 = jax.lax.conv_dimension_numbers(input_res128.shape, w1.shape,
                                         ("NCHW", "OIHW", "NCHW"))
    y1 = jax.lax.conv_general_dilated(input_res128, w1, (1, 1), ((0, 0), (0, 0)),
                                      dimension_numbers=dn1,
                                      precision=jax.lax.Precision.HIGHEST)
    y1 = jnp.tanh(y1 + b1[None, :, None, None])
    return y3, y1


if __name__ == "__main__":
    key = jax.random.PRNGKey(0)
    k1, k2, k3, k4, k5, k6 = jax.random.split(key, 6)

    in_dims_resmax, in_dims_res256, out_dims = 4, 8, 3
    N = 2
    H_max = W_max = 128       # lane-aligned W (multiple of 128), NCHW throughout
    H_128 = W_128 = 128       # the 128x128 branch of the module

    input_resmax = jax.random.normal(k1, (N, in_dims_resmax, H_max, W_max), jnp.float32)
    input_res128 = jax.random.normal(k2, (N, in_dims_res256, H_128, W_128), jnp.float32)

    w_resmax = 0.2 * jax.random.normal(k3, (out_dims, in_dims_resmax, 3, 3), jnp.float32)
    b_resmax = 0.1 * jax.random.normal(k4, (out_dims,), jnp.float32)
    w_res128 = 0.2 * jax.random.normal(k5, (out_dims, in_dims_res256, 1, 1), jnp.float32)
    b_res128 = 0.1 * jax.random.normal(k6, (out_dims,), jnp.float32)

    # Static parameter prep (spectral norm) hoisted out of the hot path.
    w3n = spectral_normalize(w_resmax)
    w1n = spectral_normalize(w_res128)
    (w3n, w1n) = jax.block_until_ready((w3n, w1n))

    # row_tile_3x3=32 -> 4 row tiles per image: exercises the halo blocks and
    # the first/last-tile boundary handling (the chooser would pick 128 here).
    out_max, out_128 = output_layer_forward(
        input_resmax, input_res128, w3n, b_resmax, w1n, b_res128,
        row_tile_3x3=32)
    jax.block_until_ready((out_max, out_128))

    assert out_max.shape == (N, out_dims, H_max, W_max)
    assert out_128.shape == (N, out_dims, H_128, W_128)

    ref_max, ref_128 = _reference(input_resmax, input_res128,
                                  w3n, b_resmax, w1n, b_res128)
    np.testing.assert_allclose(np.asarray(out_max), np.asarray(ref_max),
                               rtol=5e-4, atol=5e-4)
    np.testing.assert_allclose(np.asarray(out_128), np.asarray(ref_128),
                               rtol=5e-4, atol=5e-4)

    # bf16 HBM I/O path (f32 accumulation in-kernel).
    x_bf = input_resmax.astype(jnp.bfloat16)
    out_bf = conv3x3_tanh_nchw(x_bf, w3n, b_resmax, row_tile=32)
    jax.block_until_ready(out_bf)
    ref_bf, _ = _reference(x_bf.astype(jnp.float32), input_res128,
                           w3n, b_resmax, w1n, b_res128)
    np.testing.assert_allclose(np.asarray(out_bf.astype(jnp.float32)),
                               np.asarray(ref_bf), rtol=2e-2, atol=2e-2)

    print("KERNEL_OK")
</pallas_src>

<mosaic_0001>
module attributes {stable_mosaic.version = 11 : i64} {
  func.func @_conv1x1_tanh_kernel(%arg0: i32, %arg1: i32, %arg2: memref<1x8x128x128xf32, #tpu.memory_space<vmem>>, %arg3: memref<24xf32, #tpu.memory_space<smem>>, %arg4: memref<3xf32, #tpu.memory_space<smem>>, %arg5: memref<1x3x128x128xf32, #tpu.memory_space<vmem>>) attributes {dimension_semantics = [#tpu.dimension_semantics<parallel>, #tpu.dimension_semantics<parallel>], iteration_bounds = array<i64: 2, 1>, scalar_prefetch = 0 : i64, scratch_operands = 0 : i64, tpu.core_type = #tpu.core_type<tc>, window_params = [{transform_indices = @transform_0, window_bounds = array<i64: 1, 8, 128, 128>}, {transform_indices = @transform_1, window_bounds = array<i64: 24>}, {transform_indices = @transform_2, window_bounds = array<i64: 3>}, {transform_indices = @transform_3, window_bounds = array<i64: 1, 3, 128, 128>}]} {
    %c0 = arith.constant 0 : index
    %c0_0 = arith.constant 0 : index
    %c0_1 = arith.constant 0 : index
    %c0_2 = arith.constant 0 : index
    %0 = vector.load %arg2[%c0, %c0_0, %c0_1, %c0_2] : memref<1x8x128x128xf32, #tpu.memory_space<vmem>>, vector<1x1x128x128xf32>
    %1 = vector.shape_cast %0 : vector<1x1x128x128xf32> to vector<128x128xf32>
    %c0_3 = arith.constant 0 : index
    %c1 = arith.constant 1 : index
    %c0_4 = arith.constant 0 : index
    %c0_5 = arith.constant 0 : index
    %2 = vector.load %arg2[%c0_3, %c1, %c0_4, %c0_5] : memref<1x8x128x128xf32, #tpu.memory_space<vmem>>, vector<1x1x128x128xf32>
    %3 = vector.shape_cast %2 : vector<1x1x128x128xf32> to vector<128x128xf32>
    %c0_6 = arith.constant 0 : index
    %c2 = arith.constant 2 : index
    %c0_7 = arith.constant 0 : index
    %c0_8 = arith.constant 0 : index
    %4 = vector.load %arg2[%c0_6, %c2, %c0_7, %c0_8] : memref<1x8x128x128xf32, #tpu.memory_space<vmem>>, vector<1x1x128x128xf32>
    %5 = vector.shape_cast %4 : vector<1x1x128x128xf32> to vector<128x128xf32>
    %c0_9 = arith.constant 0 : index
    %c3 = arith.constant 3 : index
    %c0_10 = arith.constant 0 : index
    %c0_11 = arith.constant 0 : index
    %6 = vector.load %arg2[%c0_9, %c3, %c0_10, %c0_11] : memref<1x8x128x128xf32, #tpu.memory_space<vmem>>, vector<1x1x128x128xf32>
    %7 = vector.shape_cast %6 : vector<1x1x128x128xf32> to vector<128x128xf32>
    %c0_12 = arith.constant 0 : index
    %c4 = arith.constant 4 : index
    %c0_13 = arith.constant 0 : index
    %c0_14 = arith.constant 0 : index
    %8 = vector.load %arg2[%c0_12, %c4, %c0_13, %c0_14] : memref<1x8x128x128xf32, #tpu.memory_space<vmem>>, vector<1x1x128x128xf32>
    %9 = vector.shape_cast %8 : vector<1x1x128x128xf32> to vector<128x128xf32>
    %c0_15 = arith.constant 0 : index
    %c5 = arith.constant 5 : index
    %c0_16 = arith.constant 0 : index
    %c0_17 = arith.constant 0 : index
    %10 = vector.load %arg2[%c0_15, %c5, %c0_16, %c0_17] : memref<1x8x128x128xf32, #tpu.memory_space<vmem>>, vector<1x1x128x128xf32>
    %11 = vector.shape_cast %10 : vector<1x1x128x128xf32> to vector<128x128xf32>
    %c0_18 = arith.constant 0 : index
    %c6 = arith.constant 6 : index
    %c0_19 = arith.constant 0 : index
    %c0_20 = arith.constant 0 : index
    %12 = vector.load %arg2[%c0_18, %c6, %c0_19, %c0_20] : memref<1x8x128x128xf32, #tpu.memory_space<vmem>>, vector<1x1x128x128xf32>
    %13 = vector.shape_cast %12 : vector<1x1x128x128xf32> to vector<128x128xf32>
    %c0_21 = arith.constant 0 : index
    %c7 = arith.constant 7 : index
    %c0_22 = arith.constant 0 : index
    %c0_23 = arith.constant 0 : index
    %14 = vector.load %arg2[%c0_21, %c7, %c0_22, %c0_23] : memref<1x8x128x128xf32, #tpu.memory_space<vmem>>, vector<1x1x128x128xf32>
    %15 = vector.shape_cast %14 : vector<1x1x128x128xf32> to vector<128x128xf32>
    %c0_24 = arith.constant 0 : index
    %16 = memref.load %arg3[%c0_24] : memref<24xf32, #tpu.memory_space<smem>>
    %17 = vector.broadcast %16 : f32 to vector<128x128xf32>
    %18 = arith.mulf %1, %17 : vector<128x128xf32>
    %c1_25 = arith.constant 1 : index
    %19 = memref.load %arg3[%c1_25] : memref<24xf32, #tpu.memory_space<smem>>
    %20 = vector.broadcast %19 : f32 to vector<128x128xf32>
    %21 = arith.mulf %3, %20 : vector<128x128xf32>
    %c2_26 = arith.constant 2 : index
    %22 = memref.load %arg3[%c2_26] : memref<24xf32, #tpu.memory_space<smem>>
    %23 = vector.broadcast %22 : f32 to vector<128x128xf32>
    %24 = arith.mulf %5, %23 : vector<128x128xf32>
    %c3_27 = arith.constant 3 : index
    %25 = memref.load %arg3[%c3_27] : memref<24xf32, #tpu.memory_space<smem>>
    %26 = vector.broadcast %25 : f32 to vector<128x128xf32>
    %27 = arith.mulf %7, %26 : vector<128x128xf32>
    %c4_28 = arith.constant 4 : index
    %28 = memref.load %arg3[%c4_28] : memref<24xf32, #tpu.memory_space<smem>>
    %29 = vector.broadcast %28 : f32 to vector<128x128xf32>
    %30 = arith.mulf %9, %29 : vector<128x128xf32>
    %c5_29 = arith.constant 5 : index
    %31 = memref.load %arg3[%c5_29] : memref<24xf32, #tpu.memory_space<smem>>
    %32 = vector.broadcast %31 : f32 to vector<128x128xf32>
    %33 = arith.mulf %11, %32 : vector<128x128xf32>
    %c6_30 = arith.constant 6 : index
    %34 = memref.load %arg3[%c6_30] : memref<24xf32, #tpu.memory_space<smem>>
    %35 = vector.broadcast %34 : f32 to vector<128x128xf32>
    %36 = arith.mulf %13, %35 : vector<128x128xf32>
    %c7_31 = arith.constant 7 : index
    %37 = memref.load %arg3[%c7_31] : memref<24xf32, #tpu.memory_space<smem>>
    %38 = vector.broadcast %37 : f32 to vector<128x128xf32>
    %39 = arith.mulf %15, %38 : vector<128x128xf32>
    %40 = arith.addf %18, %21 : vector<128x128xf32>
    %41 = arith.addf %40, %24 : vector<128x128xf32>
    %42 = arith.addf %41, %27 : vector<128x128xf32>
    %43 = arith.addf %42, %30 : vector<128x128xf32>
    %44 = arith.addf %43, %33 : vector<128x128xf32>
    %45 = arith.addf %44, %36 : vector<128x128xf32>
    %46 = arith.addf %45, %39 : vector<128x128xf32>
    %c0_32 = arith.constant 0 : index
    %47 = memref.load %arg4[%c0_32] : memref<3xf32, #tpu.memory_space<smem>>
    %48 = vector.broadcast %47 : f32 to vector<128x128xf32>
    %49 = arith.addf %46, %48 : vector<128x128xf32>
    %50 = math.tanh %49 : vector<128x128xf32>
    %c0_33 = arith.constant 0 : index
    %c0_34 = arith.constant 0 : index
    %c0_35 = arith.constant 0 : index
    %c0_36 = arith.constant 0 : index
    %51 = vector.load %arg5[%c0_33, %c0_34, %c0_35, %c0_36] : memref<1x3x128x128xf32, #tpu.memory_space<vmem>>, vector<1x1x128x128xf32>
    %52 = vector.shape_cast %51 : vector<1x1x128x128xf32> to vector<128x128xf32>
    %53 = vector.shape_cast %50 : vector<128x128xf32> to vector<1x1x128x128xf32>
    tpu.vector_store %arg5[%c0_33, %c0_34, %c0_35, %c0_36], %53 {strides = array<i32>} : memref<1x3x128x128xf32, #tpu.memory_space<vmem>>, vector<1x1x128x128xf32>,
    %c8 = arith.constant 8 : index
    %54 = memref.load %arg3[%c8] : memref<24xf32, #tpu.memory_space<smem>>
    %55 = vector.broadcast %54 : f32 to vector<128x128xf32>
    %56 = arith.mulf %1, %55 : vector<128x128xf32>
    %c9 = arith.constant 9 : index
    %57 = memref.load %arg3[%c9] : memref<24xf32, #tpu.memory_space<smem>>
    %58 = vector.broadcast %57 : f32 to vector<128x128xf32>
    %59 = arith.mulf %3, %58 : vector<128x128xf32>
    %c10 = arith.constant 10 : index
    %60 = memref.load %arg3[%c10] : memref<24xf32, #tpu.memory_space<smem>>
    %61 = vector.broadcast %60 : f32 to vector<128x128xf32>
    %62 = arith.mulf %5, %61 : vector<128x128xf32>
    %c11 = arith.constant 11 : index
    %63 = memref.load %arg3[%c11] : memref<24xf32, #tpu.memory_space<smem>>
    %64 = vector.broadcast %63 : f32 to vector<128x128xf32>
    %65 = arith.mulf %7, %64 : vector<128x128xf32>
    %c12 = arith.constant 12 : index
    %66 = memref.load %arg3[%c12] : memref<24xf32, #tpu.memory_space<smem>>
    %67 = vector.broadcast %66 : f32 to vector<128x128xf32>
    %68 = arith.mulf %9, %67 : vector<128x128xf32>
    %c13 = arith.constant 13 : index
    %69 = memref.load %arg3[%c13] : memref<24xf32, #tpu.memory_space<smem>>
    %70 = vector.broadcast %69 : f32 to vector<128x128xf32>
    %71 = arith.mulf %11, %70 : vector<128x128xf32>
    %c14 = arith.constant 14 : index
    %72 = memref.load %arg3[%c14] : memref<24xf32, #tpu.memory_space<smem>>
    %73 = vector.broadcast %72 : f32 to vector<128x128xf32>
    %74 = arith.mulf %13, %73 : vector<128x128xf32>
    %c15 = arith.constant 15 : index
    %75 = memref.load %arg3[%c15] : memref<24xf32, #tpu.memory_space<smem>>
    %76 = vector.broadcast %75 : f32 to vector<128x128xf32>
    %77 = arith.mulf %15, %76 : vector<128x128xf32>
    %78 = arith.addf %56, %59 : vector<128x128xf32>
    %79 = arith.addf %78, %62 : vector<128x128xf32>
    %80 = arith.addf %79, %65 : vector<128x128xf32>
    %81 = arith.addf %80, %68 : vector<128x128xf32>
    %82 = arith.addf %81, %71 : vector<128x128xf32>
    %83 = arith.addf %82, %74 : vector<128x128xf32>
    %84 = arith.addf %83, %77 : vector<128x128xf32>
    %c1_37 = arith.constant 1 : index
    %85 = memref.load %arg4[%c1_37] : memref<3xf32, #tpu.memory_space<smem>>
    %86 = vector.broadcast %85 : f32 to vector<128x128xf32>
    %87 = arith.addf %84, %86 : vector<128x128xf32>
    %88 = math.tanh %87 : vector<128x128xf32>
    %c0_38 = arith.constant 0 : index
    %c1_39 = arith.constant 1 : index
    %c0_40 = arith.constant 0 : index
    %c0_41 = arith.constant 0 : index
    %89 = vector.load %arg5[%c0_38, %c1_39, %c0_40, %c0_41] : memref<1x3x128x128xf32, #tpu.memory_space<vmem>>, vector<1x1x128x128xf32>
    %90 = vector.shape_cast %89 : vector<1x1x128x128xf32> to vector<128x128xf32>
    %91 = vector.shape_cast %88 : vector<128x128xf32> to vector<1x1x128x128xf32>
    tpu.vector_store %arg5[%c0_38, %c1_39, %c0_40, %c0_41], %91 {strides = array<i32>} : memref<1x3x128x128xf32, #tpu.memory_space<vmem>>, vector<1x1x128x128xf32>,
    %c16 = arith.constant 16 : index
    %92 = memref.load %arg3[%c16] : memref<24xf32, #tpu.memory_space<smem>>
    %93 = vector.broadcast %92 : f32 to vector<128x128xf32>
    %94 = arith.mulf %1, %93 : vector<128x128xf32>
    %c17 = arith.constant 17 : index
    %95 = memref.load %arg3[%c17] : memref<24xf32, #tpu.memory_space<smem>>
    %96 = vector.broadcast %95 : f32 to vector<128x128xf32>
    %97 = arith.mulf %3, %96 : vector<128x128xf32>
    %c18 = arith.constant 18 : index
    %98 = memref.load %arg3[%c18] : memref<24xf32, #tpu.memory_space<smem>>
    %99 = vector.broadcast %98 : f32 to vector<128x128xf32>
    %100 = arith.mulf %5, %99 : vector<128x128xf32>
    %c19 = arith.constant 19 : index
    %101 = memref.load %arg3[%c19] : memref<24xf32, #tpu.memory_space<smem>>
    %102 = vector.broadcast %101 : f32 to vector<128x128xf32>
    %103 = arith.mulf %7, %102 : vector<128x128xf32>
    %c20 = arith.constant 20 : index
    %104 = memref.load %arg3[%c20] : memref<24xf32, #tpu.memory_space<smem>>
    %105 = vector.broadcast %104 : f32 to vector<128x128xf32>
    %106 = arith.mulf %9, %105 : vector<128x128xf32>
    %c21 = arith.constant 21 : index
    %107 = memref.load %arg3[%c21] : memref<24xf32, #tpu.memory_space<smem>>
    %108 = vector.broadcast %107 : f32 to vector<128x128xf32>
    %109 = arith.mulf %11, %108 : vector<128x128xf32>
    %c22 = arith.constant 22 : index
    %110 = memref.load %arg3[%c22] : memref<24xf32, #tpu.memory_space<smem>>
    %111 = vector.broadcast %110 : f32 to vector<128x128xf32>
    %112 = arith.mulf %13, %111 : vector<128x128xf32>
    %c23 = arith.constant 23 : index
    %113 = memref.load %arg3[%c23] : memref<24xf32, #tpu.memory_space<smem>>
    %114 = vector.broadcast %113 : f32 to vector<128x128xf32>
    %115 = arith.mulf %15, %114 : vector<128x128xf32>
    %116 = arith.addf %94, %97 : vector<128x128xf32>
    %117 = arith.addf %116, %100 : vector<128x128xf32>
    %118 = arith.addf %117, %103 : vector<128x128xf32>
    %119 = arith.addf %118, %106 : vector<128x128xf32>
    %120 = arith.addf %119, %109 : vector<128x128xf32>
    %121 = arith.addf %120, %112 : vector<128x128xf32>
    %122 = arith.addf %121, %115 : vector<128x128xf32>
    %c2_42 = arith.constant 2 : index
    %123 = memref.load %arg4[%c2_42] : memref<3xf32, #tpu.memory_space<smem>>
    %124 = vector.broadcast %123 : f32 to vector<128x128xf32>
    %125 = arith.addf %122, %124 : vector<128x128xf32>
    %126 = math.tanh %125 : vector<128x128xf32>
    %c0_43 = arith.constant 0 : index
    %c2_44 = arith.constant 2 : index
    %c0_45 = arith.constant 0 : index
    %c0_46 = arith.constant 0 : index
    %127 = vector.load %arg5[%c0_43, %c2_44, %c0_45, %c0_46] : memref<1x3x128x128xf32, #tpu.memory_space<vmem>>, vector<1x1x128x128xf32>
    %128 = vector.shape_cast %127 : vector<1x1x128x128xf32> to vector<128x128xf32>
    %129 = vector.shape_cast %126 : vector<128x128xf32> to vector<1x1x128x128xf32>
    tpu.vector_store %arg5[%c0_43, %c2_44, %c0_45, %c0_46], %129 {strides = array<i32>} : memref<1x3x128x128xf32, #tpu.memory_space<vmem>>, vector<1x1x128x128xf32>,
    return
  }
  func.func @transform_0(%arg0: i32, %arg1: i32) -> (i32, i32, i32, i32) {
    %c0_i32 = arith.constant 0 : i32
    %c0_i32_0 = arith.constant 0 : i32
    %c0_i32_1 = arith.constant 0 : i32
    return %arg0, %c0_i32, %arg1, %c0_i32_0 : i32, i32, i32, i32
  }
  func.func @transform_1(%arg0: i32, %arg1: i32) -> i32 {
    %c0_i32 = arith.constant 0 : i32
    %c0_i32_0 = arith.constant 0 : i32
    return %c0_i32 : i32
  }
  func.func @transform_2(%arg0: i32, %arg1: i32) -> i32 {
    %c0_i32 = arith.constant 0 : i32
    %c0_i32_0 = arith.constant 0 : i32
    return %c0_i32 : i32
  }
  func.func @transform_3(%arg0: i32, %arg1: i32) -> (i32, i32, i32, i32) {
    %c0_i32 = arith.constant 0 : i32
    %c0_i32_0 = arith.constant 0 : i32
    %c0_i32_1 = arith.constant 0 : i32
    return %arg0, %c0_i32, %arg1, %c0_i32_0 : i32, i32, i32, i32
  }
}

module attributes {stable_mosaic.version = 11 : i64} {
  func.func @_conv3x3_tanh_kernel(%arg0: i32, %arg1: i32, %arg2: memref<1x4x32x128xf32, #tpu.memory_space<vmem>>, %arg3: memref<1x4x8x128xf32, #tpu.memory_space<vmem>>, %arg4: memref<1x4x8x128xf32, #tpu.memory_space<vmem>>, %arg5: memref<108xf32, #tpu.memory_space<smem>>, %arg6: memref<3xf32, #tpu.memory_space<smem>>, %arg7: memref<1x3x32x128xf32, #tpu.memory_space<vmem>>) attributes {dimension_semantics = [#tpu.dimension_semantics<parallel>, #tpu.dimension_semantics<parallel>], iteration_bounds = array<i64: 2, 4>, scalar_prefetch = 0 : i64, scratch_operands = 0 : i64, tpu.core_type = #tpu.core_type<tc>, window_params = [{transform_indices = @transform_0, window_bounds = array<i64: 1, 4, 32, 128>}, {transform_indices = @transform_1, window_bounds = array<i64: 1, 4, 8, 128>}, {transform_indices = @transform_2, window_bounds = array<i64: 1, 4, 8, 128>}, {transform_indices = @transform_3, window_bounds = array<i64: 108>}, {transform_indices = @transform_4, window_bounds = array<i64: 3>}, {transform_indices = @transform_5, window_bounds = array<i64: 1, 3, 32, 128>}]} {
    %c0_i32 = arith.constant 0 : i32
    %0 = arith.cmpi eq, %arg1, %c0_i32 : i32
    %c3_i32 = arith.constant 3 : i32
    %1 = arith.cmpi eq, %arg1, %c3_i32 : i32
    %2 = tpu.iota {dimensions = array<i32: 1>} : vector<32x128xi32>
    %c0_i32_0 = arith.constant 0 : i32
    %3 = vector.broadcast %c0_i32_0 : i32 to vector<32x128xi32>
    %4 = arith.cmpi sgt, %2, %3 : vector<32x128xi32>
    %c127_i32 = arith.constant 127 : i32
    %5 = vector.broadcast %c127_i32 : i32 to vector<32x128xi32>
    %6 = arith.cmpi slt, %2, %5 : vector<32x128xi32>
    %7 = tpu.iota {dimensions = array<i32: 1>} : vector<1x128xi32>
    %c0_i32_1 = arith.constant 0 : i32
    %8 = vector.broadcast %c0_i32_1 : i32 to vector<1x128xi32>
    %9 = arith.cmpi sgt, %7, %8 : vector<1x128xi32>
    %c127_i32_2 = arith.constant 127 : i32
    %10 = vector.broadcast %c127_i32_2 : i32 to vector<1x128xi32>
    %11 = arith.cmpi slt, %7, %10 : vector<1x128xi32>
    %12 = tpu.iota {dimensions = array<i32: 0>} : vector<32x128xi32>
    %c0_i32_3 = arith.constant 0 : i32
    %13 = vector.broadcast %c0_i32_3 : i32 to vector<32x128xi32>
    %14 = arith.cmpi eq, %12, %13 : vector<32x128xi32>
    %c31_i32 = arith.constant 31 : i32
    %15 = vector.broadcast %c31_i32 : i32 to vector<32x128xi32>
    %16 = arith.cmpi eq, %12, %15 : vector<32x128xi32>
    %c0 = arith.constant 0 : index
    %c0_4 = arith.constant 0 : index
    %c0_5 = arith.constant 0 : index
    %c0_6 = arith.constant 0 : index
    %17 = vector.load %arg2[%c0, %c0_4, %c0_5, %c0_6] : memref<1x4x32x128xf32, #tpu.memory_space<vmem>>, vector<1x1x32x128xf32>
    %18 = vector.shape_cast %17 : vector<1x1x32x128xf32> to vector<32x128xf32>
    %c1_i32 = arith.constant 1 : i32
    %19 = tpu.dynamic_rotate %18 by %c1_i32 dim 1 : vector<32x128xf32>, i32 -> vector<32x128xf32>
    %cst = arith.constant 0.000000e+00 : f32
    %20 = vector.broadcast %cst : f32 to vector<32x128xf32>
    %21 = arith.select %4, %19, %20 : vector<32x128xi1>, vector<32x128xf32>
    %c127_i32_7 = arith.constant 127 : i32
    %22 = tpu.dynamic_rotate %18 by %c127_i32_7 dim 1 : vector<32x128xf32>, i32 -> vector<32x128xf32>
    %cst_8 = arith.constant 0.000000e+00 : f32
    %23 = vector.broadcast %cst_8 : f32 to vector<32x128xf32>
    %24 = arith.select %6, %22, %23 : vector<32x128xi1>, vector<32x128xf32>
    %c0_9 = arith.constant 0 : index
    %c0_10 = arith.constant 0 : index
    %c7 = arith.constant 7 : index
    %c0_11 = arith.constant 0 : index
    %25 = vector.load %arg3[%c0_9, %c0_10, %c7, %c0_11] : memref<1x4x8x128xf32, #tpu.memory_space<vmem>>, vector<1x1x1x128xf32>
    %26 = vector.shape_cast %25 : vector<1x1x1x128xf32> to vector<1x128xf32>
    %cst_12 = arith.constant 0.000000e+00 : f32
    %27 = vector.broadcast %cst_12 : f32 to vector<1x128xf32>
    %28 = arith.select %0, %27, %26 : vector<1x128xf32>
    %c1_i32_13 = arith.constant 1 : i32
    %29 = tpu.dynamic_rotate %28 by %c1_i32_13 dim 1 : vector<1x128xf32>, i32 -> vector<1x128xf32>
    %cst_14 = arith.constant 0.000000e+00 : f32
    %30 = vector.broadcast %cst_14 : f32 to vector<1x128xf32>
    %31 = arith.select %9, %29, %30 : vector<1x128xi1>, vector<1x128xf32>
    %c127_i32_15 = arith.constant 127 : i32
    %32 = tpu.dynamic_rotate %28 by %c127_i32_15 dim 1 : vector<1x128xf32>, i32 -> vector<1x128xf32>
    %cst_16 = arith.constant 0.000000e+00 : f32
    %33 = vector.broadcast %cst_16 : f32 to vector<1x128xf32>
    %34 = arith.select %11, %32, %33 : vector<1x128xi1>, vector<1x128xf32>
    %c0_17 = arith.constant 0 : index
    %c0_18 = arith.constant 0 : index
    %c0_19 = arith.constant 0 : index
    %c0_20 = arith.constant 0 : index
    %35 = vector.load %arg4[%c0_17, %c0_18, %c0_19, %c0_20] : memref<1x4x8x128xf32, #tpu.memory_space<vmem>>, vector<1x1x1x128xf32>
    %36 = vector.shape_cast %35 : vector<1x1x1x128xf32> to vector<1x128xf32>
    %cst_21 = arith.constant 0.000000e+00 : f32
    %37 = vector.broadcast %cst_21 : f32 to vector<1x128xf32>
    %38 = arith.select %1, %37, %36 : vector<1x128xf32>
    %c1_i32_22 = arith.constant 1 : i32
    %39 = tpu.dynamic_rotate %38 by %c1_i32_22 dim 1 : vector<1x128xf32>, i32 -> vector<1x128xf32>
    %cst_23 = arith.constant 0.000000e+00 : f32
    %40 = vector.broadcast %cst_23 : f32 to vector<1x128xf32>
    %41 = arith.select %9, %39, %40 : vector<1x128xi1>, vector<1x128xf32>
    %c127_i32_24 = arith.constant 127 : i32
    %42 = tpu.dynamic_rotate %38 by %c127_i32_24 dim 1 : vector<1x128xf32>, i32 -> vector<1x128xf32>
    %cst_25 = arith.constant 0.000000e+00 : f32
    %43 = vector.broadcast %cst_25 : f32 to vector<1x128xf32>
    %44 = arith.select %11, %42, %43 : vector<1x128xi1>, vector<1x128xf32>
    %c0_26 = arith.constant 0 : index
    %c1 = arith.constant 1 : index
    %c0_27 = arith.constant 0 : index
    %c0_28 = arith.constant 0 : index
    %45 = vector.load %arg2[%c0_26, %c1, %c0_27, %c0_28] : memref<1x4x32x128xf32, #tpu.memory_space<vmem>>, vector<1x1x32x128xf32>
    %46 = vector.shape_cast %45 : vector<1x1x32x128xf32> to vector<32x128xf32>
    %c1_i32_29 = arith.constant 1 : i32
    %47 = tpu.dynamic_rotate %46 by %c1_i32_29 dim 1 : vector<32x128xf32>, i32 -> vector<32x128xf32>
    %cst_30 = arith.constant 0.000000e+00 : f32
    %48 = vector.broadcast %cst_30 : f32 to vector<32x128xf32>
    %49 = arith.select %4, %47, %48 : vector<32x128xi1>, vector<32x128xf32>
    %c127_i32_31 = arith.constant 127 : i32
    %50 = tpu.dynamic_rotate %46 by %c127_i32_31 dim 1 : vector<32x128xf32>, i32 -> vector<32x128xf32>
    %cst_32 = arith.constant 0.000000e+00 : f32
    %51 = vector.broadcast %cst_32 : f32 to vector<32x128xf32>
    %52 = arith.select %6, %50, %51 : vector<32x128xi1>, vector<32x128xf32>
    %c0_33 = arith.constant 0 : index
    %c1_34 = arith.constant 1 : index
    %c7_35 = arith.constant 7 : index
    %c0_36 = arith.constant 0 : index
    %53 = vector.load %arg3[%c0_33, %c1_34, %c7_35, %c0_36] : memref<1x4x8x128xf32, #tpu.memory_space<vmem>>, vector<1x1x1x128xf32>
    %54 = vector.shape_cast %53 : vector<1x1x1x128xf32> to vector<1x128xf32>
    %cst_37 = arith.constant 0.000000e+00 : f32
    %55 = vector.broadcast %cst_37 : f32 to vector<1x128xf32>
    %56 = arith.select %0, %55, %54 : vector<1x128xf32>
    %c1_i32_38 = arith.constant 1 : i32
    %57 = tpu.dynamic_rotate %56 by %c1_i32_38 dim 1 : vector<1x128xf32>, i32 -> vector<1x128xf32>
    %cst_39 = arith.constant 0.000000e+00 : f32
    %58 = vector.broadcast %cst_39 : f32 to vector<1x128xf32>
    %59 = arith.select %9, %57, %58 : vector<1x128xi1>, vector<1x128xf32>
    %c127_i32_40 = arith.constant 127 : i32
    %60 = tpu.dynamic_rotate %56 by %c127_i32_40 dim 1 : vector<1x128xf32>, i32 -> vector<1x128xf32>
    %cst_41 = arith.constant 0.000000e+00 : f32
    %61 = vector.broadcast %cst_41 : f32 to vector<1x128xf32>
    %62 = arith.select %11, %60, %61 : vector<1x128xi1>, vector<1x128xf32>
    %c0_42 = arith.constant 0 : index
    %c1_43 = arith.constant 1 : index
    %c0_44 = arith.constant 0 : index
    %c0_45 = arith.constant 0 : index
    %63 = vector.load %arg4[%c0_42, %c1_43, %c0_44, %c0_45] : memref<1x4x8x128xf32, #tpu.memory_space<vmem>>, vector<1x1x1x128xf32>
    %64 = vector.shape_cast %63 : vector<1x1x1x128xf32> to vector<1x128xf32>
    %cst_46 = arith.constant 0.000000e+00 : f32
    %65 = vector.broadcast %cst_46 : f32 to vector<1x128xf32>
    %66 = arith.select %1, %65, %64 : vector<1x128xf32>
    %c1_i32_47 = arith.constant 1 : i32
    %67 = tpu.dynamic_rotate %66 by %c1_i32_47 dim 1 : vector<1x128xf32>, i32 -> vector<1x128xf32>
    %cst_48 = arith.constant 0.000000e+00 : f32
    %68 = vector.broadcast %cst_48 : f32 to vector<1x128xf32>
    %69 = arith.select %9, %67, %68 : vector<1x128xi1>, vector<1x128xf32>
    %c127_i32_49 = arith.constant 127 : i32
    %70 = tpu.dynamic_rotate %66 by %c127_i32_49 dim 1 : vector<1x128xf32>, i32 -> vector<1x128xf32>
    %cst_50 = arith.constant 0.000000e+00 : f32
    %71 = vector.broadcast %cst_50 : f32 to vector<1x128xf32>
    %72 = arith.select %11, %70, %71 : vector<1x128xi1>, vector<1x128xf32>
    %c0_51 = arith.constant 0 : index
    %c2 = arith.constant 2 : index
    %c0_52 = arith.constant 0 : index
    %c0_53 = arith.constant 0 : index
    %73 = vector.load %arg2[%c0_51, %c2, %c0_52, %c0_53] : memref<1x4x32x128xf32, #tpu.memory_space<vmem>>, vector<1x1x32x128xf32>
    %74 = vector.shape_cast %73 : vector<1x1x32x128xf32> to vector<32x128xf32>
    %c1_i32_54 = arith.constant 1 : i32
    %75 = tpu.dynamic_rotate %74 by %c1_i32_54 dim 1 : vector<32x128xf32>, i32 -> vector<32x128xf32>
    %cst_55 = arith.constant 0.000000e+00 : f32
    %76 = vector.broadcast %cst_55 : f32 to vector<32x128xf32>
    %77 = arith.select %4, %75, %76 : vector<32x128xi1>, vector<32x128xf32>
    %c127_i32_56 = arith.constant 127 : i32
    %78 = tpu.dynamic_rotate %74 by %c127_i32_56 dim 1 : vector<32x128xf32>, i32 -> vector<32x128xf32>
    %cst_57 = arith.constant 0.000000e+00 : f32
    %79 = vector.broadcast %cst_57 : f32 to vector<32x128xf32>
    %80 = arith.select %6, %78, %79 : vector<32x128xi1>, vector<32x128xf32>
    %c0_58 = arith.constant 0 : index
    %c2_59 = arith.constant 2 : index
    %c7_60 = arith.constant 7 : index
    %c0_61 = arith.constant 0 : index
    %81 = vector.load %arg3[%c0_58, %c2_59, %c7_60, %c0_61] : memref<1x4x8x128xf32, #tpu.memory_space<vmem>>, vector<1x1x1x128xf32>
    %82 = vector.shape_cast %81 : vector<1x1x1x128xf32> to vector<1x128xf32>
    %cst_62 = arith.constant 0.000000e+00 : f32
    %83 = vector.broadcast %cst_62 : f32 to vector<1x128xf32>
    %84 = arith.select %0, %83, %82 : vector<1x128xf32>
    %c1_i32_63 = arith.constant 1 : i32
    %85 = tpu.dynamic_rotate %84 by %c1_i32_63 dim 1 : vector<1x128xf32>, i32 -> vector<1x128xf32>
    %cst_64 = arith.constant 0.000000e+00 : f32
    %86 = vector.broadcast %cst_64 : f32 to vector<1x128xf32>
    %87 = arith.select %9, %85, %86 : vector<1x128xi1>, vector<1x128xf32>
    %c127_i32_65 = arith.constant 127 : i32
    %88 = tpu.dynamic_rotate %84 by %c127_i32_65 dim 1 : vector<1x128xf32>, i32 -> vector<1x128xf32>
    %cst_66 = arith.constant 0.000000e+00 : f32
    %89 = vector.broadcast %cst_66 : f32 to vector<1x128xf32>
    %90 = arith.select %11, %88, %89 : vector<1x128xi1>, vector<1x128xf32>
    %c0_67 = arith.constant 0 : index
    %c2_68 = arith.constant 2 : index
    %c0_69 = arith.constant 0 : index
    %c0_70 = arith.constant 0 : index
    %91 = vector.load %arg4[%c0_67, %c2_68, %c0_69, %c0_70] : memref<1x4x8x128xf32, #tpu.memory_space<vmem>>, vector<1x1x1x128xf32>
    %92 = vector.shape_cast %91 : vector<1x1x1x128xf32> to vector<1x128xf32>
    %cst_71 = arith.constant 0.000000e+00 : f32
    %93 = vector.broadcast %cst_71 : f32 to vector<1x128xf32>
    %94 = arith.select %1, %93, %92 : vector<1x128xf32>
    %c1_i32_72 = arith.constant 1 : i32
    %95 = tpu.dynamic_rotate %94 by %c1_i32_72 dim 1 : vector<1x128xf32>, i32 -> vector<1x128xf32>
    %cst_73 = arith.constant 0.000000e+00 : f32
    %96 = vector.broadcast %cst_73 : f32 to vector<1x128xf32>
    %97 = arith.select %9, %95, %96 : vector<1x128xi1>, vector<1x128xf32>
    %c127_i32_74 = arith.constant 127 : i32
    %98 = tpu.dynamic_rotate %94 by %c127_i32_74 dim 1 : vector<1x128xf32>, i32 -> vector<1x128xf32>
    %cst_75 = arith.constant 0.000000e+00 : f32
    %99 = vector.broadcast %cst_75 : f32 to vector<1x128xf32>
    %100 = arith.select %11, %98, %99 : vector<1x128xi1>, vector<1x128xf32>
    %c0_76 = arith.constant 0 : index
    %c3 = arith.constant 3 : index
    %c0_77 = arith.constant 0 : index
    %c0_78 = arith.constant 0 : index
    %101 = vector.load %arg2[%c0_76, %c3, %c0_77, %c0_78] : memref<1x4x32x128xf32, #tpu.memory_space<vmem>>, vector<1x1x32x128xf32>
    %102 = vector.shape_cast %101 : vector<1x1x32x128xf32> to vector<32x128xf32>
    %c1_i32_79 = arith.constant 1 : i32
    %103 = tpu.dynamic_rotate %102 by %c1_i32_79 dim 1 : vector<32x128xf32>, i32 -> vector<32x128xf32>
    %cst_80 = arith.constant 0.000000e+00 : f32
    %104 = vector.broadcast %cst_80 : f32 to vector<32x128xf32>
    %105 = arith.select %4, %103, %104 : vector<32x128xi1>, vector<32x128xf32>
    %c127_i32_81 = arith.constant 127 : i32
    %106 = tpu.dynamic_rotate %102 by %c127_i32_81 dim 1 : vector<32x128xf32>, i32 -> vector<32x128xf32>
    %cst_82 = arith.constant 0.000000e+00 : f32
    %107 = vector.broadcast %cst_82 : f32 to vector<32x128xf32>
    %108 = arith.select %6, %106, %107 : vector<32x128xi1>, vector<32x128xf32>
    %c0_83 = arith.constant 0 : index
    %c3_84 = arith.constant 3 : index
    %c7_85 = arith.constant 7 : index
    %c0_86 = arith.constant 0 : index
    %109 = vector.load %arg3[%c0_83, %c3_84, %c7_85, %c0_86] : memref<1x4x8x128xf32, #tpu.memory_space<vmem>>, vector<1x1x1x128xf32>
    %110 = vector.shape_cast %109 : vector<1x1x1x128xf32> to vector<1x128xf32>
    %cst_87 = arith.constant 0.000000e+00 : f32
    %111 = vector.broadcast %cst_87 : f32 to vector<1x128xf32>
    %112 = arith.select %0, %111, %110 : vector<1x128xf32>
    %c1_i32_88 = arith.constant 1 : i32
    %113 = tpu.dynamic_rotate %112 by %c1_i32_88 dim 1 : vector<1x128xf32>, i32 -> vector<1x128xf32>
    %cst_89 = arith.constant 0.000000e+00 : f32
    %114 = vector.broadcast %cst_89 : f32 to vector<1x128xf32>
    %115 = arith.select %9, %113, %114 : vector<1x128xi1>, vector<1x128xf32>
    %c127_i32_90 = arith.constant 127 : i32
    %116 = tpu.dynamic_rotate %112 by %c127_i32_90 dim 1 : vector<1x128xf32>, i32 -> vector<1x128xf32>
    %cst_91 = arith.constant 0.000000e+00 : f32
    %117 = vector.broadcast %cst_91 : f32 to vector<1x128xf32>
    %118 = arith.select %11, %116, %117 : vector<1x128xi1>, vector<1x128xf32>
    %c0_92 = arith.constant 0 : index
    %c3_93 = arith.constant 3 : index
    %c0_94 = arith.constant 0 : index
    %c0_95 = arith.constant 0 : index
    %119 = vector.load %arg4[%c0_92, %c3_93, %c0_94, %c0_95] : memref<1x4x8x128xf32, #tpu.memory_space<vmem>>, vector<1x1x1x128xf32>
    %120 = vector.shape_cast %119 : vector<1x1x1x128xf32> to vector<1x128xf32>
    %cst_96 = arith.constant 0.000000e+00 : f32
    %121 = vector.broadcast %cst_96 : f32 to vector<1x128xf32>
    %122 = arith.select %1, %121, %120 : vector<1x128xf32>
    %c1_i32_97 = arith.constant 1 : i32
    %123 = tpu.dynamic_rotate %122 by %c1_i32_97 dim 1 : vector<1x128xf32>, i32 -> vector<1x128xf32>
    %cst_98 = arith.constant 0.000000e+00 : f32
    %124 = vector.broadcast %cst_98 : f32 to vector<1x128xf32>
    %125 = arith.select %9, %123, %124 : vector<1x128xi1>, vector<1x128xf32>
    %c127_i32_99 = arith.constant 127 : i32
    %126 = tpu.dynamic_rotate %122 by %c127_i32_99 dim 1 : vector<1x128xf32>, i32 -> vector<1x128xf32>
    %cst_100 = arith.constant 0.000000e+00 : f32
    %127 = vector.broadcast %cst_100 : f32 to vector<1x128xf32>
    %128 = arith.select %11, %126, %127 : vector<1x128xi1>, vector<1x128xf32>
    %c3_101 = arith.constant 3 : index
    %129 = memref.load %arg5[%c3_101] : memref<108xf32, #tpu.memory_space<smem>>
    %130 = vector.broadcast %129 : f32 to vector<32x128xf32>
    %131 = arith.mulf %21, %130 : vector<32x128xf32>
    %c4 = arith.constant 4 : index
    %132 = memref.load %arg5[%c4] : memref<108xf32, #tpu.memory_space<smem>>
    %133 = vector.broadcast %132 : f32 to vector<32x128xf32>
    %134 = arith.mulf %18, %133 : vector<32x128xf32>
    %c5 = arith.constant 5 : index
    %135 = memref.load %arg5[%c5] : memref<108xf32, #tpu.memory_space<smem>>
    %136 = vector.broadcast %135 : f32 to vector<32x128xf32>
    %137 = arith.mulf %24, %136 : vector<32x128xf32>
    %c12 = arith.constant 12 : index
    %138 = memref.load %arg5[%c12] : memref<108xf32, #tpu.memory_space<smem>>
    %139 = vector.broadcast %138 : f32 to vector<32x128xf32>
    %140 = arith.mulf %49, %139 : vector<32x128xf32>
    %c13 = arith.constant 13 : index
    %141 = memref.load %arg5[%c13] : memref<108xf32, #tpu.memory_space<smem>>
    %142 = vector.broadcast %141 : f32 to vector<32x128xf32>
    %143 = arith.mulf %46, %142 : vector<32x128xf32>
    %c14 = arith.constant 14 : index
    %144 = memref.load %arg5[%c14] : memref<108xf32, #tpu.memory_space<smem>>
    %145 = vector.broadcast %144 : f32 to vector<32x128xf32>
    %146 = arith.mulf %52, %145 : vector<32x128xf32>
    %c21 = arith.constant 21 : index
    %147 = memref.load %arg5[%c21] : memref<108xf32, #tpu.memory_space<smem>>
    %148 = vector.broadcast %147 : f32 to vector<32x128xf32>
    %149 = arith.mulf %77, %148 : vector<32x128xf32>
    %c22 = arith.constant 22 : index
    %150 = memref.load %arg5[%c22] : memref<108xf32, #tpu.memory_space<smem>>
    %151 = vector.broadcast %150 : f32 to vector<32x128xf32>
    %152 = arith.mulf %74, %151 : vector<32x128xf32>
    %c23 = arith.constant 23 : index
    %153 = memref.load %arg5[%c23] : memref<108xf32, #tpu.memory_space<smem>>
    %154 = vector.broadcast %153 : f32 to vector<32x128xf32>
    %155 = arith.mulf %80, %154 : vector<32x128xf32>
    %c30 = arith.constant 30 : index
    %156 = memref.load %arg5[%c30] : memref<108xf32, #tpu.memory_space<smem>>
    %157 = vector.broadcast %156 : f32 to vector<32x128xf32>
    %158 = arith.mulf %105, %157 : vector<32x128xf32>
    %c31 = arith.constant 31 : index
    %159 = memref.load %arg5[%c31] : memref<108xf32, #tpu.memory_space<smem>>
    %160 = vector.broadcast %159 : f32 to vector<32x128xf32>
    %161 = arith.mulf %102, %160 : vector<32x128xf32>
    %c32 = arith.constant 32 : index
    %162 = memref.load %arg5[%c32] : memref<108xf32, #tpu.memory_space<smem>>
    %163 = vector.broadcast %162 : f32 to vector<32x128xf32>
    %164 = arith.mulf %108, %163 : vector<32x128xf32>
    %165 = arith.addf %131, %134 : vector<32x128xf32>
    %166 = arith.addf %165, %137 : vector<32x128xf32>
    %167 = arith.addf %166, %140 : vector<32x128xf32>
    %168 = arith.addf %167, %143 : vector<32x128xf32>
    %169 = arith.addf %168, %146 : vector<32x128xf32>
    %170 = arith.addf %169, %149 : vector<32x128xf32>
    %171 = arith.addf %170, %152 : vector<32x128xf32>
    %172 = arith.addf %171, %155 : vector<32x128xf32>
    %173 = arith.addf %172, %158 : vector<32x128xf32>
    %174 = arith.addf %173, %161 : vector<32x128xf32>
    %175 = arith.addf %174, %164 : vector<32x128xf32>
    %c0_102 = arith.constant 0 : index
    %176 = memref.load %arg5[%c0_102] : memref<108xf32, #tpu.memory_space<smem>>
    %177 = vector.broadcast %176 : f32 to vector<32x128xf32>
    %178 = arith.mulf %21, %177 : vector<32x128xf32>
    %c1_103 = arith.constant 1 : index
    %179 = memref.load %arg5[%c1_103] : memref<108xf32, #tpu.memory_space<smem>>
    %180 = vector.broadcast %179 : f32 to vector<32x128xf32>
    %181 = arith.mulf %18, %180 : vector<32x128xf32>
    %c2_104 = arith.constant 2 : index
    %182 = memref.load %arg5[%c2_104] : memref<108xf32, #tpu.memory_space<smem>>
    %183 = vector.broadcast %182 : f32 to vector<32x128xf32>
    %184 = arith.mulf %24, %183 : vector<32x128xf32>
    %c9 = arith.constant 9 : index
    %185 = memref.load %arg5[%c9] : memref<108xf32, #tpu.memory_space<smem>>
    %186 = vector.broadcast %185 : f32 to vector<32x128xf32>
    %187 = arith.mulf %49, %186 : vector<32x128xf32>
    %c10 = arith.constant 10 : index
    %188 = memref.load %arg5[%c10] : memref<108xf32, #tpu.memory_space<smem>>
    %189 = vector.broadcast %188 : f32 to vector<32x128xf32>
    %190 = arith.mulf %46, %189 : vector<32x128xf32>
    %c11 = arith.constant 11 : index
    %191 = memref.load %arg5[%c11] : memref<108xf32, #tpu.memory_space<smem>>
    %192 = vector.broadcast %191 : f32 to vector<32x128xf32>
    %193 = arith.mulf %52, %192 : vector<32x128xf32>
    %c18 = arith.constant 18 : index
    %194 = memref.load %arg5[%c18] : memref<108xf32, #tpu.memory_space<smem>>
    %195 = vector.broadcast %194 : f32 to vector<32x128xf32>
    %196 = arith.mulf %77, %195 : vector<32x128xf32>
    %c19 = arith.constant 19 : index
    %197 = memref.load %arg5[%c19] : memref<108xf32, #tpu.memory_space<smem>>
    %198 = vector.broadcast %197 : f32 to vector<32x128xf32>
    %199 = arith.mulf %74, %198 : vector<32x128xf32>
    %c20 = arith.constant 20 : index
    %200 = memref.load %arg5[%c20] : memref<108xf32, #tpu.memory_space<smem>>
    %201 = vector.broadcast %200 : f32 to vector<32x128xf32>
    %202 = arith.mulf %80, %201 : vector<32x128xf32>
    %c27 = arith.constant 27 : index
    %203 = memref.load %arg5[%c27] : memref<108xf32, #tpu.memory_space<smem>>
    %204 = vector.broadcast %203 : f32 to vector<32x128xf32>
    %205 = arith.mulf %105, %204 : vector<32x128xf32>
    %c28 = arith.constant 28 : index
    %206 = memref.load %arg5[%c28] : memref<108xf32, #tpu.memory_space<smem>>
    %207 = vector.broadcast %206 : f32 to vector<32x128xf32>
    %208 = arith.mulf %102, %207 : vector<32x128xf32>
    %c29 = arith.constant 29 : index
    %209 = memref.load %arg5[%c29] : memref<108xf32, #tpu.memory_space<smem>>
    %210 = vector.broadcast %209 : f32 to vector<32x128xf32>
    %211 = arith.mulf %108, %210 : vector<32x128xf32>
    %212 = arith.addf %178, %181 : vector<32x128xf32>
    %213 = arith.addf %212, %184 : vector<32x128xf32>
    %214 = arith.addf %213, %187 : vector<32x128xf32>
    %215 = arith.addf %214, %190 : vector<32x128xf32>
    %216 = arith.addf %215, %193 : vector<32x128xf32>
    %217 = arith.addf %216, %196 : vector<32x128xf32>
    %218 = arith.addf %217, %199 : vector<32x128xf32>
    %219 = arith.addf %218, %202 : vector<32x128xf32>
    %220 = arith.addf %219, %205 : vector<32x128xf32>
    %221 = arith.addf %220, %208 : vector<32x128xf32>
    %222 = arith.addf %221, %211 : vector<32x128xf32>
    %c6 = arith.constant 6 : index
    %223 = memref.load %arg5[%c6] : memref<108xf32, #tpu.memory_space<smem>>
    %224 = vector.broadcast %223 : f32 to vector<32x128xf32>
    %225 = arith.mulf %21, %224 : vector<32x128xf32>
    %c7_105 = arith.constant 7 : index
    %226 = memref.load %arg5[%c7_105] : memref<108xf32, #tpu.memory_space<smem>>
    %227 = vector.broadcast %226 : f32 to vector<32x128xf32>
    %228 = arith.mulf %18, %227 : vector<32x128xf32>
    %c8 = arith.constant 8 : index
    %229 = memref.load %arg5[%c8] : memref<108xf32, #tpu.memory_space<smem>>
    %230 = vector.broadcast %229 : f32 to vector<32x128xf32>
    %231 = arith.mulf %24, %230 : vector<32x128xf32>
    %c15 = arith.constant 15 : index
    %232 = memref.load %arg5[%c15] : memref<108xf32, #tpu.memory_space<smem>>
    %233 = vector.broadcast %232 : f32 to vector<32x128xf32>
    %234 = arith.mulf %49, %233 : vector<32x128xf32>
    %c16 = arith.constant 16 : index
    %235 = memref.load %arg5[%c16] : memref<108xf32, #tpu.memory_space<smem>>
    %236 = vector.broadcast %235 : f32 to vector<32x128xf32>
    %237 = arith.mulf %46, %236 : vector<32x128xf32>
    %c17 = arith.constant 17 : index
    %238 = memref.load %arg5[%c17] : memref<108xf32, #tpu.memory_space<smem>>
    %239 = vector.broadcast %238 : f32 to vector<32x128xf32>
    %240 = arith.mulf %52, %239 : vector<32x128xf32>
    %c24 = arith.constant 24 : index
    %241 = memref.load %arg5[%c24] : memref<108xf32, #tpu.memory_space<smem>>
    %242 = vector.broadcast %241 : f32 to vector<32x128xf32>
    %243 = arith.mulf %77, %242 : vector<32x128xf32>
    %c25 = arith.constant 25 : index
    %244 = memref.load %arg5[%c25] : memref<108xf32, #tpu.memory_space<smem>>
    %245 = vector.broadcast %244 : f32 to vector<32x128xf32>
    %246 = arith.mulf %74, %245 : vector<32x128xf32>
    %c26 = arith.constant 26 : index
    %247 = memref.load %arg5[%c26] : memref<108xf32, #tpu.memory_space<smem>>
    %248 = vector.broadcast %247 : f32 to vector<32x128xf32>
    %249 = arith.mulf %80, %248 : vector<32x128xf32>
    %c33 = arith.constant 33 : index
    %250 = memref.load %arg5[%c33] : memref<108xf32, #tpu.memory_space<smem>>
    %251 = vector.broadcast %250 : f32 to vector<32x128xf32>
    %252 = arith.mulf %105, %251 : vector<32x128xf32>
    %c34 = arith.constant 34 : index
    %253 = memref.load %arg5[%c34] : memref<108xf32, #tpu.memory_space<smem>>
    %254 = vector.broadcast %253 : f32 to vector<32x128xf32>
    %255 = arith.mulf %102, %254 : vector<32x128xf32>
    %c35 = arith.constant 35 : index
    %256 = memref.load %arg5[%c35] : memref<108xf32, #tpu.memory_space<smem>>
    %257 = vector.broadcast %256 : f32 to vector<32x128xf32>
    %258 = arith.mulf %108, %257 : vector<32x128xf32>
    %259 = arith.addf %225, %228 : vector<32x128xf32>
    %260 = arith.addf %259, %231 : vector<32x128xf32>
    %261 = arith.addf %260, %234 : vector<32x128xf32>
    %262 = arith.addf %261, %237 : vector<32x128xf32>
    %263 = arith.addf %262, %240 : vector<32x128xf32>
    %264 = arith.addf %263, %243 : vector<32x128xf32>
    %265 = arith.addf %264, %246 : vector<32x128xf32>
    %266 = arith.addf %265, %249 : vector<32x128xf32>
    %267 = arith.addf %266, %252 : vector<32x128xf32>
    %268 = arith.addf %267, %255 : vector<32x128xf32>
    %269 = arith.addf %268, %258 : vector<32x128xf32>
    %c0_106 = arith.constant 0 : index
    %270 = memref.load %arg5[%c0_106] : memref<108xf32, #tpu.memory_space<smem>>
    %271 = vector.broadcast %270 : f32 to vector<1x128xf32>
    %272 = arith.mulf %31, %271 : vector<1x128xf32>
    %c1_107 = arith.constant 1 : index
    %273 = memref.load %arg5[%c1_107] : memref<108xf32, #tpu.memory_space<smem>>
    %274 = vector.broadcast %273 : f32 to vector<1x128xf32>
    %275 = arith.mulf %28, %274 : vector<1x128xf32>
    %c2_108 = arith.constant 2 : index
    %276 = memref.load %arg5[%c2_108] : memref<108xf32, #tpu.memory_space<smem>>
    %277 = vector.broadcast %276 : f32 to vector<1x128xf32>
    %278 = arith.mulf %34, %277 : vector<1x128xf32>
    %c9_109 = arith.constant 9 : index
    %279 = memref.load %arg5[%c9_109] : memref<108xf32, #tpu.memory_space<smem>>
    %280 = vector.broadcast %279 : f32 to vector<1x128xf32>
    %281 = arith.mulf %59, %280 : vector<1x128xf32>
    %c10_110 = arith.constant 10 : index
    %282 = memref.load %arg5[%c10_110] : memref<108xf32, #tpu.memory_space<smem>>
    %283 = vector.broadcast %282 : f32 to vector<1x128xf32>
    %284 = arith.mulf %56, %283 : vector<1x128xf32>
    %c11_111 = arith.constant 11 : index
    %285 = memref.load %arg5[%c11_111] : memref<108xf32, #tpu.memory_space<smem>>
    %286 = vector.broadcast %285 : f32 to vector<1x128xf32>
    %287 = arith.mulf %62, %286 : vector<1x128xf32>
    %c18_112 = arith.constant 18 : index
    %288 = memref.load %arg5[%c18_112] : memref<108xf32, #tpu.memory_space<smem>>
    %289 = vector.broadcast %288 : f32 to vector<1x128xf32>
    %290 = arith.mulf %87, %289 : vector<1x128xf32>
    %c19_113 = arith.constant 19 : index
    %291 = memref.load %arg5[%c19_113] : memref<108xf32, #tpu.memory_space<smem>>
    %292 = vector.broadcast %291 : f32 to vector<1x128xf32>
    %293 = arith.mulf %84, %292 : vector<1x128xf32>
    %c20_114 = arith.constant 20 : index
    %294 = memref.load %arg5[%c20_114] : memref<108xf32, #tpu.memory_space<smem>>
    %295 = vector.broadcast %294 : f32 to vector<1x128xf32>
    %296 = arith.mulf %90, %295 : vector<1x128xf32>
    %c27_115 = arith.constant 27 : index
    %297 = memref.load %arg5[%c27_115] : memref<108xf32, #tpu.memory_space<smem>>
    %298 = vector.broadcast %297 : f32 to vector<1x128xf32>
    %299 = arith.mulf %115, %298 : vector<1x128xf32>
    %c28_116 = arith.constant 28 : index
    %300 = memref.load %arg5[%c28_116] : memref<108xf32, #tpu.memory_space<smem>>
    %301 = vector.broadcast %300 : f32 to vector<1x128xf32>
    %302 = arith.mulf %112, %301 : vector<1x128xf32>
    %c29_117 = arith.constant 29 : index
    %303 = memref.load %arg5[%c29_117] : memref<108xf32, #tpu.memory_space<smem>>
    %304 = vector.broadcast %303 : f32 to vector<1x128xf32>
    %305 = arith.mulf %118, %304 : vector<1x128xf32>
    %306 = arith.addf %272, %275 : vector<1x128xf32>
    %307 = arith.addf %306, %278 : vector<1x128xf32>
    %308 = arith.addf %307, %281 : vector<1x128xf32>
    %309 = arith.addf %308, %284 : vector<1x128xf32>
    %310 = arith.addf %309, %287 : vector<1x128xf32>
    %311 = arith.addf %310, %290 : vector<1x128xf32>
    %312 = arith.addf %311, %293 : vector<1x128xf32>
    %313 = arith.addf %312, %296 : vector<1x128xf32>
    %314 = arith.addf %313, %299 : vector<1x128xf32>
    %315 = arith.addf %314, %302 : vector<1x128xf32>
    %316 = arith.addf %315, %305 : vector<1x128xf32>
    %c6_118 = arith.constant 6 : index
    %317 = memref.load %arg5[%c6_118] : memref<108xf32, #tpu.memory_space<smem>>
    %318 = vector.broadcast %317 : f32 to vector<1x128xf32>
    %319 = arith.mulf %41, %318 : vector<1x128xf32>
    %c7_119 = arith.constant 7 : index
    %320 = memref.load %arg5[%c7_119] : memref<108xf32, #tpu.memory_space<smem>>
    %321 = vector.broadcast %320 : f32 to vector<1x128xf32>
    %322 = arith.mulf %38, %321 : vector<1x128xf32>
    %c8_120 = arith.constant 8 : index
    %323 = memref.load %arg5[%c8_120] : memref<108xf32, #tpu.memory_space<smem>>
    %324 = vector.broadcast %323 : f32 to vector<1x128xf32>
    %325 = arith.mulf %44, %324 : vector<1x128xf32>
    %c15_121 = arith.constant 15 : index
    %326 = memref.load %arg5[%c15_121] : memref<108xf32, #tpu.memory_space<smem>>
    %327 = vector.broadcast %326 : f32 to vector<1x128xf32>
    %328 = arith.mulf %69, %327 : vector<1x128xf32>
    %c16_122 = arith.constant 16 : index
    %329 = memref.load %arg5[%c16_122] : memref<108xf32, #tpu.memory_space<smem>>
    %330 = vector.broadcast %329 : f32 to vector<1x128xf32>
    %331 = arith.mulf %66, %330 : vector<1x128xf32>
    %c17_123 = arith.constant 17 : index
    %332 = memref.load %arg5[%c17_123] : memref<108xf32, #tpu.memory_space<smem>>
    %333 = vector.broadcast %332 : f32 to vector<1x128xf32>
    %334 = arith.mulf %72, %333 : vector<1x128xf32>
    %c24_124 = arith.constant 24 : index
    %335 = memref.load %arg5[%c24_124] : memref<108xf32, #tpu.memory_space<smem>>
    %336 = vector.broadcast %335 : f32 to vector<1x128xf32>
    %337 = arith.mulf %97, %336 : vector<1x128xf32>
    %c25_125 = arith.constant 25 : index
    %338 = memref.load %arg5[%c25_125] : memref<108xf32, #tpu.memory_space<smem>>
    %339 = vector.broadcast %338 : f32 to vector<1x128xf32>
    %340 = arith.mulf %94, %339 : vector<1x128xf32>
    %c26_126 = arith.constant 26 : index
    %341 = memref.load %arg5[%c26_126] : memref<108xf32, #tpu.memory_space<smem>>
    %342 = vector.broadcast %341 : f32 to vector<1x128xf32>
    %343 = arith.mulf %100, %342 : vector<1x128xf32>
    %c33_127 = arith.constant 33 : index
    %344 = memref.load %arg5[%c33_127] : memref<108xf32, #tpu.memory_space<smem>>
    %345 = vector.broadcast %344 : f32 to vector<1x128xf32>
    %346 = arith.mulf %125, %345 : vector<1x128xf32>
    %c34_128 = arith.constant 34 : index
    %347 = memref.load %arg5[%c34_128] : memref<108xf32, #tpu.memory_space<smem>>
    %348 = vector.broadcast %347 : f32 to vector<1x128xf32>
    %349 = arith.mulf %122, %348 : vector<1x128xf32>
    %c35_129 = arith.constant 35 : index
    %350 = memref.load %arg5[%c35_129] : memref<108xf32, #tpu.memory_space<smem>>
    %351 = vector.broadcast %350 : f32 to vector<1x128xf32>
    %352 = arith.mulf %128, %351 : vector<1x128xf32>
    %353 = arith.addf %319, %322 : vector<1x128xf32>
    %354 = arith.addf %353, %325 : vector<1x128xf32>
    %355 = arith.addf %354, %328 : vector<1x128xf32>
    %356 = arith.addf %355, %331 : vector<1x128xf32>
    %357 = arith.addf %356, %334 : vector<1x128xf32>
    %358 = arith.addf %357, %337 : vector<1x128xf32>
    %359 = arith.addf %358, %340 : vector<1x128xf32>
    %360 = arith.addf %359, %343 : vector<1x128xf32>
    %361 = arith.addf %360, %346 : vector<1x128xf32>
    %362 = arith.addf %361, %349 : vector<1x128xf32>
    %363 = arith.addf %362, %352 : vector<1x128xf32>
    %c1_i32_130 = arith.constant 1 : i32
    %364 = tpu.dynamic_rotate %222 by %c1_i32_130 dim 0 : vector<32x128xf32>, i32 -> vector<32x128xf32>
    %365 = vector.shape_cast %316 : vector<1x128xf32> to vector<1x128xf32>
    %366 = vector.broadcast %365 : vector<1x128xf32> to vector<32x128xf32>
    %367 = arith.select %14, %366, %364 : vector<32x128xi1>, vector<32x128xf32>
    %c31_i32_131 = arith.constant 31 : i32
    %368 = tpu.dynamic_rotate %269 by %c31_i32_131 dim 0 : vector<32x128xf32>, i32 -> vector<32x128xf32>
    %369 = vector.shape_cast %363 : vector<1x128xf32> to vector<1x128xf32>
    %370 = vector.broadcast %369 : vector<1x128xf32> to vector<32x128xf32>
    %371 = arith.select %16, %370, %368 : vector<32x128xi1>, vector<32x128xf32>
    %372 = arith.addf %175, %367 : vector<32x128xf32>
    %373 = arith.addf %372, %371 : vector<32x128xf32>
    %c0_132 = arith.constant 0 : index
    %374 = memref.load %arg6[%c0_132] : memref<3xf32, #tpu.memory_space<smem>>
    %375 = vector.broadcast %374 : f32 to vector<32x128xf32>
    %376 = arith.addf %373, %375 : vector<32x128xf32>
    %377 = math.tanh %376 : vector<32x128xf32>
    %c0_133 = arith.constant 0 : index
    %c0_134 = arith.constant 0 : index
    %c0_135 = arith.constant 0 : index
    %c0_136 = arith.constant 0 : index
    %378 = vector.load %arg7[%c0_133, %c0_134, %c0_135, %c0_136] : memref<1x3x32x128xf32, #tpu.memory_space<vmem>>, vector<1x1x32x128xf32>
    %379 = vector.shape_cast %378 : vector<1x1x32x128xf32> to vector<32x128xf32>
    %380 = vector.shape_cast %377 : vector<32x128xf32> to vector<1x1x32x128xf32>
    tpu.vector_store %arg7[%c0_133, %c0_134, %c0_135, %c0_136], %380 {strides = array<i32>} : memref<1x3x32x128xf32, #tpu.memory_space<vmem>>, vector<1x1x32x128xf32>,
    %c39 = arith.constant 39 : index
    %381 = memref.load %arg5[%c39] : memref<108xf32, #tpu.memory_space<smem>>
    %382 = vector.broadcast %381 : f32 to vector<32x128xf32>
    %383 = arith.mulf %21, %382 : vector<32x128xf32>
    %c40 = arith.constant 40 : index
    %384 = memref.load %arg5[%c40] : memref<108xf32, #tpu.memory_space<smem>>
    %385 = vector.broadcast %384 : f32 to vector<32x128xf32>
    %386 = arith.mulf %18, %385 : vector<32x128xf32>
    %c41 = arith.constant 41 : index
    %387 = memref.load %arg5[%c41] : memref<108xf32, #tpu.memory_space<smem>>
    %388 = vector.broadcast %387 : f32 to vector<32x128xf32>
    %389 = arith.mulf %24, %388 : vector<32x128xf32>
    %c48 = arith.constant 48 : index
    %390 = memref.load %arg5[%c48] : memref<108xf32, #tpu.memory_space<smem>>
    %391 = vector.broadcast %390 : f32 to vector<32x128xf32>
    %392 = arith.mulf %49, %391 : vector<32x128xf32>
    %c49 = arith.constant 49 : index
    %393 = memref.load %arg5[%c49] : memref<108xf32, #tpu.memory_space<smem>>
    %394 = vector.broadcast %393 : f32 to vector<32x128xf32>
    %395 = arith.mulf %46, %394 : vector<32x128xf32>
    %c50 = arith.constant 50 : index
    %396 = memref.load %arg5[%c50] : memref<108xf32, #tpu.memory_space<smem>>
    %397 = vector.broadcast %396 : f32 to vector<32x128xf32>
    %398 = arith.mulf %52, %397 : vector<32x128xf32>
    %c57 = arith.constant 57 : index
    %399 = memref.load %arg5[%c57] : memref<108xf32, #tpu.memory_space<smem>>
    %400 = vector.broadcast %399 : f32 to vector<32x128xf32>
    %401 = arith.mulf %77, %400 : vector<32x128xf32>
    %c58 = arith.constant 58 : index
    %402 = memref.load %arg5[%c58] : memref<108xf32, #tpu.memory_space<smem>>
    %403 = vector.broadcast %402 : f32 to vector<32x128xf32>
    %404 = arith.mulf %74, %403 : vector<32x128xf32>
    %c59 = arith.constant 59 : index
    %405 = memref.load %arg5[%c59] : memref<108xf32, #tpu.memory_space<smem>>
    %406 = vector.broadcast %405 : f32 to vector<32x128xf32>
    %407 = arith.mulf %80, %406 : vector<32x128xf32>
    %c66 = arith.constant 66 : index
    %408 = memref.load %arg5[%c66] : memref<108xf32, #tpu.memory_space<smem>>
    %409 = vector.broadcast %408 : f32 to vector<32x128xf32>
    %410 = arith.mulf %105, %409 : vector<32x128xf32>
    %c67 = arith.constant 67 : index
    %411 = memref.load %arg5[%c67] : memref<108xf32, #tpu.memory_space<smem>>
    %412 = vector.broadcast %411 : f32 to vector<32x128xf32>
    %413 = arith.mulf %102, %412 : vector<32x128xf32>
    %c68 = arith.constant 68 : index
    %414 = memref.load %arg5[%c68] : memref<108xf32, #tpu.memory_space<smem>>
    %415 = vector.broadcast %414 : f32 to vector<32x128xf32>
    %416 = arith.mulf %108, %415 : vector<32x128xf32>
    %417 = arith.addf %383, %386 : vector<32x128xf32>
    %418 = arith.addf %417, %389 : vector<32x128xf32>
    %419 = arith.addf %418, %392 : vector<32x128xf32>
    %420 = arith.addf %419, %395 : vector<32x128xf32>
    %421 = arith.addf %420, %398 : vector<32x128xf32>
    %422 = arith.addf %421, %401 : vector<32x128xf32>
    %423 = arith.addf %422, %404 : vector<32x128xf32>
    %424 = arith.addf %423, %407 : vector<32x128xf32>
    %425 = arith.addf %424, %410 : vector<32x128xf32>
    %426 = arith.addf %425, %413 : vector<32x128xf32>
    %427 = arith.addf %426, %416 : vector<32x128xf32>
    %c36 = arith.constant 36 : index
    %428 = memref.load %arg5[%c36] : memref<108xf32, #tpu.memory_space<smem>>
    %429 = vector.broadcast %428 : f32 to vector<32x128xf32>
    %430 = arith.mulf %21, %429 : vector<32x128xf32>
    %c37 = arith.constant 37 : index
    %431 = memref.load %arg5[%c37] : memref<108xf32, #tpu.memory_space<smem>>
    %432 = vector.broadcast %431 : f32 to vector<32x128xf32>
    %433 = arith.mulf %18, %432 : vector<32x128xf32>
    %c38 = arith.constant 38 : index
    %434 = memref.load %arg5[%c38] : memref<108xf32, #tpu.memory_space<smem>>
    %435 = vector.broadcast %434 : f32 to vector<32x128xf32>
    %436 = arith.mulf %24, %435 : vector<32x128xf32>
    %c45 = arith.constant 45 : index
    %437 = memref.load %arg5[%c45] : memref<108xf32, #tpu.memory_space<smem>>
    %438 = vector.broadcast %437 : f32 to vector<32x128xf32>
    %439 = arith.mulf %49, %438 : vector<32x128xf32>
    %c46 = arith.constant 46 : index
    %440 = memref.load %arg5[%c46] : memref<108xf32, #tpu.memory_space<smem>>
    %441 = vector.broadcast %440 : f32 to vector<32x128xf32>
    %442 = arith.mulf %46, %441 : vector<32x128xf32>
    %c47 = arith.constant 47 : index
    %443 = memref.load %arg5[%c47] : memref<108xf32, #tpu.memory_space<smem>>
    %444 = vector.broadcast %443 : f32 to vector<32x128xf32>
    %445 = arith.mulf %52, %444 : vector<32x128xf32>
    %c54 = arith.constant 54 : index
    %446 = memref.load %arg5[%c54] : memref<108xf32, #tpu.memory_space<smem>>
    %447 = vector.broadcast %446 : f32 to vector<32x128xf32>
    %448 = arith.mulf %77, %447 : vector<32x128xf32>
    %c55 = arith.constant 55 : index
    %449 = memref.load %arg5[%c55] : memref<108xf32, #tpu.memory_space<smem>>
    %450 = vector.broadcast %449 : f32 to vector<32x128xf32>
    %451 = arith.mulf %74, %450 : vector<32x128xf32>
    %c56 = arith.constant 56 : index
    %452 = memref.load %arg5[%c56] : memref<108xf32, #tpu.memory_space<smem>>
    %453 = vector.broadcast %452 : f32 to vector<32x128xf32>
    %454 = arith.mulf %80, %453 : vector<32x128xf32>
    %c63 = arith.constant 63 : index
    %455 = memref.load %arg5[%c63] : memref<108xf32, #tpu.memory_space<smem>>
    %456 = vector.broadcast %455 : f32 to vector<32x128xf32>
    %457 = arith.mulf %105, %456 : vector<32x128xf32>
    %c64 = arith.constant 64 : index
    %458 = memref.load %arg5[%c64] : memref<108xf32, #tpu.memory_space<smem>>
    %459 = vector.broadcast %458 : f32 to vector<32x128xf32>
    %460 = arith.mulf %102, %459 : vector<32x128xf32>
    %c65 = arith.constant 65 : index
    %461 = memref.load %arg5[%c65] : memref<108xf32, #tpu.memory_space<smem>>
    %462 = vector.broadcast %461 : f32 to vector<32x128xf32>
    %463 = arith.mulf %108, %462 : vector<32x128xf32>
    %464 = arith.addf %430, %433 : vector<32x128xf32>
    %465 = arith.addf %464, %436 : vector<32x128xf32>
    %466 = arith.addf %465, %439 : vector<32x128xf32>
    %467 = arith.addf %466, %442 : vector<32x128xf32>
    %468 = arith.addf %467, %445 : vector<32x128xf32>
    %469 = arith.addf %468, %448 : vector<32x128xf32>
    %470 = arith.addf %469, %451 : vector<32x128xf32>
    %471 = arith.addf %470, %454 : vector<32x128xf32>
    %472 = arith.addf %471, %457 : vector<32x128xf32>
    %473 = arith.addf %472, %460 : vector<32x128xf32>
    %474 = arith.addf %473, %463 : vector<32x128xf32>
    %c42 = arith.constant 42 : index
    %475 = memref.load %arg5[%c42] : memref<108xf32, #tpu.memory_space<smem>>
    %476 = vector.broadcast %475 : f32 to vector<32x128xf32>
    %477 = arith.mulf %21, %476 : vector<32x128xf32>
    %c43 = arith.constant 43 : index
    %478 = memref.load %arg5[%c43] : memref<108xf32, #tpu.memory_space<smem>>
    %479 = vector.broadcast %478 : f32 to vector<32x128xf32>
    %480 = arith.mulf %18, %479 : vector<32x128xf32>
    %c44 = arith.constant 44 : index
    %481 = memref.load %arg5[%c44] : memref<108xf32, #tpu.memory_space<smem>>
    %482 = vector.broadcast %481 : f32 to vector<32x128xf32>
    %483 = arith.mulf %24, %482 : vector<32x128xf32>
    %c51 = arith.constant 51 : index
    %484 = memref.load %arg5[%c51] : memref<108xf32, #tpu.memory_space<smem>>
    %485 = vector.broadcast %484 : f32 to vector<32x128xf32>
    %486 = arith.mulf %49, %485 : vector<32x128xf32>
    %c52 = arith.constant 52 : index
    %487 = memref.load %arg5[%c52] : memref<108xf32, #tpu.memory_space<smem>>
    %488 = vector.broadcast %487 : f32 to vector<32x128xf32>
    %489 = arith.mulf %46, %488 : vector<32x128xf32>
    %c53 = arith.constant 53 : index
    %490 = memref.load %arg5[%c53] : memref<108xf32, #tpu.memory_space<smem>>
    %491 = vector.broadcast %490 : f32 to vector<32x128xf32>
    %492 = arith.mulf %52, %491 : vector<32x128xf32>
    %c60 = arith.constant 60 : index
    %493 = memref.load %arg5[%c60] : memref<108xf32, #tpu.memory_space<smem>>
    %494 = vector.broadcast %493 : f32 to vector<32x128xf32>
    %495 = arith.mulf %77, %494 : vector<32x128xf32>
    %c61 = arith.constant 61 : index
    %496 = memref.load %arg5[%c61] : memref<108xf32, #tpu.memory_space<smem>>
    %497 = vector.broadcast %496 : f32 to vector<32x128xf32>
    %498 = arith.mulf %74, %497 : vector<32x128xf32>
    %c62 = arith.constant 62 : index
    %499 = memref.load %arg5[%c62] : memref<108xf32, #tpu.memory_space<smem>>
    %500 = vector.broadcast %499 : f32 to vector<32x128xf32>
    %501 = arith.mulf %80, %500 : vector<32x128xf32>
    %c69 = arith.constant 69 : index
    %502 = memref.load %arg5[%c69] : memref<108xf32, #tpu.memory_space<smem>>
    %503 = vector.broadcast %502 : f32 to vector<32x128xf32>
    %504 = arith.mulf %105, %503 : vector<32x128xf32>
    %c70 = arith.constant 70 : index
    %505 = memref.load %arg5[%c70] : memref<108xf32, #tpu.memory_space<smem>>
    %506 = vector.broadcast %505 : f32 to vector<32x128xf32>
    %507 = arith.mulf %102, %506 : vector<32x128xf32>
    %c71 = arith.constant 71 : index
    %508 = memref.load %arg5[%c71] : memref<108xf32, #tpu.memory_space<smem>>
    %509 = vector.broadcast %508 : f32 to vector<32x128xf32>
    %510 = arith.mulf %108, %509 : vector<32x128xf32>
    %511 = arith.addf %477, %480 : vector<32x128xf32>
    %512 = arith.addf %511, %483 : vector<32x128xf32>
    %513 = arith.addf %512, %486 : vector<32x128xf32>
    %514 = arith.addf %513, %489 : vector<32x128xf32>
    %515 = arith.addf %514, %492 : vector<32x128xf32>
    %516 = arith.addf %515, %495 : vector<32x128xf32>
    %517 = arith.addf %516, %498 : vector<32x128xf32>
    %518 = arith.addf %517, %501 : vector<32x128xf32>
    %519 = arith.addf %518, %504 : vector<32x128xf32>
    %520 = arith.addf %519, %507 : vector<32x128xf32>
    %521 = arith.addf %520, %510 : vector<32x128xf32>
    %c36_137 = arith.constant 36 : index
    %522 = memref.load %arg5[%c36_137] : memref<108xf32, #tpu.memory_space<smem>>
    %523 = vector.broadcast %522 : f32 to vector<1x128xf32>
    %524 = arith.mulf %31, %523 : vector<1x128xf32>
    %c37_138 = arith.constant 37 : index
    %525 = memref.load %arg5[%c37_138] : memref<108xf32, #tpu.memory_space<smem>>
    %526 = vector.broadcast %525 : f32 to vector<1x128xf32>
    %527 = arith.mulf %28, %526 : vector<1x128xf32>
    %c38_139 = arith.constant 38 : index
    %528 = memref.load %arg5[%c38_139] : memref<108xf32, #tpu.memory_space<smem>>
    %529 = vector.broadcast %528 : f32 to vector<1x128xf32>
    %530 = arith.mulf %34, %529 : vector<1x128xf32>
    %c45_140 = arith.constant 45 : index
    %531 = memref.load %arg5[%c45_140] : memref<108xf32, #tpu.memory_space<smem>>
    %532 = vector.broadcast %531 : f32 to vector<1x128xf32>
    %533 = arith.mulf %59, %532 : vector<1x128xf32>
    %c46_141 = arith.constant 46 : index
    %534 = memref.load %arg5[%c46_141] : memref<108xf32, #tpu.memory_space<smem>>
    %535 = vector.broadcast %534 : f32 to vector<1x128xf32>
    %536 = arith.mulf %56, %535 : vector<1x128xf32>
    %c47_142 = arith.constant 47 : index
    %537 = memref.load %arg5[%c47_142] : memref<108xf32, #tpu.memory_space<smem>>
    %538 = vector.broadcast %537 : f32 to vector<1x128xf32>
    %539 = arith.mulf %62, %538 : vector<1x128xf32>
    %c54_143 = arith.constant 54 : index
    %540 = memref.load %arg5[%c54_143] : memref<108xf32, #tpu.memory_space<smem>>
    %541 = vector.broadcast %540 : f32 to vector<1x128xf32>
    %542 = arith.mulf %87, %541 : vector<1x128xf32>
    %c55_144 = arith.constant 55 : index
    %543 = memref.load %arg5[%c55_144] : memref<108xf32, #tpu.memory_space<smem>>
    %544 = vector.broadcast %543 : f32 to vector<1x128xf32>
    %545 = arith.mulf %84, %544 : vector<1x128xf32>
    %c56_145 = arith.constant 56 : index
    %546 = memref.load %arg5[%c56_145] : memref<108xf32, #tpu.memory_space<smem>>
    %547 = vector.broadcast %546 : f32 to vector<1x128xf32>
    %548 = arith.mulf %90, %547 : vector<1x128xf32>
    %c63_146 = arith.constant 63 : index
    %549 = memref.load %arg5[%c63_146] : memref<108xf32, #tpu.memory_space<smem>>
    %550 = vector.broadcast %549 : f32 to vector<1x128xf32>
    %551 = arith.mulf %115, %550 : vector<1x128xf32>
    %c64_147 = arith.constant 64 : index
    %552 = memref.load %arg5[%c64_147] : memref<108xf32, #tpu.memory_space<smem>>
    %553 = vector.broadcast %552 : f32 to vector<1x128xf32>
    %554 = arith.mulf %112, %553 : vector<1x128xf32>
    %c65_148 = arith.constant 65 : index
    %555 = memref.load %arg5[%c65_148] : memref<108xf32, #tpu.memory_space<smem>>
    %556 = vector.broadcast %555 : f32 to vector<1x128xf32>
    %557 = arith.mulf %118, %556 : vector<1x128xf32>
    %558 = arith.addf %524, %527 : vector<1x128xf32>
    %559 = arith.addf %558, %530 : vector<1x128xf32>
    %560 = arith.addf %559, %533 : vector<1x128xf32>
    %561 = arith.addf %560, %536 : vector<1x128xf32>
    %562 = arith.addf %561, %539 : vector<1x128xf32>
    %563 = arith.addf %562, %542 : vector<1x128xf32>
    %564 = arith.addf %563, %545 : vector<1x128xf32>
    %565 = arith.addf %564, %548 : vector<1x128xf32>
    %566 = arith.addf %565, %551 : vector<1x128xf32>
    %567 = arith.addf %566, %554 : vector<1x128xf32>
    %568 = arith.addf %567, %557 : vector<1x128xf32>
    %c42_149 = arith.constant 42 : index
    %569 = memref.load %arg5[%c42_149] : memref<108xf32, #tpu.memory_space<smem>>
    %570 = vector.broadcast %569 : f32 to vector<1x128xf32>
    %571 = arith.mulf %41, %570 : vector<1x128xf32>
    %c43_150 = arith.constant 43 : index
    %572 = memref.load %arg5[%c43_150] : memref<108xf32, #tpu.memory_space<smem>>
    %573 = vector.broadcast %572 : f32 to vector<1x128xf32>
    %574 = arith.mulf %38, %573 : vector<1x128xf32>
    %c44_151 = arith.constant 44 : index
    %575 = memref.load %arg5[%c44_151] : memref<108xf32, #tpu.memory_space<smem>>
    %576 = vector.broadcast %575 : f32 to vector<1x128xf32>
    %577 = arith.mulf %44, %576 : vector<1x128xf32>
    %c51_152 = arith.constant 51 : index
    %578 = memref.load %arg5[%c51_152] : memref<108xf32, #tpu.memory_space<smem>>
    %579 = vector.broadcast %578 : f32 to vector<1x128xf32>
    %580 = arith.mulf %69, %579 : vector<1x128xf32>
    %c52_153 = arith.constant 52 : index
    %581 = memref.load %arg5[%c52_153] : memref<108xf32, #tpu.memory_space<smem>>
    %582 = vector.broadcast %581 : f32 to vector<1x128xf32>
    %583 = arith.mulf %66, %582 : vector<1x128xf32>
    %c53_154 = arith.constant 53 : index
    %584 = memref.load %arg5[%c53_154] : memref<108xf32, #tpu.memory_space<smem>>
    %585 = vector.broadcast %584 : f32 to vector<1x128xf32>
    %586 = arith.mulf %72, %585 : vector<1x128xf32>
    %c60_155 = arith.constant 60 : index
    %587 = memref.load %arg5[%c60_155] : memref<108xf32, #tpu.memory_space<smem>>
    %588 = vector.broadcast %587 : f32 to vector<1x128xf32>
    %589 = arith.mulf %97, %588 : vector<1x128xf32>
    %c61_156 = arith.constant 61 : index
    %590 = memref.load %arg5[%c61_156] : memref<108xf32, #tpu.memory_space<smem>>
    %591 = vector.broadcast %590 : f32 to vector<1x128xf32>
    %592 = arith.mulf %94, %591 : vector<1x128xf32>
    %c62_157 = arith.constant 62 : index
    %593 = memref.load %arg5[%c62_157] : memref<108xf32, #tpu.memory_space<smem>>
    %594 = vector.broadcast %593 : f32 to vector<1x128xf32>
    %595 = arith.mulf %100, %594 : vector<1x128xf32>
    %c69_158 = arith.constant 69 : index
    %596 = memref.load %arg5[%c69_158] : memref<108xf32, #tpu.memory_space<smem>>
    %597 = vector.broadcast %596 : f32 to vector<1x128xf32>
    %598 = arith.mulf %125, %597 : vector<1x128xf32>
    %c70_159 = arith.constant 70 : index
    %599 = memref.load %arg5[%c70_159] : memref<108xf32, #tpu.memory_space<smem>>
    %600 = vector.broadcast %599 : f32 to vector<1x128xf32>
    %601 = arith.mulf %122, %600 : vector<1x128xf32>
    %c71_160 = arith.constant 71 : index
    %602 = memref.load %arg5[%c71_160] : memref<108xf32, #tpu.memory_space<smem>>
    %603 = vector.broadcast %602 : f32 to vector<1x128xf32>
    %604 = arith.mulf %128, %603 : vector<1x128xf32>
    %605 = arith.addf %571, %574 : vector<1x128xf32>
    %606 = arith.addf %605, %577 : vector<1x128xf32>
    %607 = arith.addf %606, %580 : vector<1x128xf32>
    %608 = arith.addf %607, %583 : vector<1x128xf32>
    %609 = arith.addf %608, %586 : vector<1x128xf32>
    %610 = arith.addf %609, %589 : vector<1x128xf32>
    %611 = arith.addf %610, %592 : vector<1x128xf32>
    %612 = arith.addf %611, %595 : vector<1x128xf32>
    %613 = arith.addf %612, %598 : vector<1x128xf32>
    %614 = arith.addf %613, %601 : vector<1x128xf32>
    %615 = arith.addf %614, %604 : vector<1x128xf32>
    %c1_i32_161 = arith.constant 1 : i32
    %616 = tpu.dynamic_rotate %474 by %c1_i32_161 dim 0 : vector<32x128xf32>, i32 -> vector<32x128xf32>
    %617 = vector.shape_cast %568 : vector<1x128xf32> to vector<1x128xf32>
    %618 = vector.broadcast %617 : vector<1x128xf32> to vector<32x128xf32>
    %619 = arith.select %14, %618, %616 : vector<32x128xi1>, vector<32x128xf32>
    %c31_i32_162 = arith.constant 31 : i32
    %620 = tpu.dynamic_rotate %521 by %c31_i32_162 dim 0 : vector<32x128xf32>, i32 -> vector<32x128xf32>
    %621 = vector.shape_cast %615 : vector<1x128xf32> to vector<1x128xf32>
    %622 = vector.broadcast %621 : vector<1x128xf32> to vector<32x128xf32>
    %623 = arith.select %16, %622, %620 : vector<32x128xi1>, vector<32x128xf32>
    %624 = arith.addf %427, %619 : vector<32x128xf32>
    %625 = arith.addf %624, %623 : vector<32x128xf32>
    %c1_163 = arith.constant 1 : index
    %626 = memref.load %arg6[%c1_163] : memref<3xf32, #tpu.memory_space<smem>>
    %627 = vector.broadcast %626 : f32 to vector<32x128xf32>
    %628 = arith.addf %625, %627 : vector<32x128xf32>
    %629 = math.tanh %628 : vector<32x128xf32>
    %c0_164 = arith.constant 0 : index
    %c1_165 = arith.constant 1 : index
    %c0_166 = arith.constant 0 : index
    %c0_167 = arith.constant 0 : index
    %630 = vector.load %arg7[%c0_164, %c1_165, %c0_166, %c0_167] : memref<1x3x32x128xf32, #tpu.memory_space<vmem>>, vector<1x1x32x128xf32>
    %631 = vector.shape_cast %630 : vector<1x1x32x128xf32> to vector<32x128xf32>
    %632 = vector.shape_cast %629 : vector<32x128xf32> to vector<1x1x32x128xf32>
    tpu.vector_store %arg7[%c0_164, %c1_165, %c0_166, %c0_167], %632 {strides = array<i32>} : memref<1x3x32x128xf32, #tpu.memory_space<vmem>>, vector<1x1x32x128xf32>,
    %c75 = arith.constant 75 : index
    %633 = memref.load %arg5[%c75] : memref<108xf32, #tpu.memory_space<smem>>
    %634 = vector.broadcast %633 : f32 to vector<32x128xf32>
    %635 = arith.mulf %21, %634 : vector<32x128xf32>
    %c76 = arith.constant 76 : index
    %636 = memref.load %arg5[%c76] : memref<108xf32, #tpu.memory_space<smem>>
    %637 = vector.broadcast %636 : f32 to vector<32x128xf32>
    %638 = arith.mulf %18, %637 : vector<32x128xf32>
    %c77 = arith.constant 77 : index
    %639 = memref.load %arg5[%c77] : memref<108xf32, #tpu.memory_space<smem>>
    %640 = vector.broadcast %639 : f32 to vector<32x128xf32>
    %641 = arith.mulf %24, %640 : vector<32x128xf32>
    %c84 = arith.constant 84 : index
    %642 = memref.load %arg5[%c84] : memref<108xf32, #tpu.memory_space<smem>>
    %643 = vector.broadcast %642 : f32 to vector<32x128xf32>
    %644 = arith.mulf %49, %643 : vector<32x128xf32>
    %c85 = arith.constant 85 : index
    %645 = memref.load %arg5[%c85] : memref<108xf32, #tpu.memory_space<smem>>
    %646 = vector.broadcast %645 : f32 to vector<32x128xf32>
    %647 = arith.mulf %46, %646 : vector<32x128xf32>
    %c86 = arith.constant 86 : index
    %648 = memref.load %arg5[%c86] : memref<108xf32, #tpu.memory_space<smem>>
    %649 = vector.broadcast %648 : f32 to vector<32x128xf32>
    %650 = arith.mulf %52, %649 : vector<32x128xf32>
    %c93 = arith.constant 93 : index
    %651 = memref.load %arg5[%c93] : memref<108xf32, #tpu.memory_space<smem>>
    %652 = vector.broadcast %651 : f32 to vector<32x128xf32>
    %653 = arith.mulf %77, %652 : vector<32x128xf32>
    %c94 = arith.constant 94 : index
    %654 = memref.load %arg5[%c94] : memref<108xf32, #tpu.memory_space<smem>>
    %655 = vector.broadcast %654 : f32 to vector<32x128xf32>
    %656 = arith.mulf %74, %655 : vector<32x128xf32>
    %c95 = arith.constant 95 : index
    %657 = memref.load %arg5[%c95] : memref<108xf32, #tpu.memory_space<smem>>
    %658 = vector.broadcast %657 : f32 to vector<32x128xf32>
    %659 = arith.mulf %80, %658 : vector<32x128xf32>
    %c102 = arith.constant 102 : index
    %660 = memref.load %arg5[%c102] : memref<108xf32, #tpu.memory_space<smem>>
    %661 = vector.broadcast %660 : f32 to vector<32x128xf32>
    %662 = arith.mulf %105, %661 : vector<32x128xf32>
    %c103 = arith.constant 103 : index
    %663 = memref.load %arg5[%c103] : memref<108xf32, #tpu.memory_space<smem>>
    %664 = vector.broadcast %663 : f32 to vector<32x128xf32>
    %665 = arith.mulf %102, %664 : vector<32x128xf32>
    %c104 = arith.constant 104 : index
    %666 = memref.load %arg5[%c104] : memref<108xf32, #tpu.memory_space<smem>>
    %667 = vector.broadcast %666 : f32 to vector<32x128xf32>
    %668 = arith.mulf %108, %667 : vector<32x128xf32>
    %669 = arith.addf %635, %638 : vector<32x128xf32>
    %670 = arith.addf %669, %641 : vector<32x128xf32>
    %671 = arith.addf %670, %644 : vector<32x128xf32>
    %672 = arith.addf %671, %647 : vector<32x128xf32>
    %673 = arith.addf %672, %650 : vector<32x128xf32>
    %674 = arith.addf %673, %653 : vector<32x128xf32>
    %675 = arith.addf %674, %656 : vector<32x128xf32>
    %676 = arith.addf %675, %659 : vector<32x128xf32>
    %677 = arith.addf %676, %662 : vector<32x128xf32>
    %678 = arith.addf %677, %665 : vector<32x128xf32>
    %679 = arith.addf %678, %668 : vector<32x128xf32>
    %c72 = arith.constant 72 : index
    %680 = memref.load %arg5[%c72] : memref<108xf32, #tpu.memory_space<smem>>
    %681 = vector.broadcast %680 : f32 to vector<32x128xf32>
    %682 = arith.mulf %21, %681 : vector<32x128xf32>
    %c73 = arith.constant 73 : index
    %683 = memref.load %arg5[%c73] : memref<108xf32, #tpu.memory_space<smem>>
    %684 = vector.broadcast %683 : f32 to vector<32x128xf32>
    %685 = arith.mulf %18, %684 : vector<32x128xf32>
    %c74 = arith.constant 74 : index
    %686 = memref.load %arg5[%c74] : memref<108xf32, #tpu.memory_space<smem>>
    %687 = vector.broadcast %686 : f32 to vector<32x128xf32>
    %688 = arith.mulf %24, %687 : vector<32x128xf32>
    %c81 = arith.constant 81 : index
    %689 = memref.load %arg5[%c81] : memref<108xf32, #tpu.memory_space<smem>>
    %690 = vector.broadcast %689 : f32 to vector<32x128xf32>
    %691 = arith.mulf %49, %690 : vector<32x128xf32>
    %c82 = arith.constant 82 : index
    %692 = memref.load %arg5[%c82] : memref<108xf32, #tpu.memory_space<smem>>
    %693 = vector.broadcast %692 : f32 to vector<32x128xf32>
    %694 = arith.mulf %46, %693 : vector<32x128xf32>
    %c83 = arith.constant 83 : index
    %695 = memref.load %arg5[%c83] : memref<108xf32, #tpu.memory_space<smem>>
    %696 = vector.broadcast %695 : f32 to vector<32x128xf32>
    %697 = arith.mulf %52, %696 : vector<32x128xf32>
    %c90 = arith.constant 90 : index
    %698 = memref.load %arg5[%c90] : memref<108xf32, #tpu.memory_space<smem>>
    %699 = vector.broadcast %698 : f32 to vector<32x128xf32>
    %700 = arith.mulf %77, %699 : vector<32x128xf32>
    %c91 = arith.constant 91 : index
    %701 = memref.load %arg5[%c91] : memref<108xf32, #tpu.memory_space<smem>>
    %702 = vector.broadcast %701 : f32 to vector<32x128xf32>
    %703 = arith.mulf %74, %702 : vector<32x128xf32>
    %c92 = arith.constant 92 : index
    %704 = memref.load %arg5[%c92] : memref<108xf32, #tpu.memory_space<smem>>
    %705 = vector.broadcast %704 : f32 to vector<32x128xf32>
    %706 = arith.mulf %80, %705 : vector<32x128xf32>
    %c99 = arith.constant 99 : index
    %707 = memref.load %arg5[%c99] : memref<108xf32, #tpu.memory_space<smem>>
    %708 = vector.broadcast %707 : f32 to vector<32x128xf32>
    %709 = arith.mulf %105, %708 : vector<32x128xf32>
    %c100 = arith.constant 100 : index
    %710 = memref.load %arg5[%c100] : memref<108xf32, #tpu.memory_space<smem>>
    %711 = vector.broadcast %710 : f32 to vector<32x128xf32>
    %712 = arith.mulf %102, %711 : vector<32x128xf32>
    %c101 = arith.constant 101 : index
    %713 = memref.load %arg5[%c101] : memref<108xf32, #tpu.memory_space<smem>>
    %714 = vector.broadcast %713 : f32 to vector<32x128xf32>
    %715 = arith.mulf %108, %714 : vector<32x128xf32>
    %716 = arith.addf %682, %685 : vector<32x128xf32>
    %717 = arith.addf %716, %688 : vector<32x128xf32>
    %718 = arith.addf %717, %691 : vector<32x128xf32>
    %719 = arith.addf %718, %694 : vector<32x128xf32>
    %720 = arith.addf %719, %697 : vector<32x128xf32>
    %721 = arith.addf %720, %700 : vector<32x128xf32>
    %722 = arith.addf %721, %703 : vector<32x128xf32>
    %723 = arith.addf %722, %706 : vector<32x128xf32>
    %724 = arith.addf %723, %709 : vector<32x128xf32>
    %725 = arith.addf %724, %712 : vector<32x128xf32>
    %726 = arith.addf %725, %715 : vector<32x128xf32>
    %c78 = arith.constant 78 : index
    %727 = memref.load %arg5[%c78] : memref<108xf32, #tpu.memory_space<smem>>
    %728 = vector.broadcast %727 : f32 to vector<32x128xf32>
    %729 = arith.mulf %21, %728 : vector<32x128xf32>
    %c79 = arith.constant 79 : index
    %730 = memref.load %arg5[%c79] : memref<108xf32, #tpu.memory_space<smem>>
    %731 = vector.broadcast %730 : f32 to vector<32x128xf32>
    %732 = arith.mulf %18, %731 : vector<32x128xf32>
    %c80 = arith.constant 80 : index
    %733 = memref.load %arg5[%c80] : memref<108xf32, #tpu.memory_space<smem>>
    %734 = vector.broadcast %733 : f32 to vector<32x128xf32>
    %735 = arith.mulf %24, %734 : vector<32x128xf32>
    %c87 = arith.constant 87 : index
    %736 = memref.load %arg5[%c87] : memref<108xf32, #tpu.memory_space<smem>>
    %737 = vector.broadcast %736 : f32 to vector<32x128xf32>
    %738 = arith.mulf %49, %737 : vector<32x128xf32>
    %c88 = arith.constant 88 : index
    %739 = memref.load %arg5[%c88] : memref<108xf32, #tpu.memory_space<smem>>
    %740 = vector.broadcast %739 : f32 to vector<32x128xf32>
    %741 = arith.mulf %46, %740 : vector<32x128xf32>
    %c89 = arith.constant 89 : index
    %742 = memref.load %arg5[%c89] : memref<108xf32, #tpu.memory_space<smem>>
    %743 = vector.broadcast %742 : f32 to vector<32x128xf32>
    %744 = arith.mulf %52, %743 : vector<32x128xf32>
    %c96 = arith.constant 96 : index
    %745 = memref.load %arg5[%c96] : memref<108xf32, #tpu.memory_space<smem>>
    %746 = vector.broadcast %745 : f32 to vector<32x128xf32>
    %747 = arith.mulf %77, %746 : vector<32x128xf32>
    %c97 = arith.constant 97 : index
    %748 = memref.load %arg5[%c97] : memref<108xf32, #tpu.memory_space<smem>>
    %749 = vector.broadcast %748 : f32 to vector<32x128xf32>
    %750 = arith.mulf %74, %749 : vector<32x128xf32>
    %c98 = arith.constant 98 : index
    %751 = memref.load %arg5[%c98] : memref<108xf32, #tpu.memory_space<smem>>
    %752 = vector.broadcast %751 : f32 to vector<32x128xf32>
    %753 = arith.mulf %80, %752 : vector<32x128xf32>
    %c105 = arith.constant 105 : index
    %754 = memref.load %arg5[%c105] : memref<108xf32, #tpu.memory_space<smem>>
    %755 = vector.broadcast %754 : f32 to vector<32x128xf32>
    %756 = arith.mulf %105, %755 : vector<32x128xf32>
    %c106 = arith.constant 106 : index
    %757 = memref.load %arg5[%c106] : memref<108xf32, #tpu.memory_space<smem>>
    %758 = vector.broadcast %757 : f32 to vector<32x128xf32>
    %759 = arith.mulf %102, %758 : vector<32x128xf32>
    %c107 = arith.constant 107 : index
    %760 = memref.load %arg5[%c107] : memref<108xf32, #tpu.memory_space<smem>>
    %761 = vector.broadcast %760 : f32 to vector<32x128xf32>
    %762 = arith.mulf %108, %761 : vector<32x128xf32>
    %763 = arith.addf %729, %732 : vector<32x128xf32>
    %764 = arith.addf %763, %735 : vector<32x128xf32>
    %765 = arith.addf %764, %738 : vector<32x128xf32>
    %766 = arith.addf %765, %741 : vector<32x128xf32>
    %767 = arith.addf %766, %744 : vector<32x128xf32>
    %768 = arith.addf %767, %747 : vector<32x128xf32>
    %769 = arith.addf %768, %750 : vector<32x128xf32>
    %770 = arith.addf %769, %753 : vector<32x128xf32>
    %771 = arith.addf %770, %756 : vector<32x128xf32>
    %772 = arith.addf %771, %759 : vector<32x128xf32>
    %773 = arith.addf %772, %762 : vector<32x128xf32>
    %c72_168 = arith.constant 72 : index
    %774 = memref.load %arg5[%c72_168] : memref<108xf32, #tpu.memory_space<smem>>
    %775 = vector.broadcast %774 : f32 to vector<1x128xf32>
    %776 = arith.mulf %31, %775 : vector<1x128xf32>
    %c73_169 = arith.constant 73 : index
    %777 = memref.load %arg5[%c73_169] : memref<108xf32, #tpu.memory_space<smem>>
    %778 = vector.broadcast %777 : f32 to vector<1x128xf32>
    %779 = arith.mulf %28, %778 : vector<1x128xf32>
    %c74_170 = arith.constant 74 : index
    %780 = memref.load %arg5[%c74_170] : memref<108xf32, #tpu.memory_space<smem>>
    %781 = vector.broadcast %780 : f32 to vector<1x128xf32>
    %782 = arith.mulf %34, %781 : vector<1x128xf32>
    %c81_171 = arith.constant 81 : index
    %783 = memref.load %arg5[%c81_171] : memref<108xf32, #tpu.memory_space<smem>>
    %784 = vector.broadcast %783 : f32 to vector<1x128xf32>
    %785 = arith.mulf %59, %784 : vector<1x128xf32>
    %c82_172 = arith.constant 82 : index
    %786 = memref.load %arg5[%c82_172] : memref<108xf32, #tpu.memory_space<smem>>
    %787 = vector.broadcast %786 : f32 to vector<1x128xf32>
    %788 = arith.mulf %56, %787 : vector<1x128xf32>
    %c83_173 = arith.constant 83 : index
    %789 = memref.load %arg5[%c83_173] : memref<108xf32, #tpu.memory_space<smem>>
    %790 = vector.broadcast %789 : f32 to vector<1x128xf32>
    %791 = arith.mulf %62, %790 : vector<1x128xf32>
    %c90_174 = arith.constant 90 : index
    %792 = memref.load %arg5[%c90_174] : memref<108xf32, #tpu.memory_space<smem>>
    %793 = vector.broadcast %792 : f32 to vector<1x128xf32>
    %794 = arith.mulf %87, %793 : vector<1x128xf32>
    %c91_175 = arith.constant 91 : index
    %795 = memref.load %arg5[%c91_175] : memref<108xf32, #tpu.memory_space<smem>>
    %796 = vector.broadcast %795 : f32 to vector<1x128xf32>
    %797 = arith.mulf %84, %796 : vector<1x128xf32>
    %c92_176 = arith.constant 92 : index
    %798 = memref.load %arg5[%c92_176] : memref<108xf32, #tpu.memory_space<smem>>
    %799 = vector.broadcast %798 : f32 to vector<1x128xf32>
    %800 = arith.mulf %90, %799 : vector<1x128xf32>
    %c99_177 = arith.constant 99 : index
    %801 = memref.load %arg5[%c99_177] : memref<108xf32, #tpu.memory_space<smem>>
    %802 = vector.broadcast %801 : f32 to vector<1x128xf32>
    %803 = arith.mulf %115, %802 : vector<1x128xf32>
    %c100_178 = arith.constant 100 : index
    %804 = memref.load %arg5[%c100_178] : memref<108xf32, #tpu.memory_space<smem>>
    %805 = vector.broadcast %804 : f32 to vector<1x128xf32>
    %806 = arith.mulf %112, %805 : vector<1x128xf32>
    %c101_179 = arith.constant 101 : index
    %807 = memref.load %arg5[%c101_179] : memref<108xf32, #tpu.memory_space<smem>>
    %808 = vector.broadcast %807 : f32 to vector<1x128xf32>
    %809 = arith.mulf %118, %808 : vector<1x128xf32>
    %810 = arith.addf %776, %779 : vector<1x128xf32>
    %811 = arith.addf %810, %782 : vector<1x128xf32>
    %812 = arith.addf %811, %785 : vector<1x128xf32>
    %813 = arith.addf %812, %788 : vector<1x128xf32>
    %814 = arith.addf %813, %791 : vector<1x128xf32>
    %815 = arith.addf %814, %794 : vector<1x128xf32>
    %816 = arith.addf %815, %797 : vector<1x128xf32>
    %817 = arith.addf %816, %800 : vector<1x128xf32>
    %818 = arith.addf %817, %803 : vector<1x128xf32>
    %819 = arith.addf %818, %806 : vector<1x128xf32>
    %820 = arith.addf %819, %809 : vector<1x128xf32>
    %c78_180 = arith.constant 78 : index
    %821 = memref.load %arg5[%c78_180] : memref<108xf32, #tpu.memory_space<smem>>
    %822 = vector.broadcast %821 : f32 to vector<1x128xf32>
    %823 = arith.mulf %41, %822 : vector<1x128xf32>
    %c79_181 = arith.constant 79 : index
    %824 = memref.load %arg5[%c79_181] : memref<108xf32, #tpu.memory_space<smem>>
    %825 = vector.broadcast %824 : f32 to vector<1x128xf32>
    %826 = arith.mulf %38, %825 : vector<1x128xf32>
    %c80_182 = arith.constant 80 : index
    %827 = memref.load %arg5[%c80_182] : memref<108xf32, #tpu.memory_space<smem>>
    %828 = vector.broadcast %827 : f32 to vector<1x128xf32>
    %829 = arith.mulf %44, %828 : vector<1x128xf32>
    %c87_183 = arith.constant 87 : index
    %830 = memref.load %arg5[%c87_183] : memref<108xf32, #tpu.memory_space<smem>>
    %831 = vector.broadcast %830 : f32 to vector<1x128xf32>
    %832 = arith.mulf %69, %831 : vector<1x128xf32>
    %c88_184 = arith.constant 88 : index
    %833 = memref.load %arg5[%c88_184] : memref<108xf32, #tpu.memory_space<smem>>
    %834 = vector.broadcast %833 : f32 to vector<1x128xf32>
    %835 = arith.mulf %66, %834 : vector<1x128xf32>
    %c89_185 = arith.constant 89 : index
    %836 = memref.load %arg5[%c89_185] : memref<108xf32, #tpu.memory_space<smem>>
    %837 = vector.broadcast %836 : f32 to vector<1x128xf32>
    %838 = arith.mulf %72, %837 : vector<1x128xf32>
    %c96_186 = arith.constant 96 : index
    %839 = memref.load %arg5[%c96_186] : memref<108xf32, #tpu.memory_space<smem>>
    %840 = vector.broadcast %839 : f32 to vector<1x128xf32>
    %841 = arith.mulf %97, %840 : vector<1x128xf32>
    %c97_187 = arith.constant 97 : index
    %842 = memref.load %arg5[%c97_187] : memref<108xf32, #tpu.memory_space<smem>>
    %843 = vector.broadcast %842 : f32 to vector<1x128xf32>
    %844 = arith.mulf %94, %843 : vector<1x128xf32>
    %c98_188 = arith.constant 98 : index
    %845 = memref.load %arg5[%c98_188] : memref<108xf32, #tpu.memory_space<smem>>
    %846 = vector.broadcast %845 : f32 to vector<1x128xf32>
    %847 = arith.mulf %100, %846 : vector<1x128xf32>
    %c105_189 = arith.constant 105 : index
    %848 = memref.load %arg5[%c105_189] : memref<108xf32, #tpu.memory_space<smem>>
    %849 = vector.broadcast %848 : f32 to vector<1x128xf32>
    %850 = arith.mulf %125, %849 : vector<1x128xf32>
    %c106_190 = arith.constant 106 : index
    %851 = memref.load %arg5[%c106_190] : memref<108xf32, #tpu.memory_space<smem>>
    %852 = vector.broadcast %851 : f32 to vector<1x128xf32>
    %853 = arith.mulf %122, %852 : vector<1x128xf32>
    %c107_191 = arith.constant 107 : index
    %854 = memref.load %arg5[%c107_191] : memref<108xf32, #tpu.memory_space<smem>>
    %855 = vector.broadcast %854 : f32 to vector<1x128xf32>
    %856 = arith.mulf %128, %855 : vector<1x128xf32>
    %857 = arith.addf %823, %826 : vector<1x128xf32>
    %858 = arith.addf %857, %829 : vector<1x128xf32>
    %859 = arith.addf %858, %832 : vector<1x128xf32>
    %860 = arith.addf %859, %835 : vector<1x128xf32>
    %861 = arith.addf %860, %838 : vector<1x128xf32>
    %862 = arith.addf %861, %841 : vector<1x128xf32>
    %863 = arith.addf %862, %844 : vector<1x128xf32>
    %864 = arith.addf %863, %847 : vector<1x128xf32>
    %865 = arith.addf %864, %850 : vector<1x128xf32>
    %866 = arith.addf %865, %853 : vector<1x128xf32>
    %867 = arith.addf %866, %856 : vector<1x128xf32>
    %c1_i32_192 = arith.constant 1 : i32
    %868 = tpu.dynamic_rotate %726 by %c1_i32_192 dim 0 : vector<32x128xf32>, i32 -> vector<32x128xf32>
    %869 = vector.shape_cast %820 : vector<1x128xf32> to vector<1x128xf32>
    %870 = vector.broadcast %869 : vector<1x128xf32> to vector<32x128xf32>
    %871 = arith.select %14, %870, %868 : vector<32x128xi1>, vector<32x128xf32>
    %c31_i32_193 = arith.constant 31 : i32
    %872 = tpu.dynamic_rotate %773 by %c31_i32_193 dim 0 : vector<32x128xf32>, i32 -> vector<32x128xf32>
    %873 = vector.shape_cast %867 : vector<1x128xf32> to vector<1x128xf32>
    %874 = vector.broadcast %873 : vector<1x128xf32> to vector<32x128xf32>
    %875 = arith.select %16, %874, %872 : vector<32x128xi1>, vector<32x128xf32>
    %876 = arith.addf %679, %871 : vector<32x128xf32>
    %877 = arith.addf %876, %875 : vector<32x128xf32>
    %c2_194 = arith.constant 2 : index
    %878 = memref.load %arg6[%c2_194] : memref<3xf32, #tpu.memory_space<smem>>
    %879 = vector.broadcast %878 : f32 to vector<32x128xf32>
    %880 = arith.addf %877, %879 : vector<32x128xf32>
    %881 = math.tanh %880 : vector<32x128xf32>
    %c0_195 = arith.constant 0 : index
    %c2_196 = arith.constant 2 : index
    %c0_197 = arith.constant 0 : index
    %c0_198 = arith.constant 0 : index
    %882 = vector.load %arg7[%c0_195, %c2_196, %c0_197, %c0_198] : memref<1x3x32x128xf32, #tpu.memory_space<vmem>>, vector<1x1x32x128xf32>
    %883 = vector.shape_cast %882 : vector<1x1x32x128xf32> to vector<32x128xf32>
    %884 = vector.shape_cast %881 : vector<32x128xf32> to vector<1x1x32x128xf32>
    tpu.vector_store %arg7[%c0_195, %c2_196, %c0_197, %c0_198], %884 {strides = array<i32>} : memref<1x3x32x128xf32, #tpu.memory_space<vmem>>, vector<1x1x32x128xf32>,
    return
  }
  func.func @transform_0(%arg0: i32, %arg1: i32) -> (i32, i32, i32, i32) {
    %c0_i32 = arith.constant 0 : i32
    %c0_i32_0 = arith.constant 0 : i32
    %c0_i32_1 = arith.constant 0 : i32
    return %arg0, %c0_i32, %arg1, %c0_i32_0 : i32, i32, i32, i32
  }
  func.func @transform_1(%arg0: i32, %arg1: i32) -> (i32, i32, i32, i32) {
    %c4_i32 = arith.constant 4 : i32
    %0 = arith.muli %arg1, %c4_i32 : i32
    %c1_i32 = arith.constant 1 : i32
    %1 = arith.subi %0, %c1_i32 : i32
    %c0_i32 = arith.constant 0 : i32
    %2 = arith.maxsi %1, %c0_i32 : i32
    %c0_i32_0 = arith.constant 0 : i32
    %c0_i32_1 = arith.constant 0 : i32
    %c0_i32_2 = arith.constant 0 : i32
    return %arg0, %c0_i32_0, %2, %c0_i32_1 : i32, i32, i32, i32
  }
  func.func @transform_2(%arg0: i32, %arg1: i32) -> (i32, i32, i32, i32) {
    %c4_i32 = arith.constant 4 : i32
    %0 = arith.muli %arg1, %c4_i32 : i32
    %c4_i32_0 = arith.constant 4 : i32
    %1 = arith.addi %0, %c4_i32_0 : i32
    %c15_i32 = arith.constant 15 : i32
    %2 = arith.minsi %1, %c15_i32 : i32
    %c0_i32 = arith.constant 0 : i32
    %c0_i32_1 = arith.constant 0 : i32
    %c0_i32_2 = arith.constant 0 : i32
    return %arg0, %c0_i32, %2, %c0_i32_1 : i32, i32, i32, i32
  }
  func.func @transform_3(%arg0: i32, %arg1: i32) -> i32 {
    %c0_i32 = arith.constant 0 : i32
    %c0_i32_0 = arith.constant 0 : i32
    return %c0_i32 : i32
  }
  func.func @transform_4(%arg0: i32, %arg1: i32) -> i32 {
    %c0_i32 = arith.constant 0 : i32
    %c0_i32_0 = arith.constant 0 : i32
    return %c0_i32 : i32
  }
  func.func @transform_5(%arg0: i32, %arg1: i32) -> (i32, i32, i32, i32) {
    %c0_i32 = arith.constant 0 : i32
    %c0_i32_0 = arith.constant 0 : i32
    %c0_i32_1 = arith.constant 0 : i32
    return %arg0, %c0_i32, %arg1, %c0_i32_0 : i32, i32, i32, i32
  }
}

</mosaic_0001>

<llo_original>
// kernel: output_layer_forward.3
$region0: #{output_layer_forward.3}
  #allocation0 [shape = 'u32[]', space=smem, size = 0x4, offset = 0x4, fixed_abs, tag = 'smem constant byte address 0x4 - core index']
  #allocation1 [shape = 'u32[144,128]{1,0:T(1,128)}', space=vmem, size = 0x12000, scoped, tag = 'internal scratch']
  %s0 = inlined_call_operand.vmem [shape: f32[2,8,128,128], index: 0, kind: input, shape index: {}]
  %s1 = inlined_call_operand.vmem [shape: f32[24], index: 1, kind: input, shape index: {}]
  %s2 = inlined_call_operand.vmem [shape: f32[3], index: 2, kind: input, shape index: {}]
  %s3 = inlined_call_operand.hbm [shape: f32[2,3,128,128], index: 3, kind: output, shape index: {}]
  %s4 = sld [smem:[#allocation0]]
  $region53: #{output_layer_forward.3} parent=0
    _
  %s6 = ssub.s32 1, %s4
  %s7 = scalar_select 0, %s6, %s4
  $region1: #{output_layer_forward.3} parent=0
    #allocation2 [shape = 'u8[512]{0}', space=smem, size = 0x200, scoped, tag = 'input window, operand 1, single buffered']
    #allocation3 [shape = 's32[2]{0}', space=sflag, size = 0x8, scoped, tag = 'scoped memory for output_layer_forward.3']
    #allocation4 [shape = 's32[2]{0}', space=sflag, size = 0x8, scoped, tag = 'scoped memory for output_layer_forward.3']
    #allocation5 [shape = 'u8[512]{0}', space=smem, size = 0x200, scoped, tag = 'input window, operand 2, single buffered']
    #allocation6 [shape = 's32[1]{0}', space=sflag, size = 0x4, scoped, tag = 'scoped memory for output_layer_forward.3']
    #allocation7 [shape = 'u8[393216]{0}', space=vmem, size = 0x60000, scoped, tag = 'output window, operand 0']
    %8 = vsyncpa [#allocation4], 0
    %9 = vsyncpa [#allocation6], 0
    %10 = vsyncpa [#allocation3], 0
    %s11 = scalar_lea.sflag [#allocation3], 1
    %12 = vsyncpa %s11, 0
    loop: start=0, step=1, limit=4
    $region2: #{output_layer_forward.3} parent=1 // loop_pre_header
      _
    $region3: #{output_layer_forward.3} parent=1 // loop_header
      %s14 = sphi 0, %s18
      %p15 = scmp.ge.s32.totalorder %s14, 4
      %s21 = sphi 0, %s33
      %s22 = sphi 0, %s29
      %s23 = sphi 0, %s21
      %s24 = sphi 0, %s22
      %s25 = sphi 0, %s23
      %s26 = sphi 0, %s24
      %s38 = sphi 0, %s40
      %s41 = sphi 0, %s38
      %s42 = sphi 0, %s41
      %s58 = sphi 0, %s42
      %s62 = sphi 0, %s62
      %s64 = sphi 0, %s62
      %s65 = sphi 0, %s64
      %s79 = sphi 0, %s65
      %s83 = sphi 0, %s83
      %s85 = sphi 0, %s83
      %s86 = sphi 0, %s85
      %s100 = sphi 0, %s86
      %s108 = sphi 0, %s110
      %s111 = sphi 0, %s108
      %s112 = sphi 0, %s111
      %s128 = sphi 0, %s112
    $region4: #{output_layer_forward.3} parent=1 // loop_header_branch
      %17 = sbr.rel (%p15) target = $region8
    $region5: #{output_layer_forward.3} parent=1 // loop_body
      %s19 = ssub.s32 %s14, 1
      %s20 = ssub.s32 %s14, 2
      %s27 = sadd.s32 1, %s22
      %p28 = scmp.ge.s32.totalorder %s27, 1
      %s29 = scalar_select %p28, 0, %s27
      %s30 = sadd.s32 1, %s21
      %s31 = scalar_select %p28, %s30, %s21
      %p32 = scmp.ge.s32.totalorder %s31, 2
      %s33 = scalar_select %p32, 0, %s31
      %s34 = ssub.s32 %s21, %s33
      %s35 = ssub.s32 %s22, %s29
      %s36 = sor.u32 %s34, %s35
      %p37 = scmp.eq.s32.totalorder %s36, 0
      %s39 = sadd.s32 %s38, 1
      %s40 = scalar_select %p37, %s38, %s39
      %p43 = pneg %p37
      %p44 = scmp.eq.s32.totalorder %s14, 1
      %p45 = por %p43, %p44
      %p46 = scmp.ne.s32.totalorder %s38, %s41
      %p47 = scmp.eq.s32.totalorder %s14, 0
      %p48 = por %p46, %p47
      %p49 = scmp.ne.s32.totalorder %s38, %s41
      %p50 = scmp.eq.s32.totalorder %s19, 1
      %p51 = por %p49, %p50
      %p52 = scmp.ne.s32.totalorder %s41, %s42
      %p53 = scmp.eq.s32.totalorder %s19, 0
      %p54 = por %p52, %p53
      %p55 = scmp.ne.s32.totalorder %s41, %s42
      %p56 = scmp.eq.s32.totalorder %s20, 1
      %p57 = por %p55, %p56
      %p59 = scmp.ne.s32.totalorder %s42, %s58
      %p60 = scmp.eq.s32.totalorder %s20, 0
      %p61 = por %p59, %p60
      %s63 = sadd.s32 %s62, 1
      %p66 = scmp.eq.s32.totalorder %s14, 1
      %p67 = scmp.ne.s32.totalorder %s62, %s64
      %p68 = scmp.eq.s32.totalorder %s14, 0
      %p69 = por %p67, %p68
      %p70 = scmp.ne.s32.totalorder %s62, %s64
      %p71 = scmp.eq.s32.totalorder %s19, 1
      %p72 = por %p70, %p71
      %p73 = scmp.ne.s32.totalorder %s64, %s65
      %p74 = scmp.eq.s32.totalorder %s19, 0
      %p75 = por %p73, %p74
      %p76 = scmp.ne.s32.totalorder %s64, %s65
      %p77 = scmp.eq.s32.totalorder %s20, 1
      %p78 = por %p76, %p77
      %p80 = scmp.ne.s32.totalorder %s65, %s79
      %p81 = scmp.eq.s32.totalorder %s20, 0
      %p82 = por %p80, %p81
      %s84 = sadd.s32 %s83, 1
      %p87 = scmp.eq.s32.totalorder %s14, 1
      %p88 = scmp.ne.s32.totalorder %s83, %s85
      %p89 = scmp.eq.s32.totalorder %s14, 0
      %p90 = por %p88, %p89
      %p91 = scmp.ne.s32.totalorder %s83, %s85
      %p92 = scmp.eq.s32.totalorder %s19, 1
      %p93 = por %p91, %p92
      %p94 = scmp.ne.s32.totalorder %s85, %s86
      %p95 = scmp.eq.s32.totalorder %s19, 0
      %p96 = por %p94, %p95
      %p97 = scmp.ne.s32.totalorder %s85, %s86
      %p98 = scmp.eq.s32.totalorder %s20, 1
      %p99 = por %p97, %p98
      %p101 = scmp.ne.s32.totalorder %s86, %s100
      %p102 = scmp.eq.s32.totalorder %s20, 0
      %p103 = por %p101, %p102
      %s104 = ssub.s32 %s21, %s33
      %s105 = ssub.s32 %s22, %s29
      %s106 = sor.u32 %s104, %s105
      %p107 = scmp.eq.s32.totalorder %s106, 0
      %s109 = sadd.s32 %s108, 1
      %s110 = scalar_select %p107, %s108, %s109
      %p113 = pneg %p107
      %p114 = scmp.eq.s32.totalorder %s14, 1
      %p115 = por %p113, %p114
      %p116 = scmp.ne.s32.totalorder %s108, %s111
      %p117 = scmp.eq.s32.totalorder %s14, 0
      %p118 = por %p116, %p117
      %p119 = scmp.ne.s32.totalorder %s108, %s111
      %p120 = scmp.eq.s32.totalorder %s19, 1
      %p121 = por %p119, %p120
      %p122 = scmp.ne.s32.totalorder %s111, %s112
      %p123 = scmp.eq.s32.totalorder %s19, 0
      %p124 = por %p122, %p123
      %p125 = scmp.ne.s32.totalorder %s111, %s112
      %p126 = scmp.eq.s32.totalorder %s20, 1
      %p127 = por %p125, %p126
      %p129 = scmp.ne.s32.totalorder %s112, %s128
      %p130 = scmp.eq.s32.totalorder %s20, 0
      %p131 = por %p129, %p130
      %p132 = scmp.le.s32.totalorder 1, %s14
      %p133 = scmp.lt.s32.totalorder %s14, 3
      %p134 = pnand %p132, %p133
      %p135 = pneg %p134
      // Predicated region
      $region9: #{output_layer_forward.3} parent=5 // pred_check
        _
      $region10: #{output_layer_forward.3} parent=5 // pred_check_branch
        %137 = sbr.rel (%p134) target = $region12
      $region11: #{output_layer_forward.3} parent=5 // pred_region
        %s138 = ssub.s32 %s14, 1
        // Predicated region
        $region13: #{output_layer_forward.3} parent=11 // pred_check
          %p139 = pneg %p75
        $region14: #{output_layer_forward.3} parent=11 // pred_check_branch
          %141 = sbr.rel (%p139) target = $region16
        $region15: #{output_layer_forward.3} parent=11 // pred_region
          %s143 = ssub.s32 16, 16
          %144 = vsyncadd [#allocation4], %s143
          %s146 = sshll.u32 %s1, 4
          %s147 = int_to_ptr.vmem [resolvable:$true] %s146
          %149 = dma.vmem_to_smem %s147, 16, [#allocation2], [#allocation4]
        $region16: #{output_layer_forward.3} parent=11 // pred_fallthru
          _
        // Predicated region
        $region17: #{output_layer_forward.3} parent=11 // pred_check
          %p150 = pneg %p96
        $region18: #{output_layer_forward.3} parent=11 // pred_check_branch
          %152 = sbr.rel (%p150) target = $region20
        $region19: #{output_layer_forward.3} parent=11 // pred_region
          %s154 = ssub.s32 16, 16
          %155 = vsyncadd [#allocation6], %s154
          %s157 = sshll.u32 %s2, 4
          %s158 = int_to_ptr.vmem [resolvable:$true] %s157
          %160 = dma.vmem_to_smem %s158, 16, [#allocation5], [#allocation6]
        $region20: #{output_layer_forward.3} parent=11 // pred_fallthru
          _
      $region12: #{output_layer_forward.3} parent=5 // pred_fallthru
        _
      %p161 = scmp.lt.s32.totalorder %s14, 2
      // Predicated region
      $region21: #{output_layer_forward.3} parent=5 // pred_check
        %p162 = pneg %p161
      $region22: #{output_layer_forward.3} parent=5 // pred_check_branch
        %164 = sbr.rel (%p162) target = $region24
      $region23: #{output_layer_forward.3} parent=5 // pred_region
        // Predicated region
        $region25: #{output_layer_forward.3} parent=23 // pred_check
          %p165 = pneg %p48
        $region26: #{output_layer_forward.3} parent=23 // pred_check_branch
          %167 = sbr.rel (%p165) target = $region28
        $region27: #{output_layer_forward.3} parent=23 // pred_region
          %s168 = smul.u32 16, %s22
          %p169 = scmp.lt.s32.totalorder %s21, 1
          %s170 = scalar_select %p169, %s21, 1
          %p171 = scmp.lt.s32.totalorder %s168, 15
          %s172 = scalar_select %p171, %s168, 15
          %s173 = smul.addr %s170, 128
          %s174 = sadd.s32 %s172, %s173
          %s175 = smul.addr %s174, 8
          %s176 = scalar_lea.vmem %s0, %s175
          %s177 = smul.u32 16, %s22
        $region28: #{output_layer_forward.3} parent=23 // pred_fallthru
          _
      $region24: #{output_layer_forward.3} parent=5 // pred_fallthru
        _
      %p178 = scmp.le.s32.totalorder 1, %s14
      %p179 = scmp.lt.s32.totalorder %s14, 3
      %p180 = pnand %p178, %p179
      %p181 = pneg %p180
      // Predicated region
      $region29: #{output_layer_forward.3} parent=5 // pred_check
        _
      $region30: #{output_layer_forward.3} parent=5 // pred_check_branch
        %183 = sbr.rel (%p180) target = $region32
      $region31: #{output_layer_forward.3} parent=5 // pred_region
        %s184 = ssub.s32 %s14, 1
        // Predicated region
        $region33: #{output_layer_forward.3} parent=31 // pred_check
          %p185 = pneg %p75
        $region34: #{output_layer_forward.3} parent=31 // pred_check_branch
          %187 = sbr.rel (%p185) target = $region36
        $region35: #{output_layer_forward.3} parent=31 // pred_region
          %188 = dma.done [#allocation4], 16
        $region36: #{output_layer_forward.3} parent=31 // pred_fallthru
          _
        // Predicated region
        $region37: #{output_layer_forward.3} parent=31 // pred_check
          %p189 = pneg %p96
        $region38: #{output_layer_forward.3} parent=31 // pred_check_branch
          %191 = sbr.rel (%p189) target = $region40
        $region39: #{output_layer_forward.3} parent=31 // pred_region
          %192 = dma.done [#allocation6], 16
        $region40: #{output_layer_forward.3} parent=31 // pred_fallthru
          _
        %193 = sfence
        %s194 = smul.u32 16, %s24
        %p195 = scmp.lt.s32.totalorder %s23, 1
        %s196 = scalar_select %p195, %s23, 1
        %p197 = scmp.lt.s32.totalorder %s194, 15
        %s198 = scalar_select %p197, %s194, 15
        %s199 = smul.addr %s196, 128
        %s200 = sadd.s32 %s198, %s199
        %s201 = smul.addr %s200, 8
        %s202 = scalar_lea.vmem %s0, %s201
        %p203 = pneg %p54
        %p204 = pneg %p51
        %p205 = pneg %p75
        %p206 = pneg %p72
        %p207 = pneg %p96
        %p208 = pneg %p93
        %p209 = pneg %p124
        %p210 = pneg %p121
        %s211 = sand.u32 %s111, 1
        %s212 = scalar_lea.sflag [#allocation3], %s211
        %s213 = sand.u32 %s111, 1
        %s214 = smul.addr %s213, 384
        %s215 = scalar_lea.vmem [#allocation7], %s214
        %s216 = smul.u32 16, %s24
        %p217 = scmp.lt.s32.totalorder %s23, 1
        %s218 = scalar_select %p217, %s23, 1
        %p219 = scmp.lt.s32.totalorder %s216, 15
        %s220 = scalar_select %p219, %s216, 15
        %s221 = smul.addr %s218, 128
        %s222 = sadd.s32 %s220, %s221
        %s223 = smul.addr %s222, 8
        %s224 = scalar_lea.vmem %s0, %s223
        %s225 = smul.u32 16, %s24
        %s226 = smul.u32 16, %s24
        %v227 = vld [vmem:[%s224] sm:$0xff]
        %v228 = vld [vmem:[%s224 + $0x8] sm:$0xff]
        %v229 = vld [vmem:[%s224 + $0x10] sm:$0xff]
        %v230 = vld [vmem:[%s224 + $0x18] sm:$0xff]
        %v231 = vld [vmem:[%s224 + $0x20] sm:$0xff]
        %v232 = vld [vmem:[%s224 + $0x28] sm:$0xff]
        %v233 = vld [vmem:[%s224 + $0x30] sm:$0xff]
        %v234 = vld [vmem:[%s224 + $0x38] sm:$0xff]
        %v235 = vld [vmem:[%s224 + $0x40] sm:$0xff]
        %v236 = vld [vmem:[%s224 + $0x48] sm:$0xff]
        %v237 = vld [vmem:[%s224 + $0x50] sm:$0xff]
        %v238 = vld [vmem:[%s224 + $0x58] sm:$0xff]
        %v239 = vld [vmem:[%s224 + $0x60] sm:$0xff]
        %v240 = vld [vmem:[%s224 + $0x68] sm:$0xff]
        %v241 = vld [vmem:[%s224 + $0x70] sm:$0xff]
        %v242 = vld [vmem:[%s224 + $0x78] sm:$0xff]
        %s243 = scalar_lea.vmem %s224, 128
        %v244 = vld [vmem:[%s243] sm:$0xff]
        %v245 = vld [vmem:[%s243 + $0x8] sm:$0xff]
        %v246 = vld [vmem:[%s243 + $0x10] sm:$0xff]
        %v247 = vld [vmem:[%s243 + $0x18] sm:$0xff]
        %v248 = vld [vmem:[%s243 + $0x20] sm:$0xff]
        %v249 = vld [vmem:[%s243 + $0x28] sm:$0xff]
        %v250 = vld [vmem:[%s243 + $0x30] sm:$0xff]
        %v251 = vld [vmem:[%s243 + $0x38] sm:$0xff]
        %v252 = vld [vmem:[%s243 + $0x40] sm:$0xff]
        %v253 = vld [vmem:[%s243 + $0x48] sm:$0xff]
        %v254 = vld [vmem:[%s243 + $0x50] sm:$0xff]
        %v255 = vld [vmem:[%s243 + $0x58] sm:$0xff]
        %v256 = vld [vmem:[%s243 + $0x60] sm:$0xff]
        %v257 = vld [vmem:[%s243 + $0x68] sm:$0xff]
        %v258 = vld [vmem:[%s243 + $0x70] sm:$0xff]
        %v259 = vld [vmem:[%s243 + $0x78] sm:$0xff]
        %s260 = scalar_lea.vmem %s224, 256
        %v261 = vld [vmem:[%s260] sm:$0xff]
        %v262 = vld [vmem:[%s260 + $0x8] sm:$0xff]
        %v263 = vld [vmem:[%s260 + $0x10] sm:$0xff]
        %v264 = vld [vmem:[%s260 + $0x18] sm:$0xff]
        %v265 = vld [vmem:[%s260 + $0x20] sm:$0xff]
        %v266 = vld [vmem:[%s260 + $0x28] sm:$0xff]
        %v267 = vld [vmem:[%s260 + $0x30] sm:$0xff]
        %v268 = vld [vmem:[%s260 + $0x38] sm:$0xff]
        %v269 = vld [vmem:[%s260 + $0x40] sm:$0xff]
        %v270 = vld [vmem:[%s260 + $0x48] sm:$0xff]
        %v271 = vld [vmem:[%s260 + $0x50] sm:$0xff]
        %v272 = vld [vmem:[%s260 + $0x58] sm:$0xff]
        %v273 = vld [vmem:[%s260 + $0x60] sm:$0xff]
        %v274 = vld [vmem:[%s260 + $0x68] sm:$0xff]
        %v275 = vld [vmem:[%s260 + $0x70] sm:$0xff]
        %v276 = vld [vmem:[%s260 + $0x78] sm:$0xff]
        %s277 = scalar_lea.vmem %s224, 384
        %v278 = vld [vmem:[%s277] sm:$0xff]
        %v279 = vld [vmem:[%s277 + $0x8] sm:$0xff]
        %v280 = vld [vmem:[%s277 + $0x10] sm:$0xff]
        %v281 = vld [vmem:[%s277 + $0x18] sm:$0xff]
        %v282 = vld [vmem:[%s277 + $0x20] sm:$0xff]
        %v283 = vld [vmem:[%s277 + $0x28] sm:$0xff]
        %v284 = vld [vmem:[%s277 + $0x30] sm:$0xff]
        %v285 = vld [vmem:[%s277 + $0x38] sm:$0xff]
        %v286 = vld [vmem:[%s277 + $0x40] sm:$0xff]
        %v287 = vld [vmem:[%s277 + $0x48] sm:$0xff]
        %v288 = vld [vmem:[%s277 + $0x50] sm:$0xff]
        %v289 = vld [vmem:[%s277 + $0x58] sm:$0xff]
        %v290 = vld [vmem:[%s277 + $0x60] sm:$0xff]
        %v291 = vld [vmem:[%s277 + $0x68] sm:$0xff]
        %v292 = vld [vmem:[%s277 + $0x70] sm:$0xff]
        %v293 = vld [vmem:[%s277 + $0x78] sm:$0xff]
        %s294 = scalar_lea.vmem %s224, 512
        %v295 = vld [vmem:[%s294] sm:$0xff]
        %v296 = vld [vmem:[%s294 + $0x8] sm:$0xff]
        %v297 = vld [vmem:[%s294 + $0x10] sm:$0xff]
        %v298 = vld [vmem:[%s294 + $0x18] sm:$0xff]
        %v299 = vld [vmem:[%s294 + $0x20] sm:$0xff]
        %v300 = vld [vmem:[%s294 + $0x28] sm:$0xff]
        %v301 = vld [vmem:[%s294 + $0x30] sm:$0xff]
        %v302 = vld [vmem:[%s294 + $0x38] sm:$0xff]
        %v303 = vld [vmem:[%s294 + $0x40] sm:$0xff]
        %v304 = vld [vmem:[%s294 + $0x48] sm:$0xff]
        %v305 = vld [vmem:[%s294 + $0x50] sm:$0xff]
        %v306 = vld [vmem:[%s294 + $0x58] sm:$0xff]
        %v307 = vld [vmem:[%s294 + $0x60] sm:$0xff]
        %v308 = vld [vmem:[%s294 + $0x68] sm:$0xff]
        %v309 = vld [vmem:[%s294 + $0x70] sm:$0xff]
        %v310 = vld [vmem:[%s294 + $0x78] sm:$0xff]
        %s311 = scalar_lea.vmem %s224, 640
        %v312 = vld [vmem:[%s311] sm:$0xff]
        %v313 = vld [vmem:[%s311 + $0x8] sm:$0xff]
        %v314 = vld [vmem:[%s311 + $0x10] sm:$0xff]
        %v315 = vld [vmem:[%s311 + $0x18] sm:$0xff]
        %v316 = vld [vmem:[%s311 + $0x20] sm:$0xff]
        %v317 = vld [vmem:[%s311 + $0x28] sm:$0xff]
        %v318 = vld [vmem:[%s311 + $0x30] sm:$0xff]
        %v319 = vld [vmem:[%s311 + $0x38] sm:$0xff]
        %v320 = vld [vmem:[%s311 + $0x40] sm:$0xff]
        %v321 = vld [vmem:[%s311 + $0x48] sm:$0xff]
        %v322 = vld [vmem:[%s311 + $0x50] sm:$0xff]
        %v323 = vld [vmem:[%s311 + $0x58] sm:$0xff]
        %v324 = vld [vmem:[%s311 + $0x60] sm:$0xff]
        %v325 = vld [vmem:[%s311 + $0x68] sm:$0xff]
        %v326 = vld [vmem:[%s311 + $0x70] sm:$0xff]
        %v327 = vld [vmem:[%s311 + $0x78] sm:$0xff]
        %s328 = scalar_lea.vmem %s224, 768
        %v329 = vld [vmem:[%s328] sm:$0xff]
        %v330 = vld [vmem:[%s328 + $0x8] sm:$0xff]
        %v331 = vld [vmem:[%s328 + $0x10] sm:$0xff]
        %v332 = vld [vmem:[%s328 + $0x18] sm:$0xff]
        %v333 = vld [vmem:[%s328 + $0x20] sm:$0xff]
        %v334 = vld [vmem:[%s328 + $0x28] sm:$0xff]
        %v335 = vld [vmem:[%s328 + $0x30] sm:$0xff]
        %v336 = vld [vmem:[%s328 + $0x38] sm:$0xff]
        %v337 = vld [vmem:[%s328 + $0x40] sm:$0xff]
        %v338 = vld [vmem:[%s328 + $0x48] sm:$0xff]
        %v339 = vld [vmem:[%s328 + $0x50] sm:$0xff]
        %v340 = vld [vmem:[%s328 + $0x58] sm:$0xff]
        %v341 = vld [vmem:[%s328 + $0x60] sm:$0xff]
        %v342 = vld [vmem:[%s328 + $0x68] sm:$0xff]
        %v343 = vld [vmem:[%s328 + $0x70] sm:$0xff]
        %v344 = vld [vmem:[%s328 + $0x78] sm:$0xff]
        %s345 = scalar_lea.vmem %s224, 896
        %v346 = vld [vmem:[%s345] sm:$0xff]
        %v347 = vld [vmem:[%s345 + $0x8] sm:$0xff]
        %v348 = vld [vmem:[%s345 + $0x10] sm:$0xff]
        %v349 = vld [vmem:[%s345 + $0x18] sm:$0xff]
        %v350 = vld [vmem:[%s345 + $0x20] sm:$0xff]
        %v351 = vld [vmem:[%s345 + $0x28] sm:$0xff]
        %v352 = vld [vmem:[%s345 + $0x30] sm:$0xff]
        %v353 = vld [vmem:[%s345 + $0x38] sm:$0xff]
        %v354 = vld [vmem:[%s345 + $0x40] sm:$0xff]
        %v355 = vld [vmem:[%s345 + $0x48] sm:$0xff]
        %v356 = vld [vmem:[%s345 + $0x50] sm:$0xff]
        %v357 = vld [vmem:[%s345 + $0x58] sm:$0xff]
        %v358 = vld [vmem:[%s345 + $0x60] sm:$0xff]
        %v359 = vld [vmem:[%s345 + $0x68] sm:$0xff]
        %v360 = vld [vmem:[%s345 + $0x70] sm:$0xff]
        %v361 = vld [vmem:[%s345 + $0x78] sm:$0xff]
        %s362 = sld [smem:[#allocation2]]
        %v363 = vstv %s362
        %v364 = vmul.f32 %v227, %v363
        %v365 = vmul.f32 %v228, %v363
        %v366 = vmul.f32 %v229, %v363
        %v367 = vmul.f32 %v230, %v363
        %v368 = vmul.f32 %v231, %v363
        %v369 = vmul.f32 %v232, %v363
        %v370 = vmul.f32 %v233, %v363
        %v371 = vmul.f32 %v234, %v363
        %v372 = vmul.f32 %v235, %v363
        %v373 = vmul.f32 %v236, %v363
        %v374 = vmul.f32 %v237, %v363
        %v375 = vmul.f32 %v238, %v363
        %v376 = vmul.f32 %v239, %v363
        %v377 = vmul.f32 %v240, %v363
        %v378 = vmul.f32 %v241, %v363
        %v379 = vmul.f32 %v242, %v363
        %s380 = sld [smem:[#allocation2 + $0x1]]
        %v381 = vstv %s380
        %v382 = vmul.f32 %v244, %v381
        %v383 = vmul.f32 %v245, %v381
        %v384 = vmul.f32 %v246, %v381
        %v385 = vmul.f32 %v247, %v381
        %v386 = vmul.f32 %v248, %v381
        %v387 = vmul.f32 %v249, %v381
        %v388 = vmul.f32 %v250, %v381
        %v389 = vmul.f32 %v251, %v381
        %v390 = vmul.f32 %v252, %v381
        %v391 = vmul.f32 %v253, %v381
        %v392 = vmul.f32 %v254, %v381
        %v393 = vmul.f32 %v255, %v381
        %v394 = vmul.f32 %v256, %v381
        %v395 = vmul.f32 %v257, %v381
        %v396 = vmul.f32 %v258, %v381
        %v397 = vmul.f32 %v259, %v381
        %s398 = sld [smem:[#allocation2 + $0x2]]
        %v399 = vstv %s398
        %v400 = vmul.f32 %v261, %v399
        %v401 = vmul.f32 %v262, %v399
        %v402 = vmul.f32 %v263, %v399
        %v403 = vmul.f32 %v264, %v399
        %v404 = vmul.f32 %v265, %v399
        %v405 = vmul.f32 %v266, %v399
        %v406 = vmul.f32 %v267, %v399
        %v407 = vmul.f32 %v268, %v399
        %v408 = vmul.f32 %v269, %v399
        %v409 = vmul.f32 %v270, %v399
        %v410 = vmul.f32 %v271, %v399
        %v411 = vmul.f32 %v272, %v399
        %v412 = vmul.f32 %v273, %v399
        %v413 = vmul.f32 %v274, %v399
        %v414 = vmul.f32 %v275, %v399
        %v415 = vmul.f32 %v276, %v399
        %s416 = sld [smem:[#allocation2 + $0x3]]
        %v417 = vstv %s416
        %v418 = vmul.f32 %v278, %v417
        %v419 = vmul.f32 %v279, %v417
        %v420 = vmul.f32 %v280, %v417
        %v421 = vmul.f32 %v281, %v417
        %v422 = vmul.f32 %v282, %v417
        %v423 = vmul.f32 %v283, %v417
        %v424 = vmul.f32 %v284, %v417
        %v425 = vmul.f32 %v285, %v417
        %v426 = vmul.f32 %v286, %v417
        %v427 = vmul.f32 %v287, %v417
        %v428 = vmul.f32 %v288, %v417
        %v429 = vmul.f32 %v289, %v417
        %v430 = vmul.f32 %v290, %v417
        %v431 = vmul.f32 %v291, %v417
        %v432 = vmul.f32 %v292, %v417
        %v433 = vmul.f32 %v293, %v417
        %s434 = sld [smem:[#allocation2 + $0x4]]
        %v435 = vstv %s434
        %v436 = vmul.f32 %v295, %v435
        %v437 = vmul.f32 %v296, %v435
        %v438 = vmul.f32 %v297, %v435
        %v439 = vmul.f32 %v298, %v435
        %v440 = vmul.f32 %v299, %v435
        %v441 = vmul.f32 %v300, %v435
        %v442 = vmul.f32 %v301, %v435
        %v443 = vmul.f32 %v302, %v435
        %v444 = vmul.f32 %v303, %v435
        %v445 = vmul.f32 %v304, %v435
        %v446 = vmul.f32 %v305, %v435
        %v447 = vmul.f32 %v306, %v435
        %v448 = vmul.f32 %v307, %v435
        %v449 = vmul.f32 %v308, %v435
        %v450 = vmul.f32 %v309, %v435
        %v451 = vmul.f32 %v310, %v435
        %s452 = sld [smem:[#allocation2 + $0x5]]
        %v453 = vstv %s452
        %v454 = vmul.f32 %v312, %v453
        %v455 = vmul.f32 %v313, %v453
        %v456 = vmul.f32 %v314, %v453
        %v457 = vmul.f32 %v315, %v453
        %v458 = vmul.f32 %v316, %v453
        %v459 = vmul.f32 %v317, %v453
        %v460 = vmul.f32 %v318, %v453
        %v461 = vmul.f32 %v319, %v453
        %v462 = vmul.f32 %v320, %v453
        %v463 = vmul.f32 %v321, %v453
        %v464 = vmul.f32 %v322, %v453
        %v465 = vmul.f32 %v323, %v453
        %v466 = vmul.f32 %v324, %v453
        %v467 = vmul.f32 %v325, %v453
        %v468 = vmul.f32 %v326, %v453
        %v469 = vmul.f32 %v327, %v453
        %s470 = sld [smem:[#allocation2 + $0x6]]
        %v471 = vstv %s470
        %v472 = vmul.f32 %v329, %v471
        %v473 = vmul.f32 %v330, %v471
        %v474 = vmul.f32 %v331, %v471
        %v475 = vmul.f32 %v332, %v471
        %v476 = vmul.f32 %v333, %v471
        %v477 = vmul.f32 %v334, %v471
        %v478 = vmul.f32 %v335, %v471
        %v479 = vmul.f32 %v336, %v471
        %v480 = vmul.f32 %v337, %v471
        %v481 = vmul.f32 %v338, %v471
        %v482 = vmul.f32 %v339, %v471
        %v483 = vmul.f32 %v340, %v471
        %v484 = vmul.f32 %v341, %v471
        %v485 = vmul.f32 %v342, %v471
        %v486 = vmul.f32 %v343, %v471
        %v487 = vmul.f32 %v344, %v471
        %s488 = sld [smem:[#allocation2 + $0x7]]
        %v489 = vstv %s488
        %v490 = vmul.f32 %v346, %v489
        %v491 = vmul.f32 %v347, %v489
        %v492 = vmul.f32 %v348, %v489
        %v493 = vmul.f32 %v349, %v489
        %v494 = vmul.f32 %v350, %v489
        %v495 = vmul.f32 %v351, %v489
        %v496 = vmul.f32 %v352, %v489
        %v497 = vmul.f32 %v353, %v489
        %v498 = vmul.f32 %v354, %v489
        %v499 = vmul.f32 %v355, %v489
        %v500 = vmul.f32 %v356, %v489
        %v501 = vmul.f32 %v357, %v489
        %v502 = vmul.f32 %v358, %v489
        %v503 = vmul.f32 %v359, %v489
        %v504 = vmul.f32 %v360, %v489
        %v505 = vmul.f32 %v361, %v489
        %v506 = vadd.f32 %v364, %v382
        %v507 = vadd.f32 %v365, %v383
        %v508 = vadd.f32 %v366, %v384
        %v509 = vadd.f32 %v367, %v385
        %v510 = vadd.f32 %v368, %v386
        %v511 = vadd.f32 %v369, %v387
        %v512 = vadd.f32 %v370, %v388
        %v513 = vadd.f32 %v371, %v389
        %v514 = vadd.f32 %v372, %v390
        %v515 = vadd.f32 %v373, %v391
        %v516 = vadd.f32 %v374, %v392
        %v517 = vadd.f32 %v375, %v393
        %v518 = vadd.f32 %v376, %v394
        %v519 = vadd.f32 %v377, %v395
        %v520 = vadd.f32 %v378, %v396
        %v521 = vadd.f32 %v379, %v397
        %v522 = vadd.f32 %v506, %v400
        %v523 = vadd.f32 %v507, %v401
        %v524 = vadd.f32 %v508, %v402
        %v525 = vadd.f32 %v509, %v403
        %v526 = vadd.f32 %v510, %v404
        %v527 = vadd.f32 %v511, %v405
        %v528 = vadd.f32 %v512, %v406
        %v529 = vadd.f32 %v513, %v407
        %v530 = vadd.f32 %v514, %v408
        %v531 = vadd.f32 %v515, %v409
        %v532 = vadd.f32 %v516, %v410
        %v533 = vadd.f32 %v517, %v411
        %v534 = vadd.f32 %v518, %v412
        %v535 = vadd.f32 %v519, %v413
        %v536 = vadd.f32 %v520, %v414
        %v537 = vadd.f32 %v521, %v415
        %v538 = vadd.f32 %v522, %v418
        %v539 = vadd.f32 %v523, %v419
        %v540 = vadd.f32 %v524, %v420
        %v541 = vadd.f32 %v525, %v421
        %v542 = vadd.f32 %v526, %v422
        %v543 = vadd.f32 %v527, %v423
        %v544 = vadd.f32 %v528, %v424
        %v545 = vadd.f32 %v529, %v425
        %v546 = vadd.f32 %v530, %v426
        %v547 = vadd.f32 %v531, %v427
        %v548 = vadd.f32 %v532, %v428
        %v549 = vadd.f32 %v533, %v429
        %v550 = vadd.f32 %v534, %v430
        %v551 = vadd.f32 %v535, %v431
        %v552 = vadd.f32 %v536, %v432
        %v553 = vadd.f32 %v537, %v433
        %v554 = vadd.f32 %v538, %v436
        %v555 = vadd.f32 %v539, %v437
        %v556 = vadd.f32 %v540, %v438
        %v557 = vadd.f32 %v541, %v439
        %v558 = vadd.f32 %v542, %v440
        %v559 = vadd.f32 %v543, %v441
        %v560 = vadd.f32 %v544, %v442
        %v561 = vadd.f32 %v545, %v443
        %v562 = vadd.f32 %v546, %v444
        %v563 = vadd.f32 %v547, %v445
        %v564 = vadd.f32 %v548, %v446
        %v565 = vadd.f32 %v549, %v447
        %v566 = vadd.f32 %v550, %v448
        %v567 = vadd.f32 %v551, %v449
        %v568 = vadd.f32 %v552, %v450
        %v569 = vadd.f32 %v553, %v451
        %v570 = vadd.f32 %v554, %v454
        %v571 = vadd.f32 %v555, %v455
        %v572 = vadd.f32 %v556, %v456
        %v573 = vadd.f32 %v557, %v457
        %v574 = vadd.f32 %v558, %v458
        %v575 = vadd.f32 %v559, %v459
        %v576 = vadd.f32 %v560, %v460
        %v577 = vadd.f32 %v561, %v461
        %v578 = vadd.f32 %v562, %v462
        %v579 = vadd.f32 %v563, %v463
        %v580 = vadd.f32 %v564, %v464
        %v581 = vadd.f32 %v565, %v465
        %v582 = vadd.f32 %v566, %v466
        %v583 = vadd.f32 %v567, %v467
        %v584 = vadd.f32 %v568, %v468
        %v585 = vadd.f32 %v569, %v469
        %v586 = vadd.f32 %v570, %v472
        %v587 = vadd.f32 %v571, %v473
        %v588 = vadd.f32 %v572, %v474
        %v589 = vadd.f32 %v573, %v475
        %v590 = vadd.f32 %v574, %v476
        %v591 = vadd.f32 %v575, %v477
        %v592 = vadd.f32 %v576, %v478
        %v593 = vadd.f32 %v577, %v479
        %v594 = vadd.f32 %v578, %v480
        %v595 = vadd.f32 %v579, %v481
        %v596 = vadd.f32 %v580, %v482
        %v597 = vadd.f32 %v581, %v483
        %v598 = vadd.f32 %v582, %v484
        %v599 = vadd.f32 %v583, %v485
        %v600 = vadd.f32 %v584, %v486
        %v601 = vadd.f32 %v585, %v487
        %v602 = vadd.f32 %v586, %v490
        %v603 = vadd.f32 %v587, %v491
        %v604 = vadd.f32 %v588, %v492
        %v605 = vadd.f32 %v589, %v493
        %v606 = vadd.f32 %v590, %v494
        %v607 = vadd.f32 %v591, %v495
        %v608 = vadd.f32 %v592, %v496
        %v609 = vadd.f32 %v593, %v497
        %v610 = vadd.f32 %v594, %v498
        %v611 = vadd.f32 %v595, %v499
        %v612 = vadd.f32 %v596, %v500
        %v613 = vadd.f32 %v597, %v501
        %v614 = vadd.f32 %v598, %v502
        %v615 = vadd.f32 %v599, %v503
        %v616 = vadd.f32 %v600, %v504
        %v617 = vadd.f32 %v601, %v505
        %s618 = sld [smem:[#allocation5]]
        %v619 = vstv %s618
        %v620 = vadd.f32 %v602, %v619
        %v621 = vadd.f32 %v603, %v619
        %v622 = vadd.f32 %v604, %v619
        %v623 = vadd.f32 %v605, %v619
        %v624 = vadd.f32 %v606, %v619
        %v625 = vadd.f32 %v607, %v619
        %v626 = vadd.f32 %v608, %v619
        %v627 = vadd.f32 %v609, %v619
        %v628 = vadd.f32 %v610, %v619
        %v629 = vadd.f32 %v611, %v619
        %v630 = vadd.f32 %v612, %v619
        %v631 = vadd.f32 %v613, %v619
        %v632 = vadd.f32 %v614, %v619
        %v633 = vadd.f32 %v615, %v619
        %v634 = vadd.f32 %v616, %v619
        %v635 = vadd.f32 %v617, %v619
        %v636 = vtanh.pop %v620
        %v637 = vtanh.pop %v621
        %v638 = vtanh.pop %v622
        %v639 = vtanh.pop %v623
        %v640 = vtanh.pop %v624
        %v641 = vtanh.pop %v625
        %v642 = vtanh.pop %v626
        %v643 = vtanh.pop %v627
        %v644 = vtanh.pop %v628
        %v645 = vtanh.pop %v629
        %v646 = vtanh.pop %v630
        %v647 = vtanh.pop %v631
        %v648 = vtanh.pop %v632
        %v649 = vtanh.pop %v633
        %v650 = vtanh.pop %v634
        %v651 = vtanh.pop %v635
        %652 = vst [vmem:[%s215] sm:$0xff] %v636
        %653 = vst [vmem:[%s215 + $0x8] sm:$0xff] %v637
        %654 = vst [vmem:[%s215 + $0x10] sm:$0xff] %v638
        %655 = vst [vmem:[%s215 + $0x18] sm:$0xff] %v639
        %656 = vst [vmem:[%s215 + $0x20] sm:$0xff] %v640
        %657 = vst [vmem:[%s215 + $0x28] sm:$0xff] %v641
        %658 = vst [vmem:[%s215 + $0x30] sm:$0xff] %v642
        %659 = vst [vmem:[%s215 + $0x38] sm:$0xff] %v643
        %660 = vst [vmem:[%s215 + $0x40] sm:$0xff] %v644
        %661 = vst [vmem:[%s215 + $0x48] sm:$0xff] %v645
        %662 = vst [vmem:[%s215 + $0x50] sm:$0xff] %v646
        %663 = vst [vmem:[%s215 + $0x58] sm:$0xff] %v647
        %664 = vst [vmem:[%s215 + $0x60] sm:$0xff] %v648
        %665 = vst [vmem:[%s215 + $0x68] sm:$0xff] %v649
        %666 = vst [vmem:[%s215 + $0x70] sm:$0xff] %v650
        %667 = vst [vmem:[%s215 + $0x78] sm:$0xff] %v651
        %s668 = sld [smem:[#allocation2 + $0x8]]
        %v669 = vstv %s668
        %v670 = vmul.f32 %v227, %v669
        %v671 = vmul.f32 %v228, %v669
        %v672 = vmul.f32 %v229, %v669
        %v673 = vmul.f32 %v230, %v669
        %v674 = vmul.f32 %v231, %v669
        %v675 = vmul.f32 %v232, %v669
        %v676 = vmul.f32 %v233, %v669
        %v677 = vmul.f32 %v234, %v669
        %v678 = vmul.f32 %v235, %v669
        %v679 = vmul.f32 %v236, %v669
        %v680 = vmul.f32 %v237, %v669
        %v681 = vmul.f32 %v238, %v669
        %v682 = vmul.f32 %v239, %v669
        %v683 = vmul.f32 %v240, %v669
        %v684 = vmul.f32 %v241, %v669
        %v685 = vmul.f32 %v242, %v669
        %s686 = sld [smem:[#allocation2 + $0x9]]
        %v687 = vstv %s686
        %v688 = vmul.f32 %v244, %v687
        %v689 = vmul.f32 %v245, %v687
        %v690 = vmul.f32 %v246, %v687
        %v691 = vmul.f32 %v247, %v687
        %v692 = vmul.f32 %v248, %v687
        %v693 = vmul.f32 %v249, %v687
        %v694 = vmul.f32 %v250, %v687
        %v695 = vmul.f32 %v251, %v687
        %v696 = vmul.f32 %v252, %v687
        %v697 = vmul.f32 %v253, %v687
        %v698 = vmul.f32 %v254, %v687
        %v699 = vmul.f32 %v255, %v687
        %v700 = vmul.f32 %v256, %v687
        %v701 = vmul.f32 %v257, %v687
        %v702 = vmul.f32 %v258, %v687
        %v703 = vmul.f32 %v259, %v687
        %s704 = sld [smem:[#allocation2 + $0xa]]
        %v705 = vstv %s704
        %v706 = vmul.f32 %v261, %v705
        %v707 = vmul.f32 %v262, %v705
        %v708 = vmul.f32 %v263, %v705
        %v709 = vmul.f32 %v264, %v705
        %v710 = vmul.f32 %v265, %v705
        %v711 = vmul.f32 %v266, %v705
        %v712 = vmul.f32 %v267, %v705
        %v713 = vmul.f32 %v268, %v705
        %v714 = vmul.f32 %v269, %v705
        %v715 = vmul.f32 %v270, %v705
        %v716 = vmul.f32 %v271, %v705
        %v717 = vmul.f32 %v272, %v705
        %v718 = vmul.f32 %v273, %v705
        %v719 = vmul.f32 %v274, %v705
        %v720 = vmul.f32 %v275, %v705
        %v721 = vmul.f32 %v276, %v705
        %s722 = sld [smem:[#allocation2 + $0xb]]
        %v723 = vstv %s722
        %v724 = vmul.f32 %v278, %v723
        %v725 = vmul.f32 %v279, %v723
        %v726 = vmul.f32 %v280, %v723
        %v727 = vmul.f32 %v281, %v723
        %v728 = vmul.f32 %v282, %v723
        %v729 = vmul.f32 %v283, %v723
        %v730 = vmul.f32 %v284, %v723
        %v731 = vmul.f32 %v285, %v723
        %v732 = vmul.f32 %v286, %v723
        %v733 = vmul.f32 %v287, %v723
        %v734 = vmul.f32 %v288, %v723
        %v735 = vmul.f32 %v289, %v723
        %v736 = vmul.f32 %v290, %v723
        %v737 = vmul.f32 %v291, %v723
        %v738 = vmul.f32 %v292, %v723
        %v739 = vmul.f32 %v293, %v723
        %s740 = sld [smem:[#allocation2 + $0xc]]
        %v741 = vstv %s740
        %v742 = vmul.f32 %v295, %v741
        %v743 = vmul.f32 %v296, %v741
        %v744 = vmul.f32 %v297, %v741
        %v745 = vmul.f32 %v298, %v741
        %v746 = vmul.f32 %v299, %v741
        %v747 = vmul.f32 %v300, %v741
        %v748 = vmul.f32 %v301, %v741
        %v749 = vmul.f32 %v302, %v741
        %v750 = vmul.f32 %v303, %v741
        %v751 = vmul.f32 %v304, %v741
        %v752 = vmul.f32 %v305, %v741
        %v753 = vmul.f32 %v306, %v741
        %v754 = vmul.f32 %v307, %v741
        %v755 = vmul.f32 %v308, %v741
        %v756 = vmul.f32 %v309, %v741
        %v757 = vmul.f32 %v310, %v741
        %s758 = sld [smem:[#allocation2 + $0xd]]
        %v759 = vstv %s758
        %v760 = vmul.f32 %v312, %v759
        %v761 = vmul.f32 %v313, %v759
        %v762 = vmul.f32 %v314, %v759
        %v763 = vmul.f32 %v315, %v759
        %v764 = vmul.f32 %v316, %v759
        %v765 = vmul.f32 %v317, %v759
        %v766 = vmul.f32 %v318, %v759
        %v767 = vmul.f32 %v319, %v759
        %v768 = vmul.f32 %v320, %v759
        %v769 = vmul.f32 %v321, %v759
        %v770 = vmul.f32 %v322, %v759
        %v771 = vmul.f32 %v323, %v759
        %v772 = vmul.f32 %v324, %v759
        %v773 = vmul.f32 %v325, %v759
        %v774 = vmul.f32 %v326, %v759
        %v775 = vmul.f32 %v327, %v759
        %s776 = sld [smem:[#allocation2 + $0xe]]
        %v777 = vstv %s776
        %v778 = vmul.f32 %v329, %v777
        %v779 = vmul.f32 %v330, %v777
        %v780 = vmul.f32 %v331, %v777
        %v781 = vmul.f32 %v332, %v777
        %v782 = vmul.f32 %v333, %v777
        %v783 = vmul.f32 %v334, %v777
        %v784 = vmul.f32 %v335, %v777
        %v785 = vmul.f32 %v336, %v777
        %v786 = vmul.f32 %v337, %v777
        %v787 = vmul.f32 %v338, %v777
        %v788 = vmul.f32 %v339, %v777
        %v789 = vmul.f32 %v340, %v777
        %v790 = vmul.f32 %v341, %v777
        %v791 = vmul.f32 %v342, %v777
        %v792 = vmul.f32 %v343, %v777
        %v793 = vmul.f32 %v344, %v777
        %s794 = sld [smem:[#allocation2 + $0xf]]
        %v795 = vstv %s794
        %v796 = vmul.f32 %v346, %v795
        %v797 = vmul.f32 %v347, %v795
        %v798 = vmul.f32 %v348, %v795
        %v799 = vmul.f32 %v349, %v795
        %v800 = vmul.f32 %v350, %v795
        %v801 = vmul.f32 %v351, %v795
        %v802 = vmul.f32 %v352, %v795
        %v803 = vmul.f32 %v353, %v795
        %v804 = vmul.f32 %v354, %v795
        %v805 = vmul.f32 %v355, %v795
        %v806 = vmul.f32 %v356, %v795
        %v807 = vmul.f32 %v357, %v795
        %v808 = vmul.f32 %v358, %v795
        %v809 = vmul.f32 %v359, %v795
        %v810 = vmul.f32 %v360, %v795
        %v811 = vmul.f32 %v361, %v795
        %v812 = vadd.f32 %v670, %v688
        %v813 = vadd.f32 %v671, %v689
        %v814 = vadd.f32 %v672, %v690
        %v815 = vadd.f32 %v673, %v691
        %v816 = vadd.f32 %v674, %v692
        %v817 = vadd.f32 %v675, %v693
        %v818 = vadd.f32 %v676, %v694
        %v819 = vadd.f32 %v677, %v695
        %v820 = vadd.f32 %v678, %v696
        %v821 = vadd.f32 %v679, %v697
        %v822 = vadd.f32 %v680, %v698
        %v823 = vadd.f32 %v681, %v699
        %v824 = vadd.f32 %v682, %v700
        %v825 = vadd.f32 %v683, %v701
        %v826 = vadd.f32 %v684, %v702
        %v827 = vadd.f32 %v685, %v703
        %v828 = vadd.f32 %v812, %v706
        %v829 = vadd.f32 %v813, %v707
        %v830 = vadd.f32 %v814, %v708
        %v831 = vadd.f32 %v815, %v709
        %v832 = vadd.f32 %v816, %v710
        %v833 = vadd.f32 %v817, %v711
        %v834 = vadd.f32 %v818, %v712
        %v835 = vadd.f32 %v819, %v713
        %v836 = vadd.f32 %v820, %v714
        %v837 = vadd.f32 %v821, %v715
        %v838 = vadd.f32 %v822, %v716
        %v839 = vadd.f32 %v823, %v717
        %v840 = vadd.f32 %v824, %v718
        %v841 = vadd.f32 %v825, %v719
        %v842 = vadd.f32 %v826, %v720
        %v843 = vadd.f32 %v827, %v721
        %v844 = vadd.f32 %v828, %v724
        %v845 = vadd.f32 %v829, %v725
        %v846 = vadd.f32 %v830, %v726
        %v847 = vadd.f32 %v831, %v727
        %v848 = vadd.f32 %v832, %v728
        %v849 = vadd.f32 %v833, %v729
        %v850 = vadd.f32 %v834, %v730
        %v851 = vadd.f32 %v835, %v731
        %v852 = vadd.f32 %v836, %v732
        %v853 = vadd.f32 %v837, %v733
        %v854 = vadd.f32 %v838, %v734
        %v855 = vadd.f32 %v839, %v735
        %v856 = vadd.f32 %v840, %v736
        %v857 = vadd.f32 %v841, %v737
        %v858 = vadd.f32 %v842, %v738
        %v859 = vadd.f32 %v843, %v739
        %v860 = vadd.f32 %v844, %v742
        %v861 = vadd.f32 %v845, %v743
        %v862 = vadd.f32 %v846, %v744
        %v863 = vadd.f32 %v847, %v745
        %v864 = vadd.f32 %v848, %v746
        %v865 = vadd.f32 %v849, %v747
        %v866 = vadd.f32 %v850, %v748
        %v867 = vadd.f32 %v851, %v749
        %v868 = vadd.f32 %v852, %v750
        %v869 = vadd.f32 %v853, %v751
        %v870 = vadd.f32 %v854, %v752
        %v871 = vadd.f32 %v855, %v753
        %v872 = vadd.f32 %v856, %v754
        %v873 = vadd.f32 %v857, %v755
        %v874 = vadd.f32 %v858, %v756
        %v875 = vadd.f32 %v859, %v757
        %v876 = vadd.f32 %v860, %v760
        %v877 = vadd.f32 %v861, %v761
        %v878 = vadd.f32 %v862, %v762
        %v879 = vadd.f32 %v863, %v763
        %v880 = vadd.f32 %v864, %v764
        %v881 = vadd.f32 %v865, %v765
        %v882 = vadd.f32 %v866, %v766
        %v883 = vadd.f32 %v867, %v767
        %v884 = vadd.f32 %v868, %v768
        %v885 = vadd.f32 %v869, %v769
        %v886 = vadd.f32 %v870, %v770
        %v887 = vadd.f32 %v871, %v771
        %v888 = vadd.f32 %v872, %v772
        %v889 = vadd.f32 %v873, %v773
        %v890 = vadd.f32 %v874, %v774
        %v891 = vadd.f32 %v875, %v775
        %v892 = vadd.f32 %v876, %v778
        %v893 = vadd.f32 %v877, %v779
        %v894 = vadd.f32 %v878, %v780
        %v895 = vadd.f32 %v879, %v781
        %v896 = vadd.f32 %v880, %v782
        %v897 = vadd.f32 %v881, %v783
        %v898 = vadd.f32 %v882, %v784
        %v899 = vadd.f32 %v883, %v785
        %v900 = vadd.f32 %v884, %v786
        %v901 = vadd.f32 %v885, %v787
        %v902 = vadd.f32 %v886, %v788
        %v903 = vadd.f32 %v887, %v789
        %v904 = vadd.f32 %v888, %v790
        %v905 = vadd.f32 %v889, %v791
        %v906 = vadd.f32 %v890, %v792
        %v907 = vadd.f32 %v891, %v793
        %v908 = vadd.f32 %v892, %v796
        %v909 = vadd.f32 %v893, %v797
        %v910 = vadd.f32 %v894, %v798
        %v911 = vadd.f32 %v895, %v799
        %v912 = vadd.f32 %v896, %v800
        %v913 = vadd.f32 %v897, %v801
        %v914 = vadd.f32 %v898, %v802
        %v915 = vadd.f32 %v899, %v803
        %v916 = vadd.f32 %v900, %v804
        %v917 = vadd.f32 %v901, %v805
        %v918 = vadd.f32 %v902, %v806
        %v919 = vadd.f32 %v903, %v807
        %v920 = vadd.f32 %v904, %v808
        %v921 = vadd.f32 %v905, %v809
        %v922 = vadd.f32 %v906, %v810
        %v923 = vadd.f32 %v907, %v811
        %s924 = sld [smem:[#allocation5 + $0x1]]
        %v925 = vstv %s924
        %v926 = vadd.f32 %v908, %v925
        %v927 = vadd.f32 %v909, %v925
        %v928 = vadd.f32 %v910, %v925
        %v929 = vadd.f32 %v911, %v925
        %v930 = vadd.f32 %v912, %v925
        %v931 = vadd.f32 %v913, %v925
        %v932 = vadd.f32 %v914, %v925
        %v933 = vadd.f32 %v915, %v925
        %v934 = vadd.f32 %v916, %v925
        %v935 = vadd.f32 %v917, %v925
        %v936 = vadd.f32 %v918, %v925
        %v937 = vadd.f32 %v919, %v925
        %v938 = vadd.f32 %v920, %v925
        %v939 = vadd.f32 %v921, %v925
        %v940 = vadd.f32 %v922, %v925
        %v941 = vadd.f32 %v923, %v925
        %v942 = vtanh.pop %v926
        %v943 = vtanh.pop %v927
        %v944 = vtanh.pop %v928
        %v945 = vtanh.pop %v929
        %v946 = vtanh.pop %v930
        %v947 = vtanh.pop %v931
        %v948 = vtanh.pop %v932
        %v949 = vtanh.pop %v933
        %v950 = vtanh.pop %v934
        %v951 = vtanh.pop %v935
        %v952 = vtanh.pop %v936
        %v953 = vtanh.pop %v937
        %v954 = vtanh.pop %v938
        %v955 = vtanh.pop %v939
        %v956 = vtanh.pop %v940
        %v957 = vtanh.pop %v941
        %s958 = scalar_lea.vmem %s215, 128 [#allocation7]
        %959 = vst [vmem:[%s958] sm:$0xff] %v942
        %960 = vst [vmem:[%s958 + $0x8] sm:$0xff] %v943
        %961 = vst [vmem:[%s958 + $0x10] sm:$0xff] %v944
        %962 = vst [vmem:[%s958 + $0x18] sm:$0xff] %v945
        %963 = vst [vmem:[%s958 + $0x20] sm:$0xff] %v946
        %964 = vst [vmem:[%s958 + $0x28] sm:$0xff] %v947
        %965 = vst [vmem:[%s958 + $0x30] sm:$0xff] %v948
        %966 = vst [vmem:[%s958 + $0x38] sm:$0xff] %v949
        %967 = vst [vmem:[%s958 + $0x40] sm:$0xff] %v950
        %968 = vst [vmem:[%s958 + $0x48] sm:$0xff] %v951
        %969 = vst [vmem:[%s958 + $0x50] sm:$0xff] %v952
        %970 = vst [vmem:[%s958 + $0x58] sm:$0xff] %v953
        %971 = vst [vmem:[%s958 + $0x60] sm:$0xff] %v954
        %972 = vst [vmem:[%s958 + $0x68] sm:$0xff] %v955
        %973 = vst [vmem:[%s958 + $0x70] sm:$0xff] %v956
        %974 = vst [vmem:[%s958 + $0x78] sm:$0xff] %v957
        %s975 = sld [smem:[#allocation2 + $0x10]]
        %v976 = vstv %s975
        %v977 = vmul.f32 %v227, %v976
        %v978 = vmul.f32 %v228, %v976
        %v979 = vmul.f32 %v229, %v976
        %v980 = vmul.f32 %v230, %v976
        %v981 = vmul.f32 %v231, %v976
        %v982 = vmul.f32 %v232, %v976
        %v983 = vmul.f32 %v233, %v976
        %v984 = vmul.f32 %v234, %v976
        %v985 = vmul.f32 %v235, %v976
        %v986 = vmul.f32 %v236, %v976
        %v987 = vmul.f32 %v237, %v976
        %v988 = vmul.f32 %v238, %v976
        %v989 = vmul.f32 %v239, %v976
        %v990 = vmul.f32 %v240, %v976
        %v991 = vmul.f32 %v241, %v976
        %v992 = vmul.f32 %v242, %v976
        %s993 = sld [smem:[#allocation2 + $0x11]]
        %v994 = vstv %s993
        %v995 = vmul.f32 %v244, %v994
        %v996 = vmul.f32 %v245, %v994
        %v997 = vmul.f32 %v246, %v994
        %v998 = vmul.f32 %v247, %v994
        %v999 = vmul.f32 %v248, %v994
        %v1000 = vmul.f32 %v249, %v994
        %v1001 = vmul.f32 %v250, %v994
        %v1002 = vmul.f32 %v251, %v994
        %v1003 = vmul.f32 %v252, %v994
        %v1004 = vmul.f32 %v253, %v994
        %v1005 = vmul.f32 %v254, %v994
        %v1006 = vmul.f32 %v255, %v994
        %v1007 = vmul.f32 %v256, %v994
        %v1008 = vmul.f32 %v257, %v994
        %v1009 = vmul.f32 %v258, %v994
        %v1010 = vmul.f32 %v259, %v994
        %s1011 = sld [smem:[#allocation2 + $0x12]]
        %v1012 = vstv %s1011
        %v1013 = vmul.f32 %v261, %v1012
        %v1014 = vmul.f32 %v262, %v1012
        %v1015 = vmul.f32 %v263, %v1012
        %v1016 = vmul.f32 %v264, %v1012
        %v1017 = vmul.f32 %v265, %v1012
        %v1018 = vmul.f32 %v266, %v1012
        %v1019 = vmul.f32 %v267, %v1012
        %v1020 = vmul.f32 %v268, %v1012
        %v1021 = vmul.f32 %v269, %v1012
        %v1022 = vmul.f32 %v270, %v1012
        %v1023 = vmul.f32 %v271, %v1012
        %v1024 = vmul.f32 %v272, %v1012
        %v1025 = vmul.f32 %v273, %v1012
        %v1026 = vmul.f32 %v274, %v1012
        %v1027 = vmul.f32 %v275, %v1012
        %v1028 = vmul.f32 %v276, %v1012
        %s1029 = sld [smem:[#allocation2 + $0x13]]
        %v1030 = vstv %s1029
        %v1031 = vmul.f32 %v278, %v1030
        %v1032 = vmul.f32 %v279, %v1030
        %v1033 = vmul.f32 %v280, %v1030
        %v1034 = vmul.f32 %v281, %v1030
        %v1035 = vmul.f32 %v282, %v1030
        %v1036 = vmul.f32 %v283, %v1030
        %v1037 = vmul.f32 %v284, %v1030
        %v1038 = vmul.f32 %v285, %v1030
        %v1039 = vmul.f32 %v286, %v1030
        %v1040 = vmul.f32 %v287, %v1030
        %v1041 = vmul.f32 %v288, %v1030
        %v1042 = vmul.f32 %v289, %v1030
        %v1043 = vmul.f32 %v290, %v1030
        %v1044 = vmul.f32 %v291, %v1030
        %v1045 = vmul.f32 %v292, %v1030
        %v1046 = vmul.f32 %v293, %v1030
        %s1047 = sld [smem:[#allocation2 + $0x14]]
        %v1048 = vstv %s1047
        %v1049 = vmul.f32 %v295, %v1048
        %v1050 = vmul.f32 %v296, %v1048
        %v1051 = vmul.f32 %v297, %v1048
        %v1052 = vmul.f32 %v298, %v1048
        %v1053 = vmul.f32 %v299, %v1048
        %v1054 = vmul.f32 %v300, %v1048
        %v1055 = vmul.f32 %v301, %v1048
        %v1056 = vmul.f32 %v302, %v1048
        %v1057 = vmul.f32 %v303, %v1048
        %v1058 = vmul.f32 %v304, %v1048
        %v1059 = vmul.f32 %v305, %v1048
        %v1060 = vmul.f32 %v306, %v1048
        %v1061 = vmul.f32 %v307, %v1048
        %v1062 = vmul.f32 %v308, %v1048
        %v1063 = vmul.f32 %v309, %v1048
        %v1064 = vmul.f32 %v310, %v1048
        %s1065 = sld [smem:[#allocation2 + $0x15]]
        %v1066 = vstv %s1065
        %v1067 = vmul.f32 %v312, %v1066
        %v1068 = vmul.f32 %v313, %v1066
        %v1069 = vmul.f32 %v314, %v1066
        %v1070 = vmul.f32 %v315, %v1066
        %v1071 = vmul.f32 %v316, %v1066
        %v1072 = vmul.f32 %v317, %v1066
        %v1073 = vmul.f32 %v318, %v1066
        %v1074 = vmul.f32 %v319, %v1066
        %v1075 = vmul.f32 %v320, %v1066
        %v1076 = vmul.f32 %v321, %v1066
        %v1077 = vmul.f32 %v322, %v1066
        %v1078 = vmul.f32 %v323, %v1066
        %v1079 = vmul.f32 %v324, %v1066
        %v1080 = vmul.f32 %v325, %v1066
        %v1081 = vmul.f32 %v326, %v1066
        %v1082 = vmul.f32 %v327, %v1066
        %s1083 = sld [smem:[#allocation2 + $0x16]]
        %v1084 = vstv %s1083
        %v1085 = vmul.f32 %v329, %v1084
        %v1086 = vmul.f32 %v330, %v1084
        %v1087 = vmul.f32 %v331, %v1084
        %v1088 = vmul.f32 %v332, %v1084
        %v1089 = vmul.f32 %v333, %v1084
        %v1090 = vmul.f32 %v334, %v1084
        %v1091 = vmul.f32 %v335, %v1084
        %v1092 = vmul.f32 %v336, %v1084
        %v1093 = vmul.f32 %v337, %v1084
        %v1094 = vmul.f32 %v338, %v1084
        %v1095 = vmul.f32 %v339, %v1084
        %v1096 = vmul.f32 %v340, %v1084
        %v1097 = vmul.f32 %v341, %v1084
        %v1098 = vmul.f32 %v342, %v1084
        %v1099 = vmul.f32 %v343, %v1084
        %v1100 = vmul.f32 %v344, %v1084
        %s1101 = sld [smem:[#allocation2 + $0x17]]
        %v1102 = vstv %s1101
        %v1103 = vmul.f32 %v346, %v1102
        %v1104 = vmul.f32 %v347, %v1102
        %v1105 = vmul.f32 %v348, %v1102
        %v1106 = vmul.f32 %v349, %v1102
        %v1107 = vmul.f32 %v350, %v1102
        %v1108 = vmul.f32 %v351, %v1102
        %v1109 = vmul.f32 %v352, %v1102
        %v1110 = vmul.f32 %v353, %v1102
        %v1111 = vmul.f32 %v354, %v1102
        %v1112 = vmul.f32 %v355, %v1102
        %v1113 = vmul.f32 %v356, %v1102
        %v1114 = vmul.f32 %v357, %v1102
        %v1115 = vmul.f32 %v358, %v1102
        %v1116 = vmul.f32 %v359, %v1102
        %v1117 = vmul.f32 %v360, %v1102
        %v1118 = vmul.f32 %v361, %v1102
        %v1119 = vadd.f32 %v977, %v995
        %v1120 = vadd.f32 %v978, %v996
        %v1121 = vadd.f32 %v979, %v997
        %v1122 = vadd.f32 %v980, %v998
        %v1123 = vadd.f32 %v981, %v999
        %v1124 = vadd.f32 %v982, %v1000
        %v1125 = vadd.f32 %v983, %v1001
        %v1126 = vadd.f32 %v984, %v1002
        %v1127 = vadd.f32 %v985, %v1003
        %v1128 = vadd.f32 %v986, %v1004
        %v1129 = vadd.f32 %v987, %v1005
        %v1130 = vadd.f32 %v988, %v1006
        %v1131 = vadd.f32 %v989, %v1007
        %v1132 = vadd.f32 %v990, %v1008
        %v1133 = vadd.f32 %v991, %v1009
        %v1134 = vadd.f32 %v992, %v1010
        %v1135 = vadd.f32 %v1119, %v1013
        %v1136 = vadd.f32 %v1120, %v1014
        %v1137 = vadd.f32 %v1121, %v1015
        %v1138 = vadd.f32 %v1122, %v1016
        %v1139 = vadd.f32 %v1123, %v1017
        %v1140 = vadd.f32 %v1124, %v1018
        %v1141 = vadd.f32 %v1125, %v1019
        %v1142 = vadd.f32 %v1126, %v1020
        %v1143 = vadd.f32 %v1127, %v1021
        %v1144 = vadd.f32 %v1128, %v1022
        %v1145 = vadd.f32 %v1129, %v1023
        %v1146 = vadd.f32 %v1130, %v1024
        %v1147 = vadd.f32 %v1131, %v1025
        %v1148 = vadd.f32 %v1132, %v1026
        %v1149 = vadd.f32 %v1133, %v1027
        %v1150 = vadd.f32 %v1134, %v1028
        %v1151 = vadd.f32 %v1135, %v1031
        %v1152 = vadd.f32 %v1136, %v1032
        %v1153 = vadd.f32 %v1137, %v1033
        %v1154 = vadd.f32 %v1138, %v1034
        %v1155 = vadd.f32 %v1139, %v1035
        %v1156 = vadd.f32 %v1140, %v1036
        %v1157 = vadd.f32 %v1141, %v1037
        %v1158 = vadd.f32 %v1142, %v1038
        %v1159 = vadd.f32 %v1143, %v1039
        %v1160 = vadd.f32 %v1144, %v1040
        %v1161 = vadd.f32 %v1145, %v1041
        %v1162 = vadd.f32 %v1146, %v1042
        %v1163 = vadd.f32 %v1147, %v1043
        %v1164 = vadd.f32 %v1148, %v1044
        %v1165 = vadd.f32 %v1149, %v1045
        %v1166 = vadd.f32 %v1150, %v1046
        %v1167 = vadd.f32 %v1151, %v1049
        %v1168 = vadd.f32 %v1152, %v1050
        %v1169 = vadd.f32 %v1153, %v1051
        %v1170 = vadd.f32 %v1154, %v1052
        %v1171 = vadd.f32 %v1155, %v1053
        %v1172 = vadd.f32 %v1156, %v1054
        %v1173 = vadd.f32 %v1157, %v1055
        %v1174 = vadd.f32 %v1158, %v1056
        %v1175 = vadd.f32 %v1159, %v1057
        %v1176 = vadd.f32 %v1160, %v1058
        %v1177 = vadd.f32 %v1161, %v1059
        %v1178 = vadd.f32 %v1162, %v1060
        %v1179 = vadd.f32 %v1163, %v1061
        %v1180 = vadd.f32 %v1164, %v1062
        %v1181 = vadd.f32 %v1165, %v1063
        %v1182 = vadd.f32 %v1166, %v1064
        %v1183 = vadd.f32 %v1167, %v1067
        %v1184 = vadd.f32 %v1168, %v1068
        %v1185 = vadd.f32 %v1169, %v1069
        %v1186 = vadd.f32 %v1170, %v1070
        %v1187 = vadd.f32 %v1171, %v1071
        %v1188 = vadd.f32 %v1172, %v1072
        %v1189 = vadd.f32 %v1173, %v1073
        %v1190 = vadd.f32 %v1174, %v1074
        %v1191 = vadd.f32 %v1175, %v1075
        %v1192 = vadd.f32 %v1176, %v1076
        %v1193 = vadd.f32 %v1177, %v1077
        %v1194 = vadd.f32 %v1178, %v1078
        %v1195 = vadd.f32 %v1179, %v1079
        %v1196 = vadd.f32 %v1180, %v1080
        %v1197 = vadd.f32 %v1181, %v1081
        %v1198 = vadd.f32 %v1182, %v1082
        %v1199 = vadd.f32 %v1183, %v1085
        %v1200 = vadd.f32 %v1184, %v1086
        %v1201 = vadd.f32 %v1185, %v1087
        %v1202 = vadd.f32 %v1186, %v1088
        %v1203 = vadd.f32 %v1187, %v1089
        %v1204 = vadd.f32 %v1188, %v1090
        %v1205 = vadd.f32 %v1189, %v1091
        %v1206 = vadd.f32 %v1190, %v1092
        %v1207 = vadd.f32 %v1191, %v1093
        %v1208 = vadd.f32 %v1192, %v1094
        %v1209 = vadd.f32 %v1193, %v1095
        %v1210 = vadd.f32 %v1194, %v1096
        %v1211 = vadd.f32 %v1195, %v1097
        %v1212 = vadd.f32 %v1196, %v1098
        %v1213 = vadd.f32 %v1197, %v1099
        %v1214 = vadd.f32 %v1198, %v1100
        %v1215 = vadd.f32 %v1199, %v1103
        %v1216 = vadd.f32 %v1200, %v1104
        %v1217 = vadd.f32 %v1201, %v1105
        %v1218 = vadd.f32 %v1202, %v1106
        %v1219 = vadd.f32 %v1203, %v1107
        %v1220 = vadd.f32 %v1204, %v1108
        %v1221 = vadd.f32 %v1205, %v1109
        %v1222 = vadd.f32 %v1206, %v1110
        %v1223 = vadd.f32 %v1207, %v1111
        %v1224 = vadd.f32 %v1208, %v1112
        %v1225 = vadd.f32 %v1209, %v1113
        %v1226 = vadd.f32 %v1210, %v1114
        %v1227 = vadd.f32 %v1211, %v1115
        %v1228 = vadd.f32 %v1212, %v1116
        %v1229 = vadd.f32 %v1213, %v1117
        %v1230 = vadd.f32 %v1214, %v1118
        %s1231 = sld [smem:[#allocation5 + $0x2]]
        %v1232 = vstv %s1231
        %v1233 = vadd.f32 %v1215, %v1232
        %v1234 = vadd.f32 %v1216, %v1232
        %v1235 = vadd.f32 %v1217, %v1232
        %v1236 = vadd.f32 %v1218, %v1232
        %v1237 = vadd.f32 %v1219, %v1232
        %v1238 = vadd.f32 %v1220, %v1232
        %v1239 = vadd.f32 %v1221, %v1232
        %v1240 = vadd.f32 %v1222, %v1232
        %v1241 = vadd.f32 %v1223, %v1232
        %v1242 = vadd.f32 %v1224, %v1232
        %v1243 = vadd.f32 %v1225, %v1232
        %v1244 = vadd.f32 %v1226, %v1232
        %v1245 = vadd.f32 %v1227, %v1232
        %v1246 = vadd.f32 %v1228, %v1232
        %v1247 = vadd.f32 %v1229, %v1232
        %v1248 = vadd.f32 %v1230, %v1232
        %v1249 = vtanh.pop %v1233
        %v1250 = vtanh.pop %v1234
        %v1251 = vtanh.pop %v1235
        %v1252 = vtanh.pop %v1236
        %v1253 = vtanh.pop %v1237
        %v1254 = vtanh.pop %v1238
        %v1255 = vtanh.pop %v1239
        %v1256 = vtanh.pop %v1240
        %v1257 = vtanh.pop %v1241
        %v1258 = vtanh.pop %v1242
        %v1259 = vtanh.pop %v1243
        %v1260 = vtanh.pop %v1244
        %v1261 = vtanh.pop %v1245
        %v1262 = vtanh.pop %v1246
        %v1263 = vtanh.pop %v1247
        %v1264 = vtanh.pop %v1248
        %s1265 = scalar_lea.vmem %s215, 256 [#allocation7]
        %1266 = vst [vmem:[%s1265] sm:$0xff] %v1249
        %1267 = vst [vmem:[%s1265 + $0x8] sm:$0xff] %v1250
        %1268 = vst [vmem:[%s1265 + $0x10] sm:$0xff] %v1251
        %1269 = vst [vmem:[%s1265 + $0x18] sm:$0xff] %v1252
        %1270 = vst [vmem:[%s1265 + $0x20] sm:$0xff] %v1253
        %1271 = vst [vmem:[%s1265 + $0x28] sm:$0xff] %v1254
        %1272 = vst [vmem:[%s1265 + $0x30] sm:$0xff] %v1255
        %1273 = vst [vmem:[%s1265 + $0x38] sm:$0xff] %v1256
        %1274 = vst [vmem:[%s1265 + $0x40] sm:$0xff] %v1257
        %1275 = vst [vmem:[%s1265 + $0x48] sm:$0xff] %v1258
        %1276 = vst [vmem:[%s1265 + $0x50] sm:$0xff] %v1259
        %1277 = vst [vmem:[%s1265 + $0x58] sm:$0xff] %v1260
        %1278 = vst [vmem:[%s1265 + $0x60] sm:$0xff] %v1261
        %1279 = vst [vmem:[%s1265 + $0x68] sm:$0xff] %v1262
        %1280 = vst [vmem:[%s1265 + $0x70] sm:$0xff] %v1263
        %1281 = vst [vmem:[%s1265 + $0x78] sm:$0xff] %v1264
        %s1282 = sand.u32 %s111, 1
        %s1283 = scalar_lea.sflag [#allocation3], %s1282
        %s1284 = sand.u32 %s111, 1
        %s1285 = smul.addr %s1284, 384
        %s1286 = scalar_lea.vmem [#allocation7], %s1285
        // Predicated region
        $region41: #{output_layer_forward.3} parent=31 // pred_check
          %p1287 = pneg %p121
        $region42: #{output_layer_forward.3} parent=31 // pred_check_branch
          %1289 = sbr.rel (%p1287) target = $region44
        $region43: #{output_layer_forward.3} parent=31 // pred_region
          %s1290 = smul.u32 16, %s24
          %s1292 = ssub.s32 6144, 6144
          %1293 = vsyncadd %s1283, %s1292
          %s1294 = smul.addr %s23, 48
          %s1295 = sadd.s32 %s1290, %s1294
          %s1296 = smul.addr %s1295, 128
          %s1297 = scalar_lea.hbm %s3, %s1296
          %s1298 = sshll.u32 %s1286, 4
          %s1299 = int_to_ptr.vmem [resolvable:$true] %s1298
          %1304 = dma.vmem_to_hbm [thread:$0]  %s1299, 6144, %s1297, %s1283, 128, 128, 8
        $region44: #{output_layer_forward.3} parent=31 // pred_fallthru
          _
      $region32: #{output_layer_forward.3} parent=5 // pred_fallthru
        _
      %p1305 = scmp.le.s32.totalorder 2, %s14
      // Predicated region
      $region45: #{output_layer_forward.3} parent=5 // pred_check
        %p1306 = pneg %p1305
      $region46: #{output_layer_forward.3} parent=5 // pred_check_branch
        %1308 = sbr.rel (%p1306) target = $region48
      $region47: #{output_layer_forward.3} parent=5 // pred_region
        %s1309 = ssub.s32 %s14, 2
        // Predicated region
        $region49: #{output_layer_forward.3} parent=47 // pred_check
          %p1310 = pneg %p127
        $region50: #{output_layer_forward.3} parent=47 // pred_check_branch
          %1312 = sbr.rel (%p1310) target = $region52
        $region51: #{output_layer_forward.3} parent=47 // pred_region
          %s1313 = sand.u32 %s112, 1
          %s1314 = scalar_lea.sflag [#allocation3], %s1313
          %s1315 = sand.u32 %s112, 1
          %s1316 = smul.addr %s1315, 384
          %s1317 = scalar_lea.vmem [#allocation7], %s1316
          %1318 = dma.done %s1314, 6144
        $region52: #{output_layer_forward.3} parent=47 // pred_fallthru
          _
      $region48: #{output_layer_forward.3} parent=5 // pred_fallthru
        _
    $region6: #{output_layer_forward.3} parent=1 // loop_footer
      %s18 = sadd.s32 1, %s14
    $region7: #{output_layer_forward.3} parent=1 // loop_footer_branch
      %13 = sbr.rel target = $region3
    $region8: #{output_layer_forward.3} parent=1 // loop_exit
      _
    %1319 = vsyncpa [#allocation3], 1
    %s1320 = scalar_lea.sflag [#allocation3], 1
    %1321 = vsyncpa %s1320, 1
    %1322 = vsyncpa [#allocation4], 1
    %s1323 = scalar_lea.sflag [#allocation4], 1
    %1324 = vsyncpa %s1323, 1
    %1325 = vsyncpa [#allocation6], 1

// kernel: output_layer_forward.2
$region0: #{output_layer_forward.2}
  #allocation0 [shape = 'u32[]', space=smem, size = 0x4, offset = 0x4, fixed_abs, tag = 'smem constant byte address 0x4 - core index']
  #allocation1 [shape = 'u32[144,128]{1,0:T(1,128)}', space=vmem, size = 0x12000, scoped, tag = 'internal scratch']
  #allocation13 [shape = 's32[]', space=sflag, size = 0x4, offset = 0, fixed_abs, tag = 'sflag constant byte address 0x0 - dummy sync flag']
  #allocation15 [shape = 's32[]', space=sflag, size = 0x4, offset = 0, fixed_abs, tag = 'sflag constant byte address 0x0 - dummy sync flag']
  %s0 = inlined_call_operand.hbm [shape: f32[2,4,128,128], index: 0, kind: input, shape index: {}, may-alias: {0,1,2}]
  %s1 = inlined_call_operand.hbm [shape: f32[2,4,128,128], index: 1, kind: input, shape index: {}, may-alias: {0,1,2}]
  %s2 = inlined_call_operand.hbm [shape: f32[2,4,128,128], index: 2, kind: input, shape index: {}, may-alias: {0,1,2}]
  %s3 = inlined_call_operand.vmem [shape: f32[108], index: 3, kind: input, shape index: {}]
  %s4 = inlined_call_operand.vmem [shape: f32[3], index: 4, kind: input, shape index: {}]
  %s5 = inlined_call_operand.hbm [shape: f32[2,3,128,128], index: 5, kind: output, shape index: {}]
  %s6 = sld [smem:[#allocation0]]
  $region73: #{output_layer_forward.2} parent=0
    _
  %s8 = ssub.s32 1, %s6
  %s9 = scalar_select 0, %s8, %s6
  $region1: #{output_layer_forward.2} parent=0
    #allocation2 [shape = 'u8[131072]{0}', space=vmem, size = 0x20000, scoped, tag = 'input window, operand 0']
    #allocation3 [shape = 's32[2]{0}', space=sflag, size = 0x8, scoped, tag = 'scoped memory for output_layer_forward.2']
    #allocation4 [shape = 's32[2]{0}', space=sflag, size = 0x8, scoped, tag = 'scoped memory for output_layer_forward.2']
    #allocation5 [shape = 's32[2]{0}', space=sflag, size = 0x8, scoped, tag = 'scoped memory for output_layer_forward.2']
    #allocation6 [shape = 'u8[32768]{0}', space=vmem, size = 0x8000, scoped, tag = 'input window, operand 1']
    #allocation7 [shape = 's32[2]{0}', space=sflag, size = 0x8, scoped, tag = 'scoped memory for output_layer_forward.2']
    #allocation8 [shape = 'u8[32768]{0}', space=vmem, size = 0x8000, scoped, tag = 'input window, operand 2']
    #allocation9 [shape = 'u8[512]{0}', space=smem, size = 0x200, scoped, tag = 'input window, operand 3, single buffered']
    #allocation10 [shape = 'u8[512]{0}', space=smem, size = 0x200, scoped, tag = 'input window, operand 4, single buffered']
    #allocation11 [shape = 's32[1]{0}', space=sflag, size = 0x4, scoped, tag = 'scoped memory for output_layer_forward.2']
    #allocation12 [shape = 'u8[98304]{0}', space=vmem, size = 0x18000, scoped, tag = 'output window, operand 0']
    %10 = vsyncpa [#allocation3], 0
    %s11 = scalar_lea.sflag [#allocation3], 1
    %12 = vsyncpa %s11, 0
    %13 = vsyncpa [#allocation7], 0
    %s14 = scalar_lea.sflag [#allocation7], 1
    %15 = vsyncpa %s14, 0
    %16 = vsyncpa [#allocation5], 0
    %17 = vsyncpa [#allocation11], 0
    %18 = vsyncpa [#allocation4], 0
    %s19 = scalar_lea.sflag [#allocation4], 1
    %20 = vsyncpa %s19, 0
    loop: start=0, step=1, limit=10
    $region2: #{output_layer_forward.2} parent=1 // loop_pre_header
      _
    $region3: #{output_layer_forward.2} parent=1 // loop_header
      %s22 = sphi 0, %s26
      %p23 = scmp.ge.s32.totalorder %s22, 10
      %s29 = sphi 0, %s41
      %s30 = sphi 0, %s37
      %s31 = sphi 0, %s29
      %s32 = sphi 0, %s30
      %s33 = sphi 0, %s31
      %s34 = sphi 0, %s32
      %s46 = sphi 0, %s48
      %s49 = sphi 0, %s46
      %s50 = sphi 0, %s49
      %s66 = sphi 0, %s50
      %s82 = sphi 0, %s84
      %s85 = sphi 0, %s82
      %s86 = sphi 0, %s85
      %s102 = sphi 0, %s86
      %s118 = sphi 0, %s120
      %s121 = sphi 0, %s118
      %s122 = sphi 0, %s121
      %s138 = sphi 0, %s122
      %s142 = sphi 0, %s142
      %s144 = sphi 0, %s142
      %s145 = sphi 0, %s144
      %s159 = sphi 0, %s145
      %s163 = sphi 0, %s163
      %s165 = sphi 0, %s163
      %s166 = sphi 0, %s165
      %s180 = sphi 0, %s166
      %s188 = sphi 0, %s190
      %s191 = sphi 0, %s188
      %s192 = sphi 0, %s191
      %s208 = sphi 0, %s192
    $region4: #{output_layer_forward.2} parent=1 // loop_header_branch
      %25 = sbr.rel (%p23) target = $region8
    $region5: #{output_layer_forward.2} parent=1 // loop_body
      %s27 = ssub.s32 %s22, 1
      %s28 = ssub.s32 %s22, 2
      %s35 = sadd.s32 1, %s30
      %p36 = scmp.ge.s32.totalorder %s35, 4
      %s37 = scalar_select %p36, 0, %s35
      %s38 = sadd.s32 1, %s29
      %s39 = scalar_select %p36, %s38, %s29
      %p40 = scmp.ge.s32.totalorder %s39, 2
      %s41 = scalar_select %p40, 0, %s39
      %s42 = ssub.s32 %s29, %s41
      %s43 = ssub.s32 %s30, %s37
      %s44 = sor.u32 %s42, %s43
      %p45 = scmp.eq.s32.totalorder %s44, 0
      %s47 = sadd.s32 %s46, 1
      %s48 = scalar_select %p45, %s46, %s47
      %p51 = pneg %p45
      %p52 = scmp.eq.s32.totalorder %s22, 7
      %p53 = por %p51, %p52
      %p54 = scmp.ne.s32.totalorder %s46, %s49
      %p55 = scmp.eq.s32.totalorder %s22, 0
      %p56 = por %p54, %p55
      %p57 = scmp.ne.s32.totalorder %s46, %s49
      %p58 = scmp.eq.s32.totalorder %s27, 7
      %p59 = por %p57, %p58
      %p60 = scmp.ne.s32.totalorder %s49, %s50
      %p61 = scmp.eq.s32.totalorder %s27, 0
      %p62 = por %p60, %p61
      %p63 = scmp.ne.s32.totalorder %s49, %s50
      %p64 = scmp.eq.s32.totalorder %s28, 7
      %p65 = por %p63, %p64
      %p67 = scmp.ne.s32.totalorder %s50, %s66
      %p68 = scmp.eq.s32.totalorder %s28, 0
      %p69 = por %p67, %p68
      %s70 = smul.u32 %s30, 4
      %s71 = ssub.s32 %s70, 1
      %p72 = scmp.gt.s32.totalorder %s71, 0
      %s73 = scalar_select %p72, %s71, 0
      %s74 = smul.u32 %s37, 4
      %s75 = ssub.s32 %s74, 1
      %p76 = scmp.gt.s32.totalorder %s75, 0
      %s77 = scalar_select %p76, %s75, 0
      %s78 = ssub.s32 %s29, %s41
      %s79 = ssub.s32 %s73, %s77
      %s80 = sor.u32 %s78, %s79
      %p81 = scmp.eq.s32.totalorder %s80, 0
      %s83 = sadd.s32 %s82, 1
      %s84 = scalar_select %p81, %s82, %s83
      %p87 = pneg %p81
      %p88 = scmp.eq.s32.totalorder %s22, 7
      %p89 = por %p87, %p88
      %p90 = scmp.ne.s32.totalorder %s82, %s85
      %p91 = scmp.eq.s32.totalorder %s22, 0
      %p92 = por %p90, %p91
      %p93 = scmp.ne.s32.totalorder %s82, %s85
      %p94 = scmp.eq.s32.totalorder %s27, 7
      %p95 = por %p93, %p94
      %p96 = scmp.ne.s32.totalorder %s85, %s86
      %p97 = scmp.eq.s32.totalorder %s27, 0
      %p98 = por %p96, %p97
      %p99 = scmp.ne.s32.totalorder %s85, %s86
      %p100 = scmp.eq.s32.totalorder %s28, 7
      %p101 = por %p99, %p100
      %p103 = scmp.ne.s32.totalorder %s86, %s102
      %p104 = scmp.eq.s32.totalorder %s28, 0
      %p105 = por %p103, %p104
      %s106 = smul.u32 %s30, 4
      %s107 = sadd.s32 %s106, 4
      %p108 = scmp.lt.s32.totalorder %s107, 15
      %s109 = scalar_select %p108, %s107, 15
      %s110 = smul.u32 %s37, 4
      %s111 = sadd.s32 %s110, 4
      %p112 = scmp.lt.s32.totalorder %s111, 15
      %s113 = scalar_select %p112, %s111, 15
      %s114 = ssub.s32 %s29, %s41
      %s115 = ssub.s32 %s109, %s113
      %s116 = sor.u32 %s114, %s115
      %p117 = scmp.eq.s32.totalorder %s116, 0
      %s119 = sadd.s32 %s118, 1
      %s120 = scalar_select %p117, %s118, %s119
      %p123 = pneg %p117
      %p124 = scmp.eq.s32.totalorder %s22, 7
      %p125 = por %p123, %p124
      %p126 = scmp.ne.s32.totalorder %s118, %s121
      %p127 = scmp.eq.s32.totalorder %s22, 0
      %p128 = por %p126, %p127
      %p129 = scmp.ne.s32.totalorder %s118, %s121
      %p130 = scmp.eq.s32.totalorder %s27, 7
      %p131 = por %p129, %p130
      %p132 = scmp.ne.s32.totalorder %s121, %s122
      %p133 = scmp.eq.s32.totalorder %s27, 0
      %p134 = por %p132, %p133
      %p135 = scmp.ne.s32.totalorder %s121, %s122
      %p136 = scmp.eq.s32.totalorder %s28, 7
      %p137 = por %p135, %p136
      %p139 = scmp.ne.s32.totalorder %s122, %s138
      %p140 = scmp.eq.s32.totalorder %s28, 0
      %p141 = por %p139, %p140
      %s143 = sadd.s32 %s142, 1
      %p146 = scmp.eq.s32.totalorder %s22, 7
      %p147 = scmp.ne.s32.totalorder %s142, %s144
      %p148 = scmp.eq.s32.totalorder %s22, 0
      %p149 = por %p147, %p148
      %p150 = scmp.ne.s32.totalorder %s142, %s144
      %p151 = scmp.eq.s32.totalorder %s27, 7
      %p152 = por %p150, %p151
      %p153 = scmp.ne.s32.totalorder %s144, %s145
      %p154 = scmp.eq.s32.totalorder %s27, 0
      %p155 = por %p153, %p154
      %p156 = scmp.ne.s32.totalorder %s144, %s145
      %p157 = scmp.eq.s32.totalorder %s28, 7
      %p158 = por %p156, %p157
      %p160 = scmp.ne.s32.totalorder %s145, %s159
      %p161 = scmp.eq.s32.totalorder %s28, 0
      %p162 = por %p160, %p161
      %s164 = sadd.s32 %s163, 1
      %p167 = scmp.eq.s32.totalorder %s22, 7
      %p168 = scmp.ne.s32.totalorder %s163, %s165
      %p169 = scmp.eq.s32.totalorder %s22, 0
      %p170 = por %p168, %p169
      %p171 = scmp.ne.s32.totalorder %s163, %s165
      %p172 = scmp.eq.s32.totalorder %s27, 7
      %p173 = por %p171, %p172
      %p174 = scmp.ne.s32.totalorder %s165, %s166
      %p175 = scmp.eq.s32.totalorder %s27, 0
      %p176 = por %p174, %p175
      %p177 = scmp.ne.s32.totalorder %s165, %s166
      %p178 = scmp.eq.s32.totalorder %s28, 7
      %p179 = por %p177, %p178
      %p181 = scmp.ne.s32.totalorder %s166, %s180
      %p182 = scmp.eq.s32.totalorder %s28, 0
      %p183 = por %p181, %p182
      %s184 = ssub.s32 %s29, %s41
      %s185 = ssub.s32 %s30, %s37
      %s186 = sor.u32 %s184, %s185
      %p187 = scmp.eq.s32.totalorder %s186, 0
      %s189 = sadd.s32 %s188, 1
      %s190 = scalar_select %p187, %s188, %s189
      %p193 = pneg %p187
      %p194 = scmp.eq.s32.totalorder %s22, 7
      %p195 = por %p193, %p194
      %p196 = scmp.ne.s32.totalorder %s188, %s191
      %p197 = scmp.eq.s32.totalorder %s22, 0
      %p198 = por %p196, %p197
      %p199 = scmp.ne.s32.totalorder %s188, %s191
      %p200 = scmp.eq.s32.totalorder %s27, 7
      %p201 = por %p199, %p200
      %p202 = scmp.ne.s32.totalorder %s191, %s192
      %p203 = scmp.eq.s32.totalorder %s27, 0
      %p204 = por %p202, %p203
      %p205 = scmp.ne.s32.totalorder %s191, %s192
      %p206 = scmp.eq.s32.totalorder %s28, 7
      %p207 = por %p205, %p206
      %p209 = scmp.ne.s32.totalorder %s192, %s208
      %p210 = scmp.eq.s32.totalorder %s28, 0
      %p211 = por %p209, %p210
      %p212 = scmp.le.s32.totalorder 1, %s22
      %p213 = scmp.lt.s32.totalorder %s22, 9
      %p214 = pnand %p212, %p213
      %p215 = pneg %p214
      // Predicated region
      $region9: #{output_layer_forward.2} parent=5 // pred_check
        _
      $region10: #{output_layer_forward.2} parent=5 // pred_check_branch
        %217 = sbr.rel (%p214) target = $region12
      $region11: #{output_layer_forward.2} parent=5 // pred_region
        %s218 = ssub.s32 %s22, 1
        // Predicated region
        $region13: #{output_layer_forward.2} parent=11 // pred_check
          %p219 = pneg %p155
        $region14: #{output_layer_forward.2} parent=11 // pred_check_branch
          %221 = sbr.rel (%p219) target = $region16
        $region15: #{output_layer_forward.2} parent=11 // pred_region
          %s223 = ssub.s32 16, 16
          %224 = vsyncadd [#allocation5], %s223
          %s226 = sshll.u32 %s3, 4
          %s227 = int_to_ptr.vmem [resolvable:$true] %s226
          %229 = dma.vmem_to_smem %s227, 16, [#allocation9], [#allocation5]
        $region16: #{output_layer_forward.2} parent=11 // pred_fallthru
          _
        // Predicated region
        $region17: #{output_layer_forward.2} parent=11 // pred_check
          %p230 = pneg %p176
        $region18: #{output_layer_forward.2} parent=11 // pred_check_branch
          %232 = sbr.rel (%p230) target = $region20
        $region19: #{output_layer_forward.2} parent=11 // pred_region
          %s234 = ssub.s32 16, 16
          %235 = vsyncadd [#allocation11], %s234
          %s237 = sshll.u32 %s4, 4
          %s238 = int_to_ptr.vmem [resolvable:$true] %s237
          %240 = dma.vmem_to_smem %s238, 16, [#allocation10], [#allocation11]
        $region20: #{output_layer_forward.2} parent=11 // pred_fallthru
          _
      $region12: #{output_layer_forward.2} parent=5 // pred_fallthru
        _
      %p241 = scmp.lt.s32.totalorder %s22, 8
      // Predicated region
      $region21: #{output_layer_forward.2} parent=5 // pred_check
        %p242 = pneg %p241
      $region22: #{output_layer_forward.2} parent=5 // pred_check_branch
        %244 = sbr.rel (%p242) target = $region24
      $region23: #{output_layer_forward.2} parent=5 // pred_region
        // Predicated region
        $region25: #{output_layer_forward.2} parent=23 // pred_check
          %p245 = pneg %p56
        $region26: #{output_layer_forward.2} parent=23 // pred_check_branch
          %247 = sbr.rel (%p245) target = $region28
        $region27: #{output_layer_forward.2} parent=23 // pred_region
          #allocation14 [shape = 'u32[6]{0}', space=smem, size = 0x18, scoped, tag = 'DMA stride descriptor']
          %s248 = sand.u32 %s46, 1
          %s249 = scalar_lea.sflag [#allocation3], %s248
          %s250 = sand.u32 %s46, 1
          %s251 = smul.addr %s250, 128
          %s252 = scalar_lea.vmem [#allocation2], %s251
          %s253 = smul.u32 4, %s30
          %s255 = ssub.s32 2048, 2048
          %256 = vsyncadd %s249, %s255
          %s257 = smul.addr %s29, 64
          %s258 = sadd.s32 %s253, %s257
          %s259 = smul.addr %s258, 128
          %s260 = scalar_lea.hbm %s0, %s259
          %s262 = sshll.u32 1, 14
          %s263 = sxor.u32 4294967295, %s262
          %s265 = sld [smem:[#allocation0]]
          %s266 = sadd.s32 2, %s265
          %s268 = sshll.u32 7, 26
          %s269 = sxor.u32 4294967295, %s268
          %s270 = sand.u32 0, %s269
          %s271 = sshll.u32 %s266, 26
          %s272 = sor.u32 %s270, %s271
          %s273 = sshll.u32 %s252, 4
          %s274 = int_to_ptr.vmem [resolvable:$true] %s273
          %280 = sst [smem:[#allocation14]] 2048
          %s281 = scalar_lea.smem [#allocation14], 1
          %282 = sst [smem:[%s281]] 512
          %s283 = scalar_lea.smem [#allocation14], 2
          %284 = sst [smem:[%s283]] 4
          %s285 = scalar_lea.smem [#allocation14], 3
          %286 = sst [smem:[%s285]] 128
          %s287 = scalar_lea.smem [#allocation14], 4
          %288 = sst [smem:[%s287]] 128
          %s289 = scalar_lea.smem [#allocation14], 5
          %290 = sst [smem:[%s289]] 8
          %292 = dma.general %s260, 2048, %s274, %s249, [#allocation13], [#allocation14], %s272, 0
        $region28: #{output_layer_forward.2} parent=23 // pred_fallthru
          _
        // Predicated region
        $region29: #{output_layer_forward.2} parent=23 // pred_check
          %p293 = pneg %p92
        $region30: #{output_layer_forward.2} parent=23 // pred_check_branch
          %295 = sbr.rel (%p293) target = $region32
        $region31: #{output_layer_forward.2} parent=23 // pred_region
          %s296 = sand.u32 %s22, 1
          %s297 = scalar_lea.sflag [#allocation7], %s296
          %s298 = sand.u32 %s82, 1
          %s299 = smul.addr %s298, 32
          %s300 = scalar_lea.vmem [#allocation6], %s299
          %s301 = smul.u32 %s30, 4
          %s302 = ssub.s32 %s301, 1
          %p303 = scmp.gt.s32.totalorder %s302, 0
          %s304 = scalar_select %p303, %s302, 0
          %s306 = ssub.s32 512, 512
          %307 = vsyncadd %s297, %s306
          %s308 = smul.addr %s29, 64
          %s309 = sadd.s32 %s304, %s308
          %s310 = smul.addr %s309, 128
          %s311 = scalar_lea.hbm %s1, %s310
          %s312 = sshll.u32 %s300, 4
          %s313 = int_to_ptr.vmem [resolvable:$true] %s312
          %318 = dma.hbm_to_vmem [thread:$0]  %s311, 512, %s313, %s297, 2048, 128, 8
        $region32: #{output_layer_forward.2} parent=23 // pred_fallthru
          _
        // Predicated region
        $region33: #{output_layer_forward.2} parent=23 // pred_check
          %p319 = pneg %p128
        $region34: #{output_layer_forward.2} parent=23 // pred_check_branch
          %321 = sbr.rel (%p319) target = $region36
        $region35: #{output_layer_forward.2} parent=23 // pred_region
          %s322 = sand.u32 %s22, 1
          %s323 = scalar_lea.sflag [#allocation7], %s322
          %s324 = sand.u32 %s118, 1
          %s325 = smul.addr %s324, 32
          %s326 = scalar_lea.vmem [#allocation8], %s325
          %s327 = smul.u32 %s30, 4
          %s328 = sadd.s32 %s327, 4
          %p329 = scmp.lt.s32.totalorder %s328, 15
          %s330 = scalar_select %p329, %s328, 15
          %s332 = ssub.s32 512, 512
          %333 = vsyncadd %s323, %s332
          %s334 = smul.addr %s29, 64
          %s335 = sadd.s32 %s330, %s334
          %s336 = smul.addr %s335, 128
          %s337 = scalar_lea.hbm %s2, %s336
          %s338 = sshll.u32 %s326, 4
          %s339 = int_to_ptr.vmem [resolvable:$true] %s338
          %344 = dma.hbm_to_vmem [thread:$0]  %s337, 512, %s339, %s323, 2048, 128, 8
        $region36: #{output_layer_forward.2} parent=23 // pred_fallthru
          _
      $region24: #{output_layer_forward.2} parent=5 // pred_fallthru
        _
      %p345 = scmp.le.s32.totalorder 1, %s22
      %p346 = scmp.lt.s32.totalorder %s22, 9
      %p347 = pnand %p345, %p346
      %p348 = pneg %p347
      // Predicated region
      $region37: #{output_layer_forward.2} parent=5 // pred_check
        _
      $region38: #{output_layer_forward.2} parent=5 // pred_check_branch
        %350 = sbr.rel (%p347) target = $region40
      $region39: #{output_layer_forward.2} parent=5 // pred_region
        %s351 = ssub.s32 %s22, 1
        %s352 = sand.u32 %s49, 1
        %s353 = scalar_lea.sflag [#allocation3], %s352
        %s354 = sand.u32 %s49, 1
        %s355 = smul.addr %s354, 128
        %s356 = scalar_lea.vmem [#allocation2], %s355
        // Predicated region
        $region41: #{output_layer_forward.2} parent=39 // pred_check
          %p357 = pneg %p62
        $region42: #{output_layer_forward.2} parent=39 // pred_check_branch
          %359 = sbr.rel (%p357) target = $region44
        $region43: #{output_layer_forward.2} parent=39 // pred_region
          %360 = dma.done %s353, 2048
        $region44: #{output_layer_forward.2} parent=39 // pred_fallthru
          _
        %s361 = sand.u32 %s27, 1
        %s362 = scalar_lea.sflag [#allocation7], %s361
        %s363 = sand.u32 %s85, 1
        %s364 = smul.addr %s363, 32
        %s365 = scalar_lea.vmem [#allocation6], %s364
        // Predicated region
        $region45: #{output_layer_forward.2} parent=39 // pred_check
          %p366 = pneg %p98
        $region46: #{output_layer_forward.2} parent=39 // pred_check_branch
          %368 = sbr.rel (%p366) target = $region48
        $region47: #{output_layer_forward.2} parent=39 // pred_region
          %369 = dma.done %s362, 512
        $region48: #{output_layer_forward.2} parent=39 // pred_fallthru
          _
        %s370 = sand.u32 %s27, 1
        %s371 = scalar_lea.sflag [#allocation7], %s370
        %s372 = sand.u32 %s121, 1
        %s373 = smul.addr %s372, 32
        %s374 = scalar_lea.vmem [#allocation8], %s373
        // Predicated region
        $region49: #{output_layer_forward.2} parent=39 // pred_check
          %p375 = pneg %p134
        $region50: #{output_layer_forward.2} parent=39 // pred_check_branch
          %377 = sbr.rel (%p375) target = $region52
        $region51: #{output_layer_forward.2} parent=39 // pred_region
          %378 = dma.done %s371, 512
        $region52: #{output_layer_forward.2} parent=39 // pred_fallthru
          _
        // Predicated region
        $region53: #{output_layer_forward.2} parent=39 // pred_check
          %p379 = pneg %p155
        $region54: #{output_layer_forward.2} parent=39 // pred_check_branch
          %381 = sbr.rel (%p379) target = $region56
        $region55: #{output_layer_forward.2} parent=39 // pred_region
          %382 = dma.done [#allocation5], 16
        $region56: #{output_layer_forward.2} parent=39 // pred_fallthru
          _
        // Predicated region
        $region57: #{output_layer_forward.2} parent=39 // pred_check
          %p383 = pneg %p176
        $region58: #{output_layer_forward.2} parent=39 // pred_check_branch
          %385 = sbr.rel (%p383) target = $region60
        $region59: #{output_layer_forward.2} parent=39 // pred_region
          %386 = dma.done [#allocation11], 16
        $region60: #{output_layer_forward.2} parent=39 // pred_fallthru
          _
        %387 = sfence
        %s388 = sand.u32 %s49, 1
        %s389 = scalar_lea.sflag [#allocation3], %s388
        %s390 = sand.u32 %s49, 1
        %s391 = smul.addr %s390, 128
        %s392 = scalar_lea.vmem [#allocation2], %s391
        %p393 = pneg %p62
        %p394 = pneg %p59
        %s395 = sand.u32 %s27, 1
        %s396 = scalar_lea.sflag [#allocation7], %s395
        %s397 = sand.u32 %s85, 1
        %s398 = smul.addr %s397, 32
        %s399 = scalar_lea.vmem [#allocation6], %s398
        %p400 = pneg %p98
        %p401 = pneg %p95
        %s402 = sand.u32 %s27, 1
        %s403 = scalar_lea.sflag [#allocation7], %s402
        %s404 = sand.u32 %s121, 1
        %s405 = smul.addr %s404, 32
        %s406 = scalar_lea.vmem [#allocation8], %s405
        %p407 = pneg %p134
        %p408 = pneg %p131
        %p409 = pneg %p155
        %p410 = pneg %p152
        %p411 = pneg %p176
        %p412 = pneg %p173
        %p413 = pneg %p204
        %p414 = pneg %p201
        %s415 = sand.u32 %s191, 1
        %s416 = scalar_lea.sflag [#allocation4], %s415
        %s417 = sand.u32 %s191, 1
        %s418 = smul.addr %s417, 96
        %s419 = scalar_lea.vmem [#allocation12], %s418
        %s420 = smul.u32 4, %s32
        %s421 = smul.u32 %s32, 4
        %s422 = ssub.s32 %s421, 1
        %p423 = scmp.gt.s32.totalorder %s422, 0
        %s424 = scalar_select %p423, %s422, 0
        %s425 = smul.u32 %s32, 4
        %s426 = sadd.s32 %s425, 4
        %p427 = scmp.lt.s32.totalorder %s426, 15
        %s428 = scalar_select %p427, %s426, 15
        %s429 = smul.u32 4, %s32
        %p430 = scmp.eq.s32.totalorder %s32, 0
        %p431 = scmp.eq.s32.totalorder %s32, 3
        %v432 = vlaneseq
        %v433 = vand.u32 %v432, 127
        %vm434 = vcmp.gt.s32.totalorder %v433, 0
        %vm435 = vcmp.lt.s32.totalorder %v433, 127
        %v436 = vlaneseq
        %v437 = vshrl.u32 %v436, 7
        %v438 = vadd.s32 %v437, 8
        %v439 = vadd.s32 %v437, 16
        %v440 = vadd.s32 %v437, 24
        %vm441 = vcmp.eq.s32.totalorder %v437, 0
        %vm442 = vcmp.eq.s32.totalorder %v438, 0
        %vm443 = vcmp.eq.s32.totalorder %v439, 0
        %vm444 = vcmp.eq.s32.totalorder %v440, 0
        %vm445 = vcmp.eq.s32.totalorder %v437, 31
        %vm446 = vcmp.eq.s32.totalorder %v438, 31
        %vm447 = vcmp.eq.s32.totalorder %v439, 31
        %vm448 = vcmp.eq.s32.totalorder %v440, 31
        %v449 = vld [vmem:[%s356] sm:$0xff]
        %v450 = vld [vmem:[%s356 + $0x8] sm:$0xff]
        %v451 = vld [vmem:[%s356 + $0x10] sm:$0xff]
        %v452 = vld [vmem:[%s356 + $0x18] sm:$0xff]
        %453 = vrot.lane.b32.xlu0 %v449, 1
        %v454 = vpop.permute.xlu0 %453
        %455 = vrot.lane.b32.xlu0 %v450, 1
        %v456 = vpop.permute.xlu0 %455
        %457 = vrot.lane.b32.xlu0 %v451, 1
        %v458 = vpop.permute.xlu0 %457
        %459 = vrot.lane.b32.xlu0 %v452, 1
        %v460 = vpop.permute.xlu0 %459
        %v461 = vsel %vm434, %v454, 0.0
        %v462 = vsel %vm434, %v456, 0.0
        %v463 = vsel %vm434, %v458, 0.0
        %v464 = vsel %vm434, %v460, 0.0
        %465 = vrot.lane.b32.xlu0 %v449, 127
        %v466 = vpop.permute.xlu0 %465
        %467 = vrot.lane.b32.xlu0 %v450, 127
        %v468 = vpop.permute.xlu0 %467
        %469 = vrot.lane.b32.xlu0 %v451, 127
        %v470 = vpop.permute.xlu0 %469
        %471 = vrot.lane.b32.xlu0 %v452, 127
        %v472 = vpop.permute.xlu0 %471
        %v473 = vsel %vm435, %v466, 0.0
        %v474 = vsel %vm435, %v468, 0.0
        %v475 = vsel %vm435, %v470, 0.0
        %v476 = vsel %vm435, %v472, 0.0
        %v477 = vld [vmem:[%s365 + $0x7] sm:$0x1]
        %s478 = scalar_select %p430, 1, 0
        %v479 = vstv %s478
        %vm480 = vcmp.eq.s32.totalorder %v479, 1
        %v481 = vsel %vm480, 0.0, %v477
        %482 = vrot.lane.b32.xlu0 %v481, 1
        %v483 = vpop.permute.xlu0 %482
        %v484 = vsel %vm434, %v483, 0.0
        %485 = vrot.lane.b32.xlu0 %v481, 127
        %v486 = vpop.permute.xlu0 %485
        %v487 = vsel %vm435, %v486, 0.0
        %v488 = vld [vmem:[%s374] sm:$0x1]
        %s489 = scalar_select %p431, 1, 0
        %v490 = vstv %s489
        %vm491 = vcmp.eq.s32.totalorder %v490, 1
        %v492 = vsel %vm491, 0.0, %v488
        %493 = vrot.lane.b32.xlu0 %v492, 1
        %v494 = vpop.permute.xlu0 %493
        %v495 = vsel %vm434, %v494, 0.0
        %496 = vrot.lane.b32.xlu0 %v492, 127
        %v497 = vpop.permute.xlu0 %496
        %v498 = vsel %vm435, %v497, 0.0
        %s499 = scalar_lea.vmem %s356, 32 [#allocation2]
        %v500 = vld [vmem:[%s499] sm:$0xff]
        %v501 = vld [vmem:[%s499 + $0x8] sm:$0xff]
        %v502 = vld [vmem:[%s499 + $0x10] sm:$0xff]
        %v503 = vld [vmem:[%s499 + $0x18] sm:$0xff]
        %504 = vrot.lane.b32.xlu0 %v500, 1
        %v505 = vpop.permute.xlu0 %504
        %506 = vrot.lane.b32.xlu0 %v501, 1
        %v507 = vpop.permute.xlu0 %506
        %508 = vrot.lane.b32.xlu0 %v502, 1
        %v509 = vpop.permute.xlu0 %508
        %510 = vrot.lane.b32.xlu0 %v503, 1
        %v511 = vpop.permute.xlu0 %510
        %v512 = vsel %vm434, %v505, 0.0
        %v513 = vsel %vm434, %v507, 0.0
        %v514 = vsel %vm434, %v509, 0.0
        %v515 = vsel %vm434, %v511, 0.0
        %516 = vrot.lane.b32.xlu0 %v500, 127
        %v517 = vpop.permute.xlu0 %516
        %518 = vrot.lane.b32.xlu0 %v501, 127
        %v519 = vpop.permute.xlu0 %518
        %520 = vrot.lane.b32.xlu0 %v502, 127
        %v521 = vpop.permute.xlu0 %520
        %522 = vrot.lane.b32.xlu0 %v503, 127
        %v523 = vpop.permute.xlu0 %522
        %v524 = vsel %vm435, %v517, 0.0
        %v525 = vsel %vm435, %v519, 0.0
        %v526 = vsel %vm435, %v521, 0.0
        %v527 = vsel %vm435, %v523, 0.0
        %s528 = scalar_lea.vmem %s365, 8 [#allocation6]
        %v529 = vld [vmem:[%s528 + $0x7] sm:$0x1]
        %v530 = vsel %vm480, 0.0, %v529
        %531 = vrot.lane.b32.xlu0 %v530, 1
        %v532 = vpop.permute.xlu0 %531
        %v533 = vsel %vm434, %v532, 0.0
        %534 = vrot.lane.b32.xlu0 %v530, 127
        %v535 = vpop.permute.xlu0 %534
        %v536 = vsel %vm435, %v535, 0.0
        %s537 = scalar_lea.vmem %s374, 8 [#allocation8]
        %v538 = vld [vmem:[%s537] sm:$0x1]
        %v539 = vsel %vm491, 0.0, %v538
        %540 = vrot.lane.b32.xlu0 %v539, 1
        %v541 = vpop.permute.xlu0 %540
        %v542 = vsel %vm434, %v541, 0.0
        %543 = vrot.lane.b32.xlu0 %v539, 127
        %v544 = vpop.permute.xlu0 %543
        %v545 = vsel %vm435, %v544, 0.0
        %s546 = scalar_lea.vmem %s356, 64 [#allocation2]
        %v547 = vld [vmem:[%s546] sm:$0xff]
        %v548 = vld [vmem:[%s546 + $0x8] sm:$0xff]
        %v549 = vld [vmem:[%s546 + $0x10] sm:$0xff]
        %v550 = vld [vmem:[%s546 + $0x18] sm:$0xff]
        %551 = vrot.lane.b32.xlu0 %v547, 1
        %v552 = vpop.permute.xlu0 %551
        %553 = vrot.lane.b32.xlu0 %v548, 1
        %v554 = vpop.permute.xlu0 %553
        %555 = vrot.lane.b32.xlu0 %v549, 1
        %v556 = vpop.permute.xlu0 %555
        %557 = vrot.lane.b32.xlu0 %v550, 1
        %v558 = vpop.permute.xlu0 %557
        %v559 = vsel %vm434, %v552, 0.0
        %v560 = vsel %vm434, %v554, 0.0
        %v561 = vsel %vm434, %v556, 0.0
        %v562 = vsel %vm434, %v558, 0.0
        %563 = vrot.lane.b32.xlu0 %v547, 127
        %v564 = vpop.permute.xlu0 %563
        %565 = vrot.lane.b32.xlu0 %v548, 127
        %v566 = vpop.permute.xlu0 %565
        %567 = vrot.lane.b32.xlu0 %v549, 127
        %v568 = vpop.permute.xlu0 %567
        %569 = vrot.lane.b32.xlu0 %v550, 127
        %v570 = vpop.permute.xlu0 %569
        %v571 = vsel %vm435, %v564, 0.0
        %v572 = vsel %vm435, %v566, 0.0
        %v573 = vsel %vm435, %v568, 0.0
        %v574 = vsel %vm435, %v570, 0.0
        %s575 = scalar_lea.vmem %s365, 16 [#allocation6]
        %v576 = vld [vmem:[%s575 + $0x7] sm:$0x1]
        %v577 = vsel %vm480, 0.0, %v576
        %578 = vrot.lane.b32.xlu0 %v577, 1
        %v579 = vpop.permute.xlu0 %578
        %v580 = vsel %vm434, %v579, 0.0
        %581 = vrot.lane.b32.xlu0 %v577, 127
        %v582 = vpop.permute.xlu0 %581
        %v583 = vsel %vm435, %v582, 0.0
        %s584 = scalar_lea.vmem %s374, 16 [#allocation8]
        %v585 = vld [vmem:[%s584] sm:$0x1]
        %v586 = vsel %vm491, 0.0, %v585
        %587 = vrot.lane.b32.xlu0 %v586, 1
        %v588 = vpop.permute.xlu0 %587
        %v589 = vsel %vm434, %v588, 0.0
        %590 = vrot.lane.b32.xlu0 %v586, 127
        %v591 = vpop.permute.xlu0 %590
        %v592 = vsel %vm435, %v591, 0.0
        %s593 = scalar_lea.vmem %s356, 96 [#allocation2]
        %v594 = vld [vmem:[%s593] sm:$0xff]
        %v595 = vld [vmem:[%s593 + $0x8] sm:$0xff]
        %v596 = vld [vmem:[%s593 + $0x10] sm:$0xff]
        %v597 = vld [vmem:[%s593 + $0x18] sm:$0xff]
        %598 = vrot.lane.b32.xlu0 %v594, 1
        %v599 = vpop.permute.xlu0 %598
        %600 = vrot.lane.b32.xlu0 %v595, 1
        %v601 = vpop.permute.xlu0 %600
        %602 = vrot.lane.b32.xlu0 %v596, 1
        %v603 = vpop.permute.xlu0 %602
        %604 = vrot.lane.b32.xlu0 %v597, 1
        %v605 = vpop.permute.xlu0 %604
        %v606 = vsel %vm434, %v599, 0.0
        %v607 = vsel %vm434, %v601, 0.0
        %v608 = vsel %vm434, %v603, 0.0
        %v609 = vsel %vm434, %v605, 0.0
        %610 = vrot.lane.b32.xlu0 %v594, 127
        %v611 = vpop.permute.xlu0 %610
        %612 = vrot.lane.b32.xlu0 %v595, 127
        %v613 = vpop.permute.xlu0 %612
        %614 = vrot.lane.b32.xlu0 %v596, 127
        %v615 = vpop.permute.xlu0 %614
        %616 = vrot.lane.b32.xlu0 %v597, 127
        %v617 = vpop.permute.xlu0 %616
        %v618 = vsel %vm435, %v611, 0.0
        %v619 = vsel %vm435, %v613, 0.0
        %v620 = vsel %vm435, %v615, 0.0
        %v621 = vsel %vm435, %v617, 0.0
        %s622 = scalar_lea.vmem %s365, 24 [#allocation6]
        %v623 = vld [vmem:[%s622 + $0x7] sm:$0x1]
        %v624 = vsel %vm480, 0.0, %v623
        %625 = vrot.lane.b32.xlu0 %v624, 1
        %v626 = vpop.permute.xlu0 %625
        %v627 = vsel %vm434, %v626, 0.0
        %628 = vrot.lane.b32.xlu0 %v624, 127
        %v629 = vpop.permute.xlu0 %628
        %v630 = vsel %vm435, %v629, 0.0
        %s631 = scalar_lea.vmem %s374, 24 [#allocation8]
        %v632 = vld [vmem:[%s631] sm:$0x1]
        %v633 = vsel %vm491, 0.0, %v632
        %634 = vrot.lane.b32.xlu0 %v633, 1
        %v635 = vpop.permute.xlu0 %634
        %v636 = vsel %vm434, %v635, 0.0
        %637 = vrot.lane.b32.xlu0 %v633, 127
        %v638 = vpop.permute.xlu0 %637
        %v639 = vsel %vm435, %v638, 0.0
        %s640 = sld [smem:[#allocation9 + $0x3]]
        %v641 = vstv %s640
        %v642 = vmul.f32 %v461, %v641
        %v643 = vmul.f32 %v462, %v641
        %v644 = vmul.f32 %v463, %v641
        %v645 = vmul.f32 %v464, %v641
        %s646 = sld [smem:[#allocation9 + $0x4]]
        %v647 = vstv %s646
        %v648 = vmul.f32 %v449, %v647
        %v649 = vmul.f32 %v450, %v647
        %v650 = vmul.f32 %v451, %v647
        %v651 = vmul.f32 %v452, %v647
        %s652 = sld [smem:[#allocation9 + $0x5]]
        %v653 = vstv %s652
        %v654 = vmul.f32 %v473, %v653
        %v655 = vmul.f32 %v474, %v653
        %v656 = vmul.f32 %v475, %v653
        %v657 = vmul.f32 %v476, %v653
        %s658 = sld [smem:[#allocation9 + $0xc]]
        %v659 = vstv %s658
        %v660 = vmul.f32 %v512, %v659
        %v661 = vmul.f32 %v513, %v659
        %v662 = vmul.f32 %v514, %v659
        %v663 = vmul.f32 %v515, %v659
        %s664 = sld [smem:[#allocation9 + $0xd]]
        %v665 = vstv %s664
        %v666 = vmul.f32 %v500, %v665
        %v667 = vmul.f32 %v501, %v665
        %v668 = vmul.f32 %v502, %v665
        %v669 = vmul.f32 %v503, %v665
        %s670 = sld [smem:[#allocation9 + $0xe]]
        %v671 = vstv %s670
        %v672 = vmul.f32 %v524, %v671
        %v673 = vmul.f32 %v525, %v671
        %v674 = vmul.f32 %v526, %v671
        %v675 = vmul.f32 %v527, %v671
        %s676 = sld [smem:[#allocation9 + $0x15]]
        %v677 = vstv %s676
        %v678 = vmul.f32 %v559, %v677
        %v679 = vmul.f32 %v560, %v677
        %v680 = vmul.f32 %v561, %v677
        %v681 = vmul.f32 %v562, %v677
        %s682 = sld [smem:[#allocation9 + $0x16]]
        %v683 = vstv %s682
        %v684 = vmul.f32 %v547, %v683
        %v685 = vmul.f32 %v548, %v683
        %v686 = vmul.f32 %v549, %v683
        %v687 = vmul.f32 %v550, %v683
        %s688 = sld [smem:[#allocation9 + $0x17]]
        %v689 = vstv %s688
        %v690 = vmul.f32 %v571, %v689
        %v691 = vmul.f32 %v572, %v689
        %v692 = vmul.f32 %v573, %v689
        %v693 = vmul.f32 %v574, %v689
        %s694 = sld [smem:[#allocation9 + $0x1e]]
        %v695 = vstv %s694
        %v696 = vmul.f32 %v606, %v695
        %v697 = vmul.f32 %v607, %v695
        %v698 = vmul.f32 %v608, %v695
        %v699 = vmul.f32 %v609, %v695
        %s700 = sld [smem:[#allocation9 + $0x1f]]
        %v701 = vstv %s700
        %v702 = vmul.f32 %v594, %v701
        %v703 = vmul.f32 %v595, %v701
        %v704 = vmul.f32 %v596, %v701
        %v705 = vmul.f32 %v597, %v701
        %s706 = sld [smem:[#allocation9 + $0x20]]
        %v707 = vstv %s706
        %v708 = vmul.f32 %v618, %v707
        %v709 = vmul.f32 %v619, %v707
        %v710 = vmul.f32 %v620, %v707
        %v711 = vmul.f32 %v621, %v707
        %v712 = vadd.f32 %v642, %v648
        %v713 = vadd.f32 %v643, %v649
        %v714 = vadd.f32 %v644, %v650
        %v715 = vadd.f32 %v645, %v651
        %v716 = vadd.f32 %v712, %v654
        %v717 = vadd.f32 %v713, %v655
        %v718 = vadd.f32 %v714, %v656
        %v719 = vadd.f32 %v715, %v657
        %v720 = vadd.f32 %v716, %v660
        %v721 = vadd.f32 %v717, %v661
        %v722 = vadd.f32 %v718, %v662
        %v723 = vadd.f32 %v719, %v663
        %v724 = vadd.f32 %v720, %v666
        %v725 = vadd.f32 %v721, %v667
        %v726 = vadd.f32 %v722, %v668
        %v727 = vadd.f32 %v723, %v669
        %v728 = vadd.f32 %v724, %v672
        %v729 = vadd.f32 %v725, %v673
        %v730 = vadd.f32 %v726, %v674
        %v731 = vadd.f32 %v727, %v675
        %v732 = vadd.f32 %v728, %v678
        %v733 = vadd.f32 %v729, %v679
        %v734 = vadd.f32 %v730, %v680
        %v735 = vadd.f32 %v731, %v681
        %v736 = vadd.f32 %v732, %v684
        %v737 = vadd.f32 %v733, %v685
        %v738 = vadd.f32 %v734, %v686
        %v739 = vadd.f32 %v735, %v687
        %v740 = vadd.f32 %v736, %v690
        %v741 = vadd.f32 %v737, %v691
        %v742 = vadd.f32 %v738, %v692
        %v743 = vadd.f32 %v739, %v693
        %v744 = vadd.f32 %v740, %v696
        %v745 = vadd.f32 %v741, %v697
        %v746 = vadd.f32 %v742, %v698
        %v747 = vadd.f32 %v743, %v699
        %v748 = vadd.f32 %v744, %v702
        %v749 = vadd.f32 %v745, %v703
        %v750 = vadd.f32 %v746, %v704
        %v751 = vadd.f32 %v747, %v705
        %v752 = vadd.f32 %v748, %v708
        %v753 = vadd.f32 %v749, %v709
        %v754 = vadd.f32 %v750, %v710
        %v755 = vadd.f32 %v751, %v711
        %s756 = sld [smem:[#allocation9]]
        %v757 = vstv %s756
        %v758 = vmul.f32 %v461, %v757
        %v759 = vmul.f32 %v462, %v757
        %v760 = vmul.f32 %v463, %v757
        %v761 = vmul.f32 %v464, %v757
        %s762 = sld [smem:[#allocation9 + $0x1]]
        %v763 = vstv %s762
        %v764 = vmul.f32 %v449, %v763
        %v765 = vmul.f32 %v450, %v763
        %v766 = vmul.f32 %v451, %v763
        %v767 = vmul.f32 %v452, %v763
        %s768 = sld [smem:[#allocation9 + $0x2]]
        %v769 = vstv %s768
        %v770 = vmul.f32 %v473, %v769
        %v771 = vmul.f32 %v474, %v769
        %v772 = vmul.f32 %v475, %v769
        %v773 = vmul.f32 %v476, %v769
        %s774 = sld [smem:[#allocation9 + $0x9]]
        %v775 = vstv %s774
        %v776 = vmul.f32 %v512, %v775
        %v777 = vmul.f32 %v513, %v775
        %v778 = vmul.f32 %v514, %v775
        %v779 = vmul.f32 %v515, %v775
        %s780 = sld [smem:[#allocation9 + $0xa]]
        %v781 = vstv %s780
        %v782 = vmul.f32 %v500, %v781
        %v783 = vmul.f32 %v501, %v781
        %v784 = vmul.f32 %v502, %v781
        %v785 = vmul.f32 %v503, %v781
        %s786 = sld [smem:[#allocation9 + $0xb]]
        %v787 = vstv %s786
        %v788 = vmul.f32 %v524, %v787
        %v789 = vmul.f32 %v525, %v787
        %v790 = vmul.f32 %v526, %v787
        %v791 = vmul.f32 %v527, %v787
        %s792 = sld [smem:[#allocation9 + $0x12]]
        %v793 = vstv %s792
        %v794 = vmul.f32 %v559, %v793
        %v795 = vmul.f32 %v560, %v793
        %v796 = vmul.f32 %v561, %v793
        %v797 = vmul.f32 %v562, %v793
        %s798 = sld [smem:[#allocation9 + $0x13]]
        %v799 = vstv %s798
        %v800 = vmul.f32 %v547, %v799
        %v801 = vmul.f32 %v548, %v799
        %v802 = vmul.f32 %v549, %v799
        %v803 = vmul.f32 %v550, %v799
        %s804 = sld [smem:[#allocation9 + $0x14]]
        %v805 = vstv %s804
        %v806 = vmul.f32 %v571, %v805
        %v807 = vmul.f32 %v572, %v805
        %v808 = vmul.f32 %v573, %v805
        %v809 = vmul.f32 %v574, %v805
        %s810 = sld [smem:[#allocation9 + $0x1b]]
        %v811 = vstv %s810
        %v812 = vmul.f32 %v606, %v811
        %v813 = vmul.f32 %v607, %v811
        %v814 = vmul.f32 %v608, %v811
        %v815 = vmul.f32 %v609, %v811
        %s816 = sld [smem:[#allocation9 + $0x1c]]
        %v817 = vstv %s816
        %v818 = vmul.f32 %v594, %v817
        %v819 = vmul.f32 %v595, %v817
        %v820 = vmul.f32 %v596, %v817
        %v821 = vmul.f32 %v597, %v817
        %s822 = sld [smem:[#allocation9 + $0x1d]]
        %v823 = vstv %s822
        %v824 = vmul.f32 %v618, %v823
        %v825 = vmul.f32 %v619, %v823
        %v826 = vmul.f32 %v620, %v823
        %v827 = vmul.f32 %v621, %v823
        %v828 = vadd.f32 %v758, %v764
        %v829 = vadd.f32 %v759, %v765
        %v830 = vadd.f32 %v760, %v766
        %v831 = vadd.f32 %v761, %v767
        %v832 = vadd.f32 %v828, %v770
        %v833 = vadd.f32 %v829, %v771
        %v834 = vadd.f32 %v830, %v772
        %v835 = vadd.f32 %v831, %v773
        %v836 = vadd.f32 %v832, %v776
        %v837 = vadd.f32 %v833, %v777
        %v838 = vadd.f32 %v834, %v778
        %v839 = vadd.f32 %v835, %v779
        %v840 = vadd.f32 %v836, %v782
        %v841 = vadd.f32 %v837, %v783
        %v842 = vadd.f32 %v838, %v784
        %v843 = vadd.f32 %v839, %v785
        %v844 = vadd.f32 %v840, %v788
        %v845 = vadd.f32 %v841, %v789
        %v846 = vadd.f32 %v842, %v790
        %v847 = vadd.f32 %v843, %v791
        %v848 = vadd.f32 %v844, %v794
        %v849 = vadd.f32 %v845, %v795
        %v850 = vadd.f32 %v846, %v796
        %v851 = vadd.f32 %v847, %v797
        %v852 = vadd.f32 %v848, %v800
        %v853 = vadd.f32 %v849, %v801
        %v854 = vadd.f32 %v850, %v802
        %v855 = vadd.f32 %v851, %v803
        %v856 = vadd.f32 %v852, %v806
        %v857 = vadd.f32 %v853, %v807
        %v858 = vadd.f32 %v854, %v808
        %v859 = vadd.f32 %v855, %v809
        %v860 = vadd.f32 %v856, %v812
        %v861 = vadd.f32 %v857, %v813
        %v862 = vadd.f32 %v858, %v814
        %v863 = vadd.f32 %v859, %v815
        %v864 = vadd.f32 %v860, %v818
        %v865 = vadd.f32 %v861, %v819
        %v866 = vadd.f32 %v862, %v820
        %v867 = vadd.f32 %v863, %v821
        %v868 = vadd.f32 %v864, %v824
        %v869 = vadd.f32 %v865, %v825
        %v870 = vadd.f32 %v866, %v826
        %v871 = vadd.f32 %v867, %v827
        %s872 = sld [smem:[#allocation9 + $0x6]]
        %v873 = vstv %s872
        %v874 = vmul.f32 %v461, %v873
        %v875 = vmul.f32 %v462, %v873
        %v876 = vmul.f32 %v463, %v873
        %v877 = vmul.f32 %v464, %v873
        %s878 = sld [smem:[#allocation9 + $0x7]]
        %v879 = vstv %s878
        %v880 = vmul.f32 %v449, %v879
        %v881 = vmul.f32 %v450, %v879
        %v882 = vmul.f32 %v451, %v879
        %v883 = vmul.f32 %v452, %v879
        %s884 = sld [smem:[#allocation9 + $0x8]]
        %v885 = vstv %s884
        %v886 = vmul.f32 %v473, %v885
        %v887 = vmul.f32 %v474, %v885
        %v888 = vmul.f32 %v475, %v885
        %v889 = vmul.f32 %v476, %v885
        %s890 = sld [smem:[#allocation9 + $0xf]]
        %v891 = vstv %s890
        %v892 = vmul.f32 %v512, %v891
        %v893 = vmul.f32 %v513, %v891
        %v894 = vmul.f32 %v514, %v891
        %v895 = vmul.f32 %v515, %v891
        %s896 = sld [smem:[#allocation9 + $0x10]]
        %v897 = vstv %s896
        %v898 = vmul.f32 %v500, %v897
        %v899 = vmul.f32 %v501, %v897
        %v900 = vmul.f32 %v502, %v897
        %v901 = vmul.f32 %v503, %v897
        %s902 = sld [smem:[#allocation9 + $0x11]]
        %v903 = vstv %s902
        %v904 = vmul.f32 %v524, %v903
        %v905 = vmul.f32 %v525, %v903
        %v906 = vmul.f32 %v526, %v903
        %v907 = vmul.f32 %v527, %v903
        %s908 = sld [smem:[#allocation9 + $0x18]]
        %v909 = vstv %s908
        %v910 = vmul.f32 %v559, %v909
        %v911 = vmul.f32 %v560, %v909
        %v912 = vmul.f32 %v561, %v909
        %v913 = vmul.f32 %v562, %v909
        %s914 = sld [smem:[#allocation9 + $0x19]]
        %v915 = vstv %s914
        %v916 = vmul.f32 %v547, %v915
        %v917 = vmul.f32 %v548, %v915
        %v918 = vmul.f32 %v549, %v915
        %v919 = vmul.f32 %v550, %v915
        %s920 = sld [smem:[#allocation9 + $0x1a]]
        %v921 = vstv %s920
        %v922 = vmul.f32 %v571, %v921
        %v923 = vmul.f32 %v572, %v921
        %v924 = vmul.f32 %v573, %v921
        %v925 = vmul.f32 %v574, %v921
        %s926 = sld [smem:[#allocation9 + $0x21]]
        %v927 = vstv %s926
        %v928 = vmul.f32 %v606, %v927
        %v929 = vmul.f32 %v607, %v927
        %v930 = vmul.f32 %v608, %v927
        %v931 = vmul.f32 %v609, %v927
        %s932 = sld [smem:[#allocation9 + $0x22]]
        %v933 = vstv %s932
        %v934 = vmul.f32 %v594, %v933
        %v935 = vmul.f32 %v595, %v933
        %v936 = vmul.f32 %v596, %v933
        %v937 = vmul.f32 %v597, %v933
        %s938 = sld [smem:[#allocation9 + $0x23]]
        %v939 = vstv %s938
        %v940 = vmul.f32 %v618, %v939
        %v941 = vmul.f32 %v619, %v939
        %v942 = vmul.f32 %v620, %v939
        %v943 = vmul.f32 %v621, %v939
        %v944 = vadd.f32 %v874, %v880
        %v945 = vadd.f32 %v875, %v881
        %v946 = vadd.f32 %v876, %v882
        %v947 = vadd.f32 %v877, %v883
        %v948 = vadd.f32 %v944, %v886
        %v949 = vadd.f32 %v945, %v887
        %v950 = vadd.f32 %v946, %v888
        %v951 = vadd.f32 %v947, %v889
        %v952 = vadd.f32 %v948, %v892
        %v953 = vadd.f32 %v949, %v893
        %v954 = vadd.f32 %v950, %v894
        %v955 = vadd.f32 %v951, %v895
        %v956 = vadd.f32 %v952, %v898
        %v957 = vadd.f32 %v953, %v899
        %v958 = vadd.f32 %v954, %v900
        %v959 = vadd.f32 %v955, %v901
        %v960 = vadd.f32 %v956, %v904
        %v961 = vadd.f32 %v957, %v905
        %v962 = vadd.f32 %v958, %v906
        %v963 = vadd.f32 %v959, %v907
        %v964 = vadd.f32 %v960, %v910
        %v965 = vadd.f32 %v961, %v911
        %v966 = vadd.f32 %v962, %v912
        %v967 = vadd.f32 %v963, %v913
        %v968 = vadd.f32 %v964, %v916
        %v969 = vadd.f32 %v965, %v917
        %v970 = vadd.f32 %v966, %v918
        %v971 = vadd.f32 %v967, %v919
        %v972 = vadd.f32 %v968, %v922
        %v973 = vadd.f32 %v969, %v923
        %v974 = vadd.f32 %v970, %v924
        %v975 = vadd.f32 %v971, %v925
        %v976 = vadd.f32 %v972, %v928
        %v977 = vadd.f32 %v973, %v929
        %v978 = vadd.f32 %v974, %v930
        %v979 = vadd.f32 %v975, %v931
        %v980 = vadd.f32 %v976, %v934
        %v981 = vadd.f32 %v977, %v935
        %v982 = vadd.f32 %v978, %v936
        %v983 = vadd.f32 %v979, %v937
        %v984 = vadd.f32 %v980, %v940
        %v985 = vadd.f32 %v981, %v941
        %v986 = vadd.f32 %v982, %v942
        %v987 = vadd.f32 %v983, %v943
        %v988 = vmul.f32 %v484, %v757
        %v989 = vmul.f32 %v481, %v763
        %v990 = vmul.f32 %v487, %v769
        %v991 = vmul.f32 %v533, %v775
        %v992 = vmul.f32 %v530, %v781
        %v993 = vmul.f32 %v536, %v787
        %v994 = vmul.f32 %v580, %v793
        %v995 = vmul.f32 %v577, %v799
        %v996 = vmul.f32 %v583, %v805
        %v997 = vmul.f32 %v627, %v811
        %v998 = vmul.f32 %v624, %v817
        %v999 = vmul.f32 %v630, %v823
        %v1000 = vadd.f32 %v988, %v989
        %v1001 = vadd.f32 %v1000, %v990
        %v1002 = vadd.f32 %v1001, %v991
        %v1003 = vadd.f32 %v1002, %v992
        %v1004 = vadd.f32 %v1003, %v993
        %v1005 = vadd.f32 %v1004, %v994
        %v1006 = vadd.f32 %v1005, %v995
        %v1007 = vadd.f32 %v1006, %v996
        %v1008 = vadd.f32 %v1007, %v997
        %v1009 = vadd.f32 %v1008, %v998
        %v1010 = vadd.f32 %v1009, %v999
        %v1011 = vmul.f32 %v495, %v873
        %v1012 = vmul.f32 %v492, %v879
        %v1013 = vmul.f32 %v498, %v885
        %v1014 = vmul.f32 %v542, %v891
        %v1015 = vmul.f32 %v539, %v897
        %v1016 = vmul.f32 %v545, %v903
        %v1017 = vmul.f32 %v589, %v909
        %v1018 = vmul.f32 %v586, %v915
        %v1019 = vmul.f32 %v592, %v921
        %v1020 = vmul.f32 %v636, %v927
        %v1021 = vmul.f32 %v633, %v933
        %v1022 = vmul.f32 %v639, %v939
        %v1023 = vadd.f32 %v1011, %v1012
        %v1024 = vadd.f32 %v1023, %v1013
        %v1025 = vadd.f32 %v1024, %v1014
        %v1026 = vadd.f32 %v1025, %v1015
        %v1027 = vadd.f32 %v1026, %v1016
        %v1028 = vadd.f32 %v1027, %v1017
        %v1029 = vadd.f32 %v1028, %v1018
        %v1030 = vadd.f32 %v1029, %v1019
        %v1031 = vadd.f32 %v1030, %v1020
        %v1032 = vadd.f32 %v1031, %v1021
        %v1033 = vadd.f32 %v1032, %v1022
        %v1034 = vrot.slane %v868, 7
        %v1035 = vrot.slane %v869, 7
        %v1036 = vrot.slane %v870, 7
        %v1037 = vrot.slane %v871, 7
        %vm1038 = vcmp.lt.s32.totalorder %v437, 1
        %v1039 = vsel %vm1038, %v1036, %v1037
        %v1040 = vsel %vm1038, %v1035, %v1036
        %v1041 = vsel %vm1038, %v1034, %v1035
        %v1042 = vsel %vm1038, %v1037, %v1034
        %v1043 = vlaneseq
        %v1044 = vshrl.u32 %v1043, 7
        %v1045 = vsub.s32 0, %v1044
        %v1046 = vrot.slane %v1010, %v1045
        %v1047 = vsel %vm441, %v1046, %v1042
        %v1048 = vsel %vm442, %v1046, %v1041
        %v1049 = vsel %vm443, %v1046, %v1040
        %v1050 = vsel %vm444, %v1046, %v1039
        %v1051 = vrot.slane %v984, 1
        %v1052 = vrot.slane %v985, 1
        %v1053 = vrot.slane %v986, 1
        %v1054 = vrot.slane %v987, 1
        %vm1055 = vcmp.lt.s32.totalorder %v437, 7
        %v1056 = vsel %vm1055, %v1053, %v1054
        %v1057 = vsel %vm1055, %v1052, %v1053
        %v1058 = vsel %vm1055, %v1051, %v1052
        %v1059 = vsel %vm1055, %v1054, %v1051
        %v1060 = vlaneseq
        %v1061 = vshrl.u32 %v1060, 7
        %v1062 = vsub.s32 0, %v1061
        %v1063 = vrot.slane %v1033, %v1062
        %v1064 = vsel %vm445, %v1063, %v1058
        %v1065 = vsel %vm446, %v1063, %v1057
        %v1066 = vsel %vm447, %v1063, %v1056
        %v1067 = vsel %vm448, %v1063, %v1059
        %v1068 = vadd.f32 %v752, %v1047
        %v1069 = vadd.f32 %v753, %v1048
        %v1070 = vadd.f32 %v754, %v1049
        %v1071 = vadd.f32 %v755, %v1050
        %v1072 = vadd.f32 %v1068, %v1064
        %v1073 = vadd.f32 %v1069, %v1065
        %v1074 = vadd.f32 %v1070, %v1066
        %v1075 = vadd.f32 %v1071, %v1067
        %s1076 = sld [smem:[#allocation10]]
        %v1077 = vstv %s1076
        %v1078 = vadd.f32 %v1072, %v1077
        %v1079 = vadd.f32 %v1073, %v1077
        %v1080 = vadd.f32 %v1074, %v1077
        %v1081 = vadd.f32 %v1075, %v1077
        %v1082 = vtanh.pop %v1078
        %v1083 = vtanh.pop %v1079
        %v1084 = vtanh.pop %v1080
        %v1085 = vtanh.pop %v1081
        %1086 = vst [vmem:[%s419] sm:$0xff] %v1082
        %1087 = vst [vmem:[%s419 + $0x8] sm:$0xff] %v1083
        %1088 = vst [vmem:[%s419 + $0x10] sm:$0xff] %v1084
        %1089 = vst [vmem:[%s419 + $0x18] sm:$0xff] %v1085
        %s1090 = sld [smem:[#allocation9 + $0x27]]
        %v1091 = vstv %s1090
        %v1092 = vmul.f32 %v461, %v1091
        %v1093 = vmul.f32 %v462, %v1091
        %v1094 = vmul.f32 %v463, %v1091
        %v1095 = vmul.f32 %v464, %v1091
        %s1096 = sld [smem:[#allocation9 + $0x28]]
        %v1097 = vstv %s1096
        %v1098 = vmul.f32 %v449, %v1097
        %v1099 = vmul.f32 %v450, %v1097
        %v1100 = vmul.f32 %v451, %v1097
        %v1101 = vmul.f32 %v452, %v1097
        %s1102 = sld [smem:[#allocation9 + $0x29]]
        %v1103 = vstv %s1102
        %v1104 = vmul.f32 %v473, %v1103
        %v1105 = vmul.f32 %v474, %v1103
        %v1106 = vmul.f32 %v475, %v1103
        %v1107 = vmul.f32 %v476, %v1103
        %s1108 = sld [smem:[#allocation9 + $0x30]]
        %v1109 = vstv %s1108
        %v1110 = vmul.f32 %v512, %v1109
        %v1111 = vmul.f32 %v513, %v1109
        %v1112 = vmul.f32 %v514, %v1109
        %v1113 = vmul.f32 %v515, %v1109
        %s1114 = sld [smem:[#allocation9 + $0x31]]
        %v1115 = vstv %s1114
        %v1116 = vmul.f32 %v500, %v1115
        %v1117 = vmul.f32 %v501, %v1115
        %v1118 = vmul.f32 %v502, %v1115
        %v1119 = vmul.f32 %v503, %v1115
        %s1120 = sld [smem:[#allocation9 + $0x32]]
        %v1121 = vstv %s1120
        %v1122 = vmul.f32 %v524, %v1121
        %v1123 = vmul.f32 %v525, %v1121
        %v1124 = vmul.f32 %v526, %v1121
        %v1125 = vmul.f32 %v527, %v1121
        %s1126 = sld [smem:[#allocation9 + $0x39]]
        %v1127 = vstv %s1126
        %v1128 = vmul.f32 %v559, %v1127
        %v1129 = vmul.f32 %v560, %v1127
        %v1130 = vmul.f32 %v561, %v1127
        %v1131 = vmul.f32 %v562, %v1127
        %s1132 = sld [smem:[#allocation9 + $0x3a]]
        %v1133 = vstv %s1132
        %v1134 = vmul.f32 %v547, %v1133
        %v1135 = vmul.f32 %v548, %v1133
        %v1136 = vmul.f32 %v549, %v1133
        %v1137 = vmul.f32 %v550, %v1133
        %s1138 = sld [smem:[#allocation9 + $0x3b]]
        %v1139 = vstv %s1138
        %v1140 = vmul.f32 %v571, %v1139
        %v1141 = vmul.f32 %v572, %v1139
        %v1142 = vmul.f32 %v573, %v1139
        %v1143 = vmul.f32 %v574, %v1139
        %s1144 = sld [smem:[#allocation9 + $0x42]]
        %v1145 = vstv %s1144
        %v1146 = vmul.f32 %v606, %v1145
        %v1147 = vmul.f32 %v607, %v1145
        %v1148 = vmul.f32 %v608, %v1145
        %v1149 = vmul.f32 %v609, %v1145
        %s1150 = sld [smem:[#allocation9 + $0x43]]
        %v1151 = vstv %s1150
        %v1152 = vmul.f32 %v594, %v1151
        %v1153 = vmul.f32 %v595, %v1151
        %v1154 = vmul.f32 %v596, %v1151
        %v1155 = vmul.f32 %v597, %v1151
        %s1156 = sld [smem:[#allocation9 + $0x44]]
        %v1157 = vstv %s1156
        %v1158 = vmul.f32 %v618, %v1157
        %v1159 = vmul.f32 %v619, %v1157
        %v1160 = vmul.f32 %v620, %v1157
        %v1161 = vmul.f32 %v621, %v1157
        %v1162 = vadd.f32 %v1092, %v1098
        %v1163 = vadd.f32 %v1093, %v1099
        %v1164 = vadd.f32 %v1094, %v1100
        %v1165 = vadd.f32 %v1095, %v1101
        %v1166 = vadd.f32 %v1162, %v1104
        %v1167 = vadd.f32 %v1163, %v1105
        %v1168 = vadd.f32 %v1164, %v1106
        %v1169 = vadd.f32 %v1165, %v1107
        %v1170 = vadd.f32 %v1166, %v1110
        %v1171 = vadd.f32 %v1167, %v1111
        %v1172 = vadd.f32 %v1168, %v1112
        %v1173 = vadd.f32 %v1169, %v1113
        %v1174 = vadd.f32 %v1170, %v1116
        %v1175 = vadd.f32 %v1171, %v1117
        %v1176 = vadd.f32 %v1172, %v1118
        %v1177 = vadd.f32 %v1173, %v1119
        %v1178 = vadd.f32 %v1174, %v1122
        %v1179 = vadd.f32 %v1175, %v1123
        %v1180 = vadd.f32 %v1176, %v1124
        %v1181 = vadd.f32 %v1177, %v1125
        %v1182 = vadd.f32 %v1178, %v1128
        %v1183 = vadd.f32 %v1179, %v1129
        %v1184 = vadd.f32 %v1180, %v1130
        %v1185 = vadd.f32 %v1181, %v1131
        %v1186 = vadd.f32 %v1182, %v1134
        %v1187 = vadd.f32 %v1183, %v1135
        %v1188 = vadd.f32 %v1184, %v1136
        %v1189 = vadd.f32 %v1185, %v1137
        %v1190 = vadd.f32 %v1186, %v1140
        %v1191 = vadd.f32 %v1187, %v1141
        %v1192 = vadd.f32 %v1188, %v1142
        %v1193 = vadd.f32 %v1189, %v1143
        %v1194 = vadd.f32 %v1190, %v1146
        %v1195 = vadd.f32 %v1191, %v1147
        %v1196 = vadd.f32 %v1192, %v1148
        %v1197 = vadd.f32 %v1193, %v1149
        %v1198 = vadd.f32 %v1194, %v1152
        %v1199 = vadd.f32 %v1195, %v1153
        %v1200 = vadd.f32 %v1196, %v1154
        %v1201 = vadd.f32 %v1197, %v1155
        %v1202 = vadd.f32 %v1198, %v1158
        %v1203 = vadd.f32 %v1199, %v1159
        %v1204 = vadd.f32 %v1200, %v1160
        %v1205 = vadd.f32 %v1201, %v1161
        %s1206 = sld [smem:[#allocation9 + $0x24]]
        %v1207 = vstv %s1206
        %v1208 = vmul.f32 %v461, %v1207
        %v1209 = vmul.f32 %v462, %v1207
        %v1210 = vmul.f32 %v463, %v1207
        %v1211 = vmul.f32 %v464, %v1207
        %s1212 = sld [smem:[#allocation9 + $0x25]]
        %v1213 = vstv %s1212
        %v1214 = vmul.f32 %v449, %v1213
        %v1215 = vmul.f32 %v450, %v1213
        %v1216 = vmul.f32 %v451, %v1213
        %v1217 = vmul.f32 %v452, %v1213
        %s1218 = sld [smem:[#allocation9 + $0x26]]
        %v1219 = vstv %s1218
        %v1220 = vmul.f32 %v473, %v1219
        %v1221 = vmul.f32 %v474, %v1219
        %v1222 = vmul.f32 %v475, %v1219
        %v1223 = vmul.f32 %v476, %v1219
        %s1224 = sld [smem:[#allocation9 + $0x2d]]
        %v1225 = vstv %s1224
        %v1226 = vmul.f32 %v512, %v1225
        %v1227 = vmul.f32 %v513, %v1225
        %v1228 = vmul.f32 %v514, %v1225
        %v1229 = vmul.f32 %v515, %v1225
        %s1230 = sld [smem:[#allocation9 + $0x2e]]
        %v1231 = vstv %s1230
        %v1232 = vmul.f32 %v500, %v1231
        %v1233 = vmul.f32 %v501, %v1231
        %v1234 = vmul.f32 %v502, %v1231
        %v1235 = vmul.f32 %v503, %v1231
        %s1236 = sld [smem:[#allocation9 + $0x2f]]
        %v1237 = vstv %s1236
        %v1238 = vmul.f32 %v524, %v1237
        %v1239 = vmul.f32 %v525, %v1237
        %v1240 = vmul.f32 %v526, %v1237
        %v1241 = vmul.f32 %v527, %v1237
        %s1242 = sld [smem:[#allocation9 + $0x36]]
        %v1243 = vstv %s1242
        %v1244 = vmul.f32 %v559, %v1243
        %v1245 = vmul.f32 %v560, %v1243
        %v1246 = vmul.f32 %v561, %v1243
        %v1247 = vmul.f32 %v562, %v1243
        %s1248 = sld [smem:[#allocation9 + $0x37]]
        %v1249 = vstv %s1248
        %v1250 = vmul.f32 %v547, %v1249
        %v1251 = vmul.f32 %v548, %v1249
        %v1252 = vmul.f32 %v549, %v1249
        %v1253 = vmul.f32 %v550, %v1249
        %s1254 = sld [smem:[#allocation9 + $0x38]]
        %v1255 = vstv %s1254
        %v1256 = vmul.f32 %v571, %v1255
        %v1257 = vmul.f32 %v572, %v1255
        %v1258 = vmul.f32 %v573, %v1255
        %v1259 = vmul.f32 %v574, %v1255
        %s1260 = sld [smem:[#allocation9 + $0x3f]]
        %v1261 = vstv %s1260
        %v1262 = vmul.f32 %v606, %v1261
        %v1263 = vmul.f32 %v607, %v1261
        %v1264 = vmul.f32 %v608, %v1261
        %v1265 = vmul.f32 %v609, %v1261
        %s1266 = sld [smem:[#allocation9 + $0x40]]
        %v1267 = vstv %s1266
        %v1268 = vmul.f32 %v594, %v1267
        %v1269 = vmul.f32 %v595, %v1267
        %v1270 = vmul.f32 %v596, %v1267
        %v1271 = vmul.f32 %v597, %v1267
        %s1272 = sld [smem:[#allocation9 + $0x41]]
        %v1273 = vstv %s1272
        %v1274 = vmul.f32 %v618, %v1273
        %v1275 = vmul.f32 %v619, %v1273
        %v1276 = vmul.f32 %v620, %v1273
        %v1277 = vmul.f32 %v621, %v1273
        %v1278 = vadd.f32 %v1208, %v1214
        %v1279 = vadd.f32 %v1209, %v1215
        %v1280 = vadd.f32 %v1210, %v1216
        %v1281 = vadd.f32 %v1211, %v1217
        %v1282 = vadd.f32 %v1278, %v1220
        %v1283 = vadd.f32 %v1279, %v1221
        %v1284 = vadd.f32 %v1280, %v1222
        %v1285 = vadd.f32 %v1281, %v1223
        %v1286 = vadd.f32 %v1282, %v1226
        %v1287 = vadd.f32 %v1283, %v1227
        %v1288 = vadd.f32 %v1284, %v1228
        %v1289 = vadd.f32 %v1285, %v1229
        %v1290 = vadd.f32 %v1286, %v1232
        %v1291 = vadd.f32 %v1287, %v1233
        %v1292 = vadd.f32 %v1288, %v1234
        %v1293 = vadd.f32 %v1289, %v1235
        %v1294 = vadd.f32 %v1290, %v1238
        %v1295 = vadd.f32 %v1291, %v1239
        %v1296 = vadd.f32 %v1292, %v1240
        %v1297 = vadd.f32 %v1293, %v1241
        %v1298 = vadd.f32 %v1294, %v1244
        %v1299 = vadd.f32 %v1295, %v1245
        %v1300 = vadd.f32 %v1296, %v1246
        %v1301 = vadd.f32 %v1297, %v1247
        %v1302 = vadd.f32 %v1298, %v1250
        %v1303 = vadd.f32 %v1299, %v1251
        %v1304 = vadd.f32 %v1300, %v1252
        %v1305 = vadd.f32 %v1301, %v1253
        %v1306 = vadd.f32 %v1302, %v1256
        %v1307 = vadd.f32 %v1303, %v1257
        %v1308 = vadd.f32 %v1304, %v1258
        %v1309 = vadd.f32 %v1305, %v1259
        %v1310 = vadd.f32 %v1306, %v1262
        %v1311 = vadd.f32 %v1307, %v1263
        %v1312 = vadd.f32 %v1308, %v1264
        %v1313 = vadd.f32 %v1309, %v1265
        %v1314 = vadd.f32 %v1310, %v1268
        %v1315 = vadd.f32 %v1311, %v1269
        %v1316 = vadd.f32 %v1312, %v1270
        %v1317 = vadd.f32 %v1313, %v1271
        %v1318 = vadd.f32 %v1314, %v1274
        %v1319 = vadd.f32 %v1315, %v1275
        %v1320 = vadd.f32 %v1316, %v1276
        %v1321 = vadd.f32 %v1317, %v1277
        %s1322 = sld [smem:[#allocation9 + $0x2a]]
        %v1323 = vstv %s1322
        %v1324 = vmul.f32 %v461, %v1323
        %v1325 = vmul.f32 %v462, %v1323
        %v1326 = vmul.f32 %v463, %v1323
        %v1327 = vmul.f32 %v464, %v1323
        %s1328 = sld [smem:[#allocation9 + $0x2b]]
        %v1329 = vstv %s1328
        %v1330 = vmul.f32 %v449, %v1329
        %v1331 = vmul.f32 %v450, %v1329
        %v1332 = vmul.f32 %v451, %v1329
        %v1333 = vmul.f32 %v452, %v1329
        %s1334 = sld [smem:[#allocation9 + $0x2c]]
        %v1335 = vstv %s1334
        %v1336 = vmul.f32 %v473, %v1335
        %v1337 = vmul.f32 %v474, %v1335
        %v1338 = vmul.f32 %v475, %v1335
        %v1339 = vmul.f32 %v476, %v1335
        %s1340 = sld [smem:[#allocation9 + $0x33]]
        %v1341 = vstv %s1340
        %v1342 = vmul.f32 %v512, %v1341
        %v1343 = vmul.f32 %v513, %v1341
        %v1344 = vmul.f32 %v514, %v1341
        %v1345 = vmul.f32 %v515, %v1341
        %s1346 = sld [smem:[#allocation9 + $0x34]]
        %v1347 = vstv %s1346
        %v1348 = vmul.f32 %v500, %v1347
        %v1349 = vmul.f32 %v501, %v1347
        %v1350 = vmul.f32 %v502, %v1347
        %v1351 = vmul.f32 %v503, %v1347
        %s1352 = sld [smem:[#allocation9 + $0x35]]
        %v1353 = vstv %s1352
        %v1354 = vmul.f32 %v524, %v1353
        %v1355 = vmul.f32 %v525, %v1353
        %v1356 = vmul.f32 %v526, %v1353
        %v1357 = vmul.f32 %v527, %v1353
        %s1358 = sld [smem:[#allocation9 + $0x3c]]
        %v1359 = vstv %s1358
        %v1360 = vmul.f32 %v559, %v1359
        %v1361 = vmul.f32 %v560, %v1359
        %v1362 = vmul.f32 %v561, %v1359
        %v1363 = vmul.f32 %v562, %v1359
        %s1364 = sld [smem:[#allocation9 + $0x3d]]
        %v1365 = vstv %s1364
        %v1366 = vmul.f32 %v547, %v1365
        %v1367 = vmul.f32 %v548, %v1365
        %v1368 = vmul.f32 %v549, %v1365
        %v1369 = vmul.f32 %v550, %v1365
        %s1370 = sld [smem:[#allocation9 + $0x3e]]
        %v1371 = vstv %s1370
        %v1372 = vmul.f32 %v571, %v1371
        %v1373 = vmul.f32 %v572, %v1371
        %v1374 = vmul.f32 %v573, %v1371
        %v1375 = vmul.f32 %v574, %v1371
        %s1376 = sld [smem:[#allocation9 + $0x45]]
        %v1377 = vstv %s1376
        %v1378 = vmul.f32 %v606, %v1377
        %v1379 = vmul.f32 %v607, %v1377
        %v1380 = vmul.f32 %v608, %v1377
        %v1381 = vmul.f32 %v609, %v1377
        %s1382 = sld [smem:[#allocation9 + $0x46]]
        %v1383 = vstv %s1382
        %v1384 = vmul.f32 %v594, %v1383
        %v1385 = vmul.f32 %v595, %v1383
        %v1386 = vmul.f32 %v596, %v1383
        %v1387 = vmul.f32 %v597, %v1383
        %s1388 = sld [smem:[#allocation9 + $0x47]]
        %v1389 = vstv %s1388
        %v1390 = vmul.f32 %v618, %v1389
        %v1391 = vmul.f32 %v619, %v1389
        %v1392 = vmul.f32 %v620, %v1389
        %v1393 = vmul.f32 %v621, %v1389
        %v1394 = vadd.f32 %v1324, %v1330
        %v1395 = vadd.f32 %v1325, %v1331
        %v1396 = vadd.f32 %v1326, %v1332
        %v1397 = vadd.f32 %v1327, %v1333
        %v1398 = vadd.f32 %v1394, %v1336
        %v1399 = vadd.f32 %v1395, %v1337
        %v1400 = vadd.f32 %v1396, %v1338
        %v1401 = vadd.f32 %v1397, %v1339
        %v1402 = vadd.f32 %v1398, %v1342
        %v1403 = vadd.f32 %v1399, %v1343
        %v1404 = vadd.f32 %v1400, %v1344
        %v1405 = vadd.f32 %v1401, %v1345
        %v1406 = vadd.f32 %v1402, %v1348
        %v1407 = vadd.f32 %v1403, %v1349
        %v1408 = vadd.f32 %v1404, %v1350
        %v1409 = vadd.f32 %v1405, %v1351
        %v1410 = vadd.f32 %v1406, %v1354
        %v1411 = vadd.f32 %v1407, %v1355
        %v1412 = vadd.f32 %v1408, %v1356
        %v1413 = vadd.f32 %v1409, %v1357
        %v1414 = vadd.f32 %v1410, %v1360
        %v1415 = vadd.f32 %v1411, %v1361
        %v1416 = vadd.f32 %v1412, %v1362
        %v1417 = vadd.f32 %v1413, %v1363
        %v1418 = vadd.f32 %v1414, %v1366
        %v1419 = vadd.f32 %v1415, %v1367
        %v1420 = vadd.f32 %v1416, %v1368
        %v1421 = vadd.f32 %v1417, %v1369
        %v1422 = vadd.f32 %v1418, %v1372
        %v1423 = vadd.f32 %v1419, %v1373
        %v1424 = vadd.f32 %v1420, %v1374
        %v1425 = vadd.f32 %v1421, %v1375
        %v1426 = vadd.f32 %v1422, %v1378
        %v1427 = vadd.f32 %v1423, %v1379
        %v1428 = vadd.f32 %v1424, %v1380
        %v1429 = vadd.f32 %v1425, %v1381
        %v1430 = vadd.f32 %v1426, %v1384
        %v1431 = vadd.f32 %v1427, %v1385
        %v1432 = vadd.f32 %v1428, %v1386
        %v1433 = vadd.f32 %v1429, %v1387
        %v1434 = vadd.f32 %v1430, %v1390
        %v1435 = vadd.f32 %v1431, %v1391
        %v1436 = vadd.f32 %v1432, %v1392
        %v1437 = vadd.f32 %v1433, %v1393
        %v1438 = vmul.f32 %v484, %v1207
        %v1439 = vmul.f32 %v481, %v1213
        %v1440 = vmul.f32 %v487, %v1219
        %v1441 = vmul.f32 %v533, %v1225
        %v1442 = vmul.f32 %v530, %v1231
        %v1443 = vmul.f32 %v536, %v1237
        %v1444 = vmul.f32 %v580, %v1243
        %v1445 = vmul.f32 %v577, %v1249
        %v1446 = vmul.f32 %v583, %v1255
        %v1447 = vmul.f32 %v627, %v1261
        %v1448 = vmul.f32 %v624, %v1267
        %v1449 = vmul.f32 %v630, %v1273
        %v1450 = vadd.f32 %v1438, %v1439
        %v1451 = vadd.f32 %v1450, %v1440
        %v1452 = vadd.f32 %v1451, %v1441
        %v1453 = vadd.f32 %v1452, %v1442
        %v1454 = vadd.f32 %v1453, %v1443
        %v1455 = vadd.f32 %v1454, %v1444
        %v1456 = vadd.f32 %v1455, %v1445
        %v1457 = vadd.f32 %v1456, %v1446
        %v1458 = vadd.f32 %v1457, %v1447
        %v1459 = vadd.f32 %v1458, %v1448
        %v1460 = vadd.f32 %v1459, %v1449
        %v1461 = vmul.f32 %v495, %v1323
        %v1462 = vmul.f32 %v492, %v1329
        %v1463 = vmul.f32 %v498, %v1335
        %v1464 = vmul.f32 %v542, %v1341
        %v1465 = vmul.f32 %v539, %v1347
        %v1466 = vmul.f32 %v545, %v1353
        %v1467 = vmul.f32 %v589, %v1359
        %v1468 = vmul.f32 %v586, %v1365
        %v1469 = vmul.f32 %v592, %v1371
        %v1470 = vmul.f32 %v636, %v1377
        %v1471 = vmul.f32 %v633, %v1383
        %v1472 = vmul.f32 %v639, %v1389
        %v1473 = vadd.f32 %v1461, %v1462
        %v1474 = vadd.f32 %v1473, %v1463
        %v1475 = vadd.f32 %v1474, %v1464
        %v1476 = vadd.f32 %v1475, %v1465
        %v1477 = vadd.f32 %v1476, %v1466
        %v1478 = vadd.f32 %v1477, %v1467
        %v1479 = vadd.f32 %v1478, %v1468
        %v1480 = vadd.f32 %v1479, %v1469
        %v1481 = vadd.f32 %v1480, %v1470
        %v1482 = vadd.f32 %v1481, %v1471
        %v1483 = vadd.f32 %v1482, %v1472
        %v1484 = vrot.slane %v1318, 7
        %v1485 = vrot.slane %v1319, 7
        %v1486 = vrot.slane %v1320, 7
        %v1487 = vrot.slane %v1321, 7
        %v1488 = vsel %vm1038, %v1486, %v1487
        %v1489 = vsel %vm1038, %v1485, %v1486
        %v1490 = vsel %vm1038, %v1484, %v1485
        %v1491 = vsel %vm1038, %v1487, %v1484
        %v1492 = vlaneseq
        %v1493 = vshrl.u32 %v1492, 7
        %v1494 = vsub.s32 0, %v1493
        %v1495 = vrot.slane %v1460, %v1494
        %v1496 = vsel %vm441, %v1495, %v1491
        %v1497 = vsel %vm442, %v1495, %v1490
        %v1498 = vsel %vm443, %v1495, %v1489
        %v1499 = vsel %vm444, %v1495, %v1488
        %v1500 = vrot.slane %v1434, 1
        %v1501 = vrot.slane %v1435, 1
        %v1502 = vrot.slane %v1436, 1
        %v1503 = vrot.slane %v1437, 1
        %v1504 = vsel %vm1055, %v1502, %v1503
        %v1505 = vsel %vm1055, %v1501, %v1502
        %v1506 = vsel %vm1055, %v1500, %v1501
        %v1507 = vsel %vm1055, %v1503, %v1500
        %v1508 = vlaneseq
        %v1509 = vshrl.u32 %v1508, 7
        %v1510 = vsub.s32 0, %v1509
        %v1511 = vrot.slane %v1483, %v1510
        %v1512 = vsel %vm445, %v1511, %v1506
        %v1513 = vsel %vm446, %v1511, %v1505
        %v1514 = vsel %vm447, %v1511, %v1504
        %v1515 = vsel %vm448, %v1511, %v1507
        %v1516 = vadd.f32 %v1202, %v1496
        %v1517 = vadd.f32 %v1203, %v1497
        %v1518 = vadd.f32 %v1204, %v1498
        %v1519 = vadd.f32 %v1205, %v1499
        %v1520 = vadd.f32 %v1516, %v1512
        %v1521 = vadd.f32 %v1517, %v1513
        %v1522 = vadd.f32 %v1518, %v1514
        %v1523 = vadd.f32 %v1519, %v1515
        %s1524 = sld [smem:[#allocation10 + $0x1]]
        %v1525 = vstv %s1524
        %v1526 = vadd.f32 %v1520, %v1525
        %v1527 = vadd.f32 %v1521, %v1525
        %v1528 = vadd.f32 %v1522, %v1525
        %v1529 = vadd.f32 %v1523, %v1525
        %v1530 = vtanh.pop %v1526
        %v1531 = vtanh.pop %v1527
        %v1532 = vtanh.pop %v1528
        %v1533 = vtanh.pop %v1529
        %s1534 = scalar_lea.vmem %s419, 32 [#allocation12]
        %1535 = vst [vmem:[%s1534] sm:$0xff] %v1530
        %1536 = vst [vmem:[%s1534 + $0x8] sm:$0xff] %v1531
        %1537 = vst [vmem:[%s1534 + $0x10] sm:$0xff] %v1532
        %1538 = vst [vmem:[%s1534 + $0x18] sm:$0xff] %v1533
        %s1539 = sld [smem:[#allocation9 + $0x4b]]
        %v1540 = vstv %s1539
        %v1541 = vmul.f32 %v461, %v1540
        %v1542 = vmul.f32 %v462, %v1540
        %v1543 = vmul.f32 %v463, %v1540
        %v1544 = vmul.f32 %v464, %v1540
        %s1545 = sld [smem:[#allocation9 + $0x4c]]
        %v1546 = vstv %s1545
        %v1547 = vmul.f32 %v449, %v1546
        %v1548 = vmul.f32 %v450, %v1546
        %v1549 = vmul.f32 %v451, %v1546
        %v1550 = vmul.f32 %v452, %v1546
        %s1551 = sld [smem:[#allocation9 + $0x4d]]
        %v1552 = vstv %s1551
        %v1553 = vmul.f32 %v473, %v1552
        %v1554 = vmul.f32 %v474, %v1552
        %v1555 = vmul.f32 %v475, %v1552
        %v1556 = vmul.f32 %v476, %v1552
        %s1557 = sld [smem:[#allocation9 + $0x54]]
        %v1558 = vstv %s1557
        %v1559 = vmul.f32 %v512, %v1558
        %v1560 = vmul.f32 %v513, %v1558
        %v1561 = vmul.f32 %v514, %v1558
        %v1562 = vmul.f32 %v515, %v1558
        %s1563 = sld [smem:[#allocation9 + $0x55]]
        %v1564 = vstv %s1563
        %v1565 = vmul.f32 %v500, %v1564
        %v1566 = vmul.f32 %v501, %v1564
        %v1567 = vmul.f32 %v502, %v1564
        %v1568 = vmul.f32 %v503, %v1564
        %s1569 = sld [smem:[#allocation9 + $0x56]]
        %v1570 = vstv %s1569
        %v1571 = vmul.f32 %v524, %v1570
        %v1572 = vmul.f32 %v525, %v1570
        %v1573 = vmul.f32 %v526, %v1570
        %v1574 = vmul.f32 %v527, %v1570
        %s1575 = sld [smem:[#allocation9 + $0x5d]]
        %v1576 = vstv %s1575
        %v1577 = vmul.f32 %v559, %v1576
        %v1578 = vmul.f32 %v560, %v1576
        %v1579 = vmul.f32 %v561, %v1576
        %v1580 = vmul.f32 %v562, %v1576
        %s1581 = sld [smem:[#allocation9 + $0x5e]]
        %v1582 = vstv %s1581
        %v1583 = vmul.f32 %v547, %v1582
        %v1584 = vmul.f32 %v548, %v1582
        %v1585 = vmul.f32 %v549, %v1582
        %v1586 = vmul.f32 %v550, %v1582
        %s1587 = sld [smem:[#allocation9 + $0x5f]]
        %v1588 = vstv %s1587
        %v1589 = vmul.f32 %v571, %v1588
        %v1590 = vmul.f32 %v572, %v1588
        %v1591 = vmul.f32 %v573, %v1588
        %v1592 = vmul.f32 %v574, %v1588
        %s1593 = sld [smem:[#allocation9 + $0x66]]
        %v1594 = vstv %s1593
        %v1595 = vmul.f32 %v606, %v1594
        %v1596 = vmul.f32 %v607, %v1594
        %v1597 = vmul.f32 %v608, %v1594
        %v1598 = vmul.f32 %v609, %v1594
        %s1599 = sld [smem:[#allocation9 + $0x67]]
        %v1600 = vstv %s1599
        %v1601 = vmul.f32 %v594, %v1600
        %v1602 = vmul.f32 %v595, %v1600
        %v1603 = vmul.f32 %v596, %v1600
        %v1604 = vmul.f32 %v597, %v1600
        %s1605 = sld [smem:[#allocation9 + $0x68]]
        %v1606 = vstv %s1605
        %v1607 = vmul.f32 %v618, %v1606
        %v1608 = vmul.f32 %v619, %v1606
        %v1609 = vmul.f32 %v620, %v1606
        %v1610 = vmul.f32 %v621, %v1606
        %v1611 = vadd.f32 %v1541, %v1547
        %v1612 = vadd.f32 %v1542, %v1548
        %v1613 = vadd.f32 %v1543, %v1549
        %v1614 = vadd.f32 %v1544, %v1550
        %v1615 = vadd.f32 %v1611, %v1553
        %v1616 = vadd.f32 %v1612, %v1554
        %v1617 = vadd.f32 %v1613, %v1555
        %v1618 = vadd.f32 %v1614, %v1556
        %v1619 = vadd.f32 %v1615, %v1559
        %v1620 = vadd.f32 %v1616, %v1560
        %v1621 = vadd.f32 %v1617, %v1561
        %v1622 = vadd.f32 %v1618, %v1562
        %v1623 = vadd.f32 %v1619, %v1565
        %v1624 = vadd.f32 %v1620, %v1566
        %v1625 = vadd.f32 %v1621, %v1567
        %v1626 = vadd.f32 %v1622, %v1568
        %v1627 = vadd.f32 %v1623, %v1571
        %v1628 = vadd.f32 %v1624, %v1572
        %v1629 = vadd.f32 %v1625, %v1573
        %v1630 = vadd.f32 %v1626, %v1574
        %v1631 = vadd.f32 %v1627, %v1577
        %v1632 = vadd.f32 %v1628, %v1578
        %v1633 = vadd.f32 %v1629, %v1579
        %v1634 = vadd.f32 %v1630, %v1580
        %v1635 = vadd.f32 %v1631, %v1583
        %v1636 = vadd.f32 %v1632, %v1584
        %v1637 = vadd.f32 %v1633, %v1585
        %v1638 = vadd.f32 %v1634, %v1586
        %v1639 = vadd.f32 %v1635, %v1589
        %v1640 = vadd.f32 %v1636, %v1590
        %v1641 = vadd.f32 %v1637, %v1591
        %v1642 = vadd.f32 %v1638, %v1592
        %v1643 = vadd.f32 %v1639, %v1595
        %v1644 = vadd.f32 %v1640, %v1596
        %v1645 = vadd.f32 %v1641, %v1597
        %v1646 = vadd.f32 %v1642, %v1598
        %v1647 = vadd.f32 %v1643, %v1601
        %v1648 = vadd.f32 %v1644, %v1602
        %v1649 = vadd.f32 %v1645, %v1603
        %v1650 = vadd.f32 %v1646, %v1604
        %v1651 = vadd.f32 %v1647, %v1607
        %v1652 = vadd.f32 %v1648, %v1608
        %v1653 = vadd.f32 %v1649, %v1609
        %v1654 = vadd.f32 %v1650, %v1610
        %s1655 = sld [smem:[#allocation9 + $0x48]]
        %v1656 = vstv %s1655
        %v1657 = vmul.f32 %v461, %v1656
        %v1658 = vmul.f32 %v462, %v1656
        %v1659 = vmul.f32 %v463, %v1656
        %v1660 = vmul.f32 %v464, %v1656
        %s1661 = sld [smem:[#allocation9 + $0x49]]
        %v1662 = vstv %s1661
        %v1663 = vmul.f32 %v449, %v1662
        %v1664 = vmul.f32 %v450, %v1662
        %v1665 = vmul.f32 %v451, %v1662
        %v1666 = vmul.f32 %v452, %v1662
        %s1667 = sld [smem:[#allocation9 + $0x4a]]
        %v1668 = vstv %s1667
        %v1669 = vmul.f32 %v473, %v1668
        %v1670 = vmul.f32 %v474, %v1668
        %v1671 = vmul.f32 %v475, %v1668
        %v1672 = vmul.f32 %v476, %v1668
        %s1673 = sld [smem:[#allocation9 + $0x51]]
        %v1674 = vstv %s1673
        %v1675 = vmul.f32 %v512, %v1674
        %v1676 = vmul.f32 %v513, %v1674
        %v1677 = vmul.f32 %v514, %v1674
        %v1678 = vmul.f32 %v515, %v1674
        %s1679 = sld [smem:[#allocation9 + $0x52]]
        %v1680 = vstv %s1679
        %v1681 = vmul.f32 %v500, %v1680
        %v1682 = vmul.f32 %v501, %v1680
        %v1683 = vmul.f32 %v502, %v1680
        %v1684 = vmul.f32 %v503, %v1680
        %s1685 = sld [smem:[#allocation9 + $0x53]]
        %v1686 = vstv %s1685
        %v1687 = vmul.f32 %v524, %v1686
        %v1688 = vmul.f32 %v525, %v1686
        %v1689 = vmul.f32 %v526, %v1686
        %v1690 = vmul.f32 %v527, %v1686
        %s1691 = sld [smem:[#allocation9 + $0x5a]]
        %v1692 = vstv %s1691
        %v1693 = vmul.f32 %v559, %v1692
        %v1694 = vmul.f32 %v560, %v1692
        %v1695 = vmul.f32 %v561, %v1692
        %v1696 = vmul.f32 %v562, %v1692
        %s1697 = sld [smem:[#allocation9 + $0x5b]]
        %v1698 = vstv %s1697
        %v1699 = vmul.f32 %v547, %v1698
        %v1700 = vmul.f32 %v548, %v1698
        %v1701 = vmul.f32 %v549, %v1698
        %v1702 = vmul.f32 %v550, %v1698
        %s1703 = sld [smem:[#allocation9 + $0x5c]]
        %v1704 = vstv %s1703
        %v1705 = vmul.f32 %v571, %v1704
        %v1706 = vmul.f32 %v572, %v1704
        %v1707 = vmul.f32 %v573, %v1704
        %v1708 = vmul.f32 %v574, %v1704
        %s1709 = sld [smem:[#allocation9 + $0x63]]
        %v1710 = vstv %s1709
        %v1711 = vmul.f32 %v606, %v1710
        %v1712 = vmul.f32 %v607, %v1710
        %v1713 = vmul.f32 %v608, %v1710
        %v1714 = vmul.f32 %v609, %v1710
        %s1715 = sld [smem:[#allocation9 + $0x64]]
        %v1716 = vstv %s1715
        %v1717 = vmul.f32 %v594, %v1716
        %v1718 = vmul.f32 %v595, %v1716
        %v1719 = vmul.f32 %v596, %v1716
        %v1720 = vmul.f32 %v597, %v1716
        %s1721 = sld [smem:[#allocation9 + $0x65]]
        %v1722 = vstv %s1721
        %v1723 = vmul.f32 %v618, %v1722
        %v1724 = vmul.f32 %v619, %v1722
        %v1725 = vmul.f32 %v620, %v1722
        %v1726 = vmul.f32 %v621, %v1722
        %v1727 = vadd.f32 %v1657, %v1663
        %v1728 = vadd.f32 %v1658, %v1664
        %v1729 = vadd.f32 %v1659, %v1665
        %v1730 = vadd.f32 %v1660, %v1666
        %v1731 = vadd.f32 %v1727, %v1669
        %v1732 = vadd.f32 %v1728, %v1670
        %v1733 = vadd.f32 %v1729, %v1671
        %v1734 = vadd.f32 %v1730, %v1672
        %v1735 = vadd.f32 %v1731, %v1675
        %v1736 = vadd.f32 %v1732, %v1676
        %v1737 = vadd.f32 %v1733, %v1677
        %v1738 = vadd.f32 %v1734, %v1678
        %v1739 = vadd.f32 %v1735, %v1681
        %v1740 = vadd.f32 %v1736, %v1682
        %v1741 = vadd.f32 %v1737, %v1683
        %v1742 = vadd.f32 %v1738, %v1684
        %v1743 = vadd.f32 %v1739, %v1687
        %v1744 = vadd.f32 %v1740, %v1688
        %v1745 = vadd.f32 %v1741, %v1689
        %v1746 = vadd.f32 %v1742, %v1690
        %v1747 = vadd.f32 %v1743, %v1693
        %v1748 = vadd.f32 %v1744, %v1694
        %v1749 = vadd.f32 %v1745, %v1695
        %v1750 = vadd.f32 %v1746, %v1696
        %v1751 = vadd.f32 %v1747, %v1699
        %v1752 = vadd.f32 %v1748, %v1700
        %v1753 = vadd.f32 %v1749, %v1701
        %v1754 = vadd.f32 %v1750, %v1702
        %v1755 = vadd.f32 %v1751, %v1705
        %v1756 = vadd.f32 %v1752, %v1706
        %v1757 = vadd.f32 %v1753, %v1707
        %v1758 = vadd.f32 %v1754, %v1708
        %v1759 = vadd.f32 %v1755, %v1711
        %v1760 = vadd.f32 %v1756, %v1712
        %v1761 = vadd.f32 %v1757, %v1713
        %v1762 = vadd.f32 %v1758, %v1714
        %v1763 = vadd.f32 %v1759, %v1717
        %v1764 = vadd.f32 %v1760, %v1718
        %v1765 = vadd.f32 %v1761, %v1719
        %v1766 = vadd.f32 %v1762, %v1720
        %v1767 = vadd.f32 %v1763, %v1723
        %v1768 = vadd.f32 %v1764, %v1724
        %v1769 = vadd.f32 %v1765, %v1725
        %v1770 = vadd.f32 %v1766, %v1726
        %s1771 = sld [smem:[#allocation9 + $0x4e]]
        %v1772 = vstv %s1771
        %v1773 = vmul.f32 %v461, %v1772
        %v1774 = vmul.f32 %v462, %v1772
        %v1775 = vmul.f32 %v463, %v1772
        %v1776 = vmul.f32 %v464, %v1772
        %s1777 = sld [smem:[#allocation9 + $0x4f]]
        %v1778 = vstv %s1777
        %v1779 = vmul.f32 %v449, %v1778
        %v1780 = vmul.f32 %v450, %v1778
        %v1781 = vmul.f32 %v451, %v1778
        %v1782 = vmul.f32 %v452, %v1778
        %s1783 = sld [smem:[#allocation9 + $0x50]]
        %v1784 = vstv %s1783
        %v1785 = vmul.f32 %v473, %v1784
        %v1786 = vmul.f32 %v474, %v1784
        %v1787 = vmul.f32 %v475, %v1784
        %v1788 = vmul.f32 %v476, %v1784
        %s1789 = sld [smem:[#allocation9 + $0x57]]
        %v1790 = vstv %s1789
        %v1791 = vmul.f32 %v512, %v1790
        %v1792 = vmul.f32 %v513, %v1790
        %v1793 = vmul.f32 %v514, %v1790
        %v1794 = vmul.f32 %v515, %v1790
        %s1795 = sld [smem:[#allocation9 + $0x58]]
        %v1796 = vstv %s1795
        %v1797 = vmul.f32 %v500, %v1796
        %v1798 = vmul.f32 %v501, %v1796
        %v1799 = vmul.f32 %v502, %v1796
        %v1800 = vmul.f32 %v503, %v1796
        %s1801 = sld [smem:[#allocation9 + $0x59]]
        %v1802 = vstv %s1801
        %v1803 = vmul.f32 %v524, %v1802
        %v1804 = vmul.f32 %v525, %v1802
        %v1805 = vmul.f32 %v526, %v1802
        %v1806 = vmul.f32 %v527, %v1802
        %s1807 = sld [smem:[#allocation9 + $0x60]]
        %v1808 = vstv %s1807
        %v1809 = vmul.f32 %v559, %v1808
        %v1810 = vmul.f32 %v560, %v1808
        %v1811 = vmul.f32 %v561, %v1808
        %v1812 = vmul.f32 %v562, %v1808
        %s1813 = sld [smem:[#allocation9 + $0x61]]
        %v1814 = vstv %s1813
        %v1815 = vmul.f32 %v547, %v1814
        %v1816 = vmul.f32 %v548, %v1814
        %v1817 = vmul.f32 %v549, %v1814
        %v1818 = vmul.f32 %v550, %v1814
        %s1819 = sld [smem:[#allocation9 + $0x62]]
        %v1820 = vstv %s1819
        %v1821 = vmul.f32 %v571, %v1820
        %v1822 = vmul.f32 %v572, %v1820
        %v1823 = vmul.f32 %v573, %v1820
        %v1824 = vmul.f32 %v574, %v1820
        %s1825 = sld [smem:[#allocation9 + $0x69]]
        %v1826 = vstv %s1825
        %v1827 = vmul.f32 %v606, %v1826
        %v1828 = vmul.f32 %v607, %v1826
        %v1829 = vmul.f32 %v608, %v1826
        %v1830 = vmul.f32 %v609, %v1826
        %s1831 = sld [smem:[#allocation9 + $0x6a]]
        %v1832 = vstv %s1831
        %v1833 = vmul.f32 %v594, %v1832
        %v1834 = vmul.f32 %v595, %v1832
        %v1835 = vmul.f32 %v596, %v1832
        %v1836 = vmul.f32 %v597, %v1832
        %s1837 = sld [smem:[#allocation9 + $0x6b]]
        %v1838 = vstv %s1837
        %v1839 = vmul.f32 %v618, %v1838
        %v1840 = vmul.f32 %v619, %v1838
        %v1841 = vmul.f32 %v620, %v1838
        %v1842 = vmul.f32 %v621, %v1838
        %v1843 = vadd.f32 %v1773, %v1779
        %v1844 = vadd.f32 %v1774, %v1780
        %v1845 = vadd.f32 %v1775, %v1781
        %v1846 = vadd.f32 %v1776, %v1782
        %v1847 = vadd.f32 %v1843, %v1785
        %v1848 = vadd.f32 %v1844, %v1786
        %v1849 = vadd.f32 %v1845, %v1787
        %v1850 = vadd.f32 %v1846, %v1788
        %v1851 = vadd.f32 %v1847, %v1791
        %v1852 = vadd.f32 %v1848, %v1792
        %v1853 = vadd.f32 %v1849, %v1793
        %v1854 = vadd.f32 %v1850, %v1794
        %v1855 = vadd.f32 %v1851, %v1797
        %v1856 = vadd.f32 %v1852, %v1798
        %v1857 = vadd.f32 %v1853, %v1799
        %v1858 = vadd.f32 %v1854, %v1800
        %v1859 = vadd.f32 %v1855, %v1803
        %v1860 = vadd.f32 %v1856, %v1804
        %v1861 = vadd.f32 %v1857, %v1805
        %v1862 = vadd.f32 %v1858, %v1806
        %v1863 = vadd.f32 %v1859, %v1809
        %v1864 = vadd.f32 %v1860, %v1810
        %v1865 = vadd.f32 %v1861, %v1811
        %v1866 = vadd.f32 %v1862, %v1812
        %v1867 = vadd.f32 %v1863, %v1815
        %v1868 = vadd.f32 %v1864, %v1816
        %v1869 = vadd.f32 %v1865, %v1817
        %v1870 = vadd.f32 %v1866, %v1818
        %v1871 = vadd.f32 %v1867, %v1821
        %v1872 = vadd.f32 %v1868, %v1822
        %v1873 = vadd.f32 %v1869, %v1823
        %v1874 = vadd.f32 %v1870, %v1824
        %v1875 = vadd.f32 %v1871, %v1827
        %v1876 = vadd.f32 %v1872, %v1828
        %v1877 = vadd.f32 %v1873, %v1829
        %v1878 = vadd.f32 %v1874, %v1830
        %v1879 = vadd.f32 %v1875, %v1833
        %v1880 = vadd.f32 %v1876, %v1834
        %v1881 = vadd.f32 %v1877, %v1835
        %v1882 = vadd.f32 %v1878, %v1836
        %v1883 = vadd.f32 %v1879, %v1839
        %v1884 = vadd.f32 %v1880, %v1840
        %v1885 = vadd.f32 %v1881, %v1841
        %v1886 = vadd.f32 %v1882, %v1842
        %v1887 = vmul.f32 %v484, %v1656
        %v1888 = vmul.f32 %v481, %v1662
        %v1889 = vmul.f32 %v487, %v1668
        %v1890 = vmul.f32 %v533, %v1674
        %v1891 = vmul.f32 %v530, %v1680
        %v1892 = vmul.f32 %v536, %v1686
        %v1893 = vmul.f32 %v580, %v1692
        %v1894 = vmul.f32 %v577, %v1698
        %v1895 = vmul.f32 %v583, %v1704
        %v1896 = vmul.f32 %v627, %v1710
        %v1897 = vmul.f32 %v624, %v1716
        %v1898 = vmul.f32 %v630, %v1722
        %v1899 = vadd.f32 %v1887, %v1888
        %v1900 = vadd.f32 %v1899, %v1889
        %v1901 = vadd.f32 %v1900, %v1890
        %v1902 = vadd.f32 %v1901, %v1891
        %v1903 = vadd.f32 %v1902, %v1892
        %v1904 = vadd.f32 %v1903, %v1893
        %v1905 = vadd.f32 %v1904, %v1894
        %v1906 = vadd.f32 %v1905, %v1895
        %v1907 = vadd.f32 %v1906, %v1896
        %v1908 = vadd.f32 %v1907, %v1897
        %v1909 = vadd.f32 %v1908, %v1898
        %v1910 = vmul.f32 %v495, %v1772
        %v1911 = vmul.f32 %v492, %v1778
        %v1912 = vmul.f32 %v498, %v1784
        %v1913 = vmul.f32 %v542, %v1790
        %v1914 = vmul.f32 %v539, %v1796
        %v1915 = vmul.f32 %v545, %v1802
        %v1916 = vmul.f32 %v589, %v1808
        %v1917 = vmul.f32 %v586, %v1814
        %v1918 = vmul.f32 %v592, %v1820
        %v1919 = vmul.f32 %v636, %v1826
        %v1920 = vmul.f32 %v633, %v1832
        %v1921 = vmul.f32 %v639, %v1838
        %v1922 = vadd.f32 %v1910, %v1911
        %v1923 = vadd.f32 %v1922, %v1912
        %v1924 = vadd.f32 %v1923, %v1913
        %v1925 = vadd.f32 %v1924, %v1914
        %v1926 = vadd.f32 %v1925, %v1915
        %v1927 = vadd.f32 %v1926, %v1916
        %v1928 = vadd.f32 %v1927, %v1917
        %v1929 = vadd.f32 %v1928, %v1918
        %v1930 = vadd.f32 %v1929, %v1919
        %v1931 = vadd.f32 %v1930, %v1920
        %v1932 = vadd.f32 %v1931, %v1921
        %v1933 = vrot.slane %v1767, 7
        %v1934 = vrot.slane %v1768, 7
        %v1935 = vrot.slane %v1769, 7
        %v1936 = vrot.slane %v1770, 7
        %v1937 = vsel %vm1038, %v1935, %v1936
        %v1938 = vsel %vm1038, %v1934, %v1935
        %v1939 = vsel %vm1038, %v1933, %v1934
        %v1940 = vsel %vm1038, %v1936, %v1933
        %v1941 = vlaneseq
        %v1942 = vshrl.u32 %v1941, 7
        %v1943 = vsub.s32 0, %v1942
        %v1944 = vrot.slane %v1909, %v1943
        %v1945 = vsel %vm441, %v1944, %v1940
        %v1946 = vsel %vm442, %v1944, %v1939
        %v1947 = vsel %vm443, %v1944, %v1938
        %v1948 = vsel %vm444, %v1944, %v1937
        %v1949 = vrot.slane %v1883, 1
        %v1950 = vrot.slane %v1884, 1
        %v1951 = vrot.slane %v1885, 1
        %v1952 = vrot.slane %v1886, 1
        %v1953 = vsel %vm1055, %v1951, %v1952
        %v1954 = vsel %vm1055, %v1950, %v1951
        %v1955 = vsel %vm1055, %v1949, %v1950
        %v1956 = vsel %vm1055, %v1952, %v1949
        %v1957 = vlaneseq
        %v1958 = vshrl.u32 %v1957, 7
        %v1959 = vsub.s32 0, %v1958
        %v1960 = vrot.slane %v1932, %v1959
        %v1961 = vsel %vm445, %v1960, %v1955
        %v1962 = vsel %vm446, %v1960, %v1954
        %v1963 = vsel %vm447, %v1960, %v1953
        %v1964 = vsel %vm448, %v1960, %v1956
        %v1965 = vadd.f32 %v1651, %v1945
        %v1966 = vadd.f32 %v1652, %v1946
        %v1967 = vadd.f32 %v1653, %v1947
        %v1968 = vadd.f32 %v1654, %v1948
        %v1969 = vadd.f32 %v1965, %v1961
        %v1970 = vadd.f32 %v1966, %v1962
        %v1971 = vadd.f32 %v1967, %v1963
        %v1972 = vadd.f32 %v1968, %v1964
        %s1973 = sld [smem:[#allocation10 + $0x2]]
        %v1974 = vstv %s1973
        %v1975 = vadd.f32 %v1969, %v1974
        %v1976 = vadd.f32 %v1970, %v1974
        %v1977 = vadd.f32 %v1971, %v1974
        %v1978 = vadd.f32 %v1972, %v1974
        %v1979 = vtanh.pop %v1975
        %v1980 = vtanh.pop %v1976
        %v1981 = vtanh.pop %v1977
        %v1982 = vtanh.pop %v1978
        %s1983 = scalar_lea.vmem %s419, 64 [#allocation12]
        %1984 = vst [vmem:[%s1983] sm:$0xff] %v1979
        %1985 = vst [vmem:[%s1983 + $0x8] sm:$0xff] %v1980
        %1986 = vst [vmem:[%s1983 + $0x10] sm:$0xff] %v1981
        %1987 = vst [vmem:[%s1983 + $0x18] sm:$0xff] %v1982
        %s1988 = sand.u32 %s191, 1
        %s1989 = scalar_lea.sflag [#allocation4], %s1988
        %s1990 = sand.u32 %s191, 1
        %s1991 = smul.addr %s1990, 96
        %s1992 = scalar_lea.vmem [#allocation12], %s1991
        // Predicated region
        $region61: #{output_layer_forward.2} parent=39 // pred_check
          %p1993 = pneg %p201
        $region62: #{output_layer_forward.2} parent=39 // pred_check_branch
          %1995 = sbr.rel (%p1993) target = $region64
        $region63: #{output_layer_forward.2} parent=39 // pred_region
          #allocation16 [shape = 'u32[6]{0}', space=smem, size = 0x18, scoped, tag = 'DMA stride descriptor']
          %s1996 = smul.u32 4, %s32
          %s1998 = ssub.s32 1536, 1536
          %1999 = vsyncadd %s1989, %s1998
          %s2000 = smul.addr %s31, 48
          %s2001 = sadd.s32 %s1996, %s2000
          %s2002 = smul.addr %s2001, 128
          %s2003 = scalar_lea.hbm %s5, %s2002
          %s2005 = sshll.u32 1, 14
          %s2006 = sxor.u32 4294967295, %s2005
          %s2009 = sshll.u32 7, 18
          %s2010 = sxor.u32 4294967295, %s2009
          %s2011 = sand.u32 0, %s2010
          %s2013 = sor.u32 %s2011, 0
          %s2015 = sshll.u32 3, 24
          %s2016 = sxor.u32 4294967295, %s2015
          %s2017 = sand.u32 %s2013, %s2016
          %s2019 = sor.u32 %s2017, 0
          %s2020 = sshll.u32 %s1992, 4
          %s2021 = int_to_ptr.vmem [resolvable:$true] %s2020
          %2027 = sst [smem:[#allocation16]] 512
          %s2028 = scalar_lea.smem [#allocation16], 1
          %2029 = sst [smem:[%s2028]] 2048
          %s2030 = scalar_lea.smem [#allocation16], 2
          %2031 = sst [smem:[%s2030]] 4
          %s2032 = scalar_lea.smem [#allocation16], 3
          %2033 = sst [smem:[%s2032]] 128
          %s2034 = scalar_lea.smem [#allocation16], 4
          %2035 = sst [smem:[%s2034]] 128
          %s2036 = scalar_lea.smem [#allocation16], 5
          %2037 = sst [smem:[%s2036]] 8
          %2039 = dma.general %s2021, 1536, %s2003, %s1989, [#allocation15], [#allocation16], %s2019, 0
        $region64: #{output_layer_forward.2} parent=39 // pred_fallthru
          _
      $region40: #{output_layer_forward.2} parent=5 // pred_fallthru
        _
      %p2040 = scmp.le.s32.totalorder 2, %s22
      // Predicated region
      $region65: #{output_layer_forward.2} parent=5 // pred_check
        %p2041 = pneg %p2040
      $region66: #{output_layer_forward.2} parent=5 // pred_check_branch
        %2043 = sbr.rel (%p2041) target = $region68
      $region67: #{output_layer_forward.2} parent=5 // pred_region
        %s2044 = ssub.s32 %s22, 2
        // Predicated region
        $region69: #{output_layer_forward.2} parent=67 // pred_check
          %p2045 = pneg %p207
        $region70: #{output_layer_forward.2} parent=67 // pred_check_branch
          %2047 = sbr.rel (%p2045) target = $region72
        $region71: #{output_layer_forward.2} parent=67 // pred_region
          %s2048 = sand.u32 %s192, 1
          %s2049 = scalar_lea.sflag [#allocation4], %s2048
          %s2050 = sand.u32 %s192, 1
          %s2051 = smul.addr %s2050, 96
          %s2052 = scalar_lea.vmem [#allocation12], %s2051
          %2053 = dma.done %s2049, 1536
        $region72: #{output_layer_forward.2} parent=67 // pred_fallthru
          _
      $region68: #{output_layer_forward.2} parent=5 // pred_fallthru
        _
    $region6: #{output_layer_forward.2} parent=1 // loop_footer
      %s26 = sadd.s32 1, %s22
    $region7: #{output_layer_forward.2} parent=1 // loop_footer_branch
      %21 = sbr.rel target = $region3
    $region8: #{output_layer_forward.2} parent=1 // loop_exit
      _
    %2054 = vsyncpa [#allocation3], 1
    %s2055 = scalar_lea.sflag [#allocation3], 1
    %2056 = vsyncpa %s2055, 1
    %2057 = vsyncpa [#allocation7], 1
    %s2058 = scalar_lea.sflag [#allocation7], 1
    %2059 = vsyncpa %s2058, 1
    %2060 = vsyncpa [#allocation4], 1
    %s2061 = scalar_lea.sflag [#allocation4], 1
    %2062 = vsyncpa %s2061, 1
    %2063 = vsyncpa [#allocation5], 1
    %s2064 = scalar_lea.sflag [#allocation5], 1
    %2065 = vsyncpa %s2064, 1
    %2066 = vsyncpa [#allocation11], 1

</llo_original>
